<compile_context>
chip_gen: v7x
topology: tpu7x:2x2x1
jax: 0.10.0
libtpu: 0.0.40
codegen_flags: <defaults>
</compile_context>

<pallas_src>
import functools
import math

import jax
import jax.numpy as jnp
from jax.experimental import pallas as pl
from jax.experimental.pallas import tpu as pltpu


_VMEM_LIMIT = 32 * 1024 * 1024   # scoped-VMEM budget; fits v7x (64 MiB physical)
_PACK_W = 128                    # lane-dense width of the packed top-K output


def _row_tile(n, max_tile):
    """Largest multiple-of-8 row tile <= max_tile that divides n, preferring
    >=2 grid steps (v7x splits 'parallel' grid axes across its 2 TCs)."""
    if n < 16:
        return n
    cap = min(max_tile, (n // 2) // 8 * 8)
    t = max(cap - cap % 8, 8)
    while t >= 8:
        if n % t == 0:
            return t
        t -= 8
    return n  # fall back to full-array block (always (8,128)-legal)


# ----------------------------- Pallas kernels ------------------------------

def _fc1_topk_kernel(x_ref, w1_ref, b1_ref, xt_ref, pack_ref, *, k):
    """fc1 + tanh + cosine top-K, fused (no HBM round trip for hn or (N,N) S).

    Outputs:
      xt_ref   : (tm, hs)  tanh(fc1(x)) rows for this tile
      pack_ref : (tm, 128) lane-dense slab: lanes [0:k]=top-K values (desc),
                 lanes [k:2k]=top-K indices (as exact small floats), rest 0.
    """
    n = x_ref.shape[0]
    tm = xt_ref.shape[0]
    start = pl.multiple_of(pl.program_id(0) * tm, tm)

    w1 = w1_ref[...]
    b1 = b1_ref[...]

    # fc1 over ALL rows (fan-in is tiny -> redundant compute per tile is ~free)
    # so the full normalized matrix is resident without an HBM round trip.
    h_full = jnp.dot(x_ref[...], w1, preferred_element_type=jnp.float32) + b1
    inv_full = jax.lax.rsqrt(jnp.sum(h_full * h_full, axis=-1, keepdims=True)
                             + 1e-12)
    hn_full = h_full * inv_full                              # (N, hs)

    # This tile's rows (sliced from the resident full x block -> no extra DMA).
    x_tile = x_ref[pl.ds(start, tm), :]
    h_tile = jnp.dot(x_tile, w1, preferred_element_type=jnp.float32) + b1
    xt_ref[...] = jnp.tanh(h_tile)                           # dropout(p=0) = id
    inv_tile = jax.lax.rsqrt(jnp.sum(h_tile * h_tile, axis=-1, keepdims=True)
                             + 1e-12)
    hn_tile = h_tile * inv_tile

    # Cosine-similarity rows for this tile (rows already normalized): (tm, N).
    s = jax.lax.dot_general(hn_tile, hn_full, (((1,), (1,)), ((), ())),
                            preferred_element_type=jnp.float32)

    # K-pass max + first-argmax.  The lane iota is regenerated per pass so it
    # is never live across passes (keeps the working set register-resident).
    vals, idxs = [], []
    cur = s
    for _ in range(k):
        col = jax.lax.broadcasted_iota(jnp.int32, cur.shape, 1)
        m = jnp.max(cur, axis=-1, keepdims=True)
        am = jnp.min(jnp.where(cur == m, col, n), axis=-1, keepdims=True)
        vals.append(m)
        idxs.append(am.astype(jnp.float32))   # exact for n < 2**24
        cur = jnp.where(col == am, -jnp.inf, cur)

    pad = jnp.zeros((tm, pack_ref.shape[-1] - 2 * k), jnp.float32)
    pack_ref[...] = jnp.concatenate(vals + idxs + [pad], axis=-1)


def _graph_head_kernel(xt_full_ref, idx_ref, w_ref, xp_row_ref, xp_tile_ref,
                       wstack_ref, w2_ref, slab_ref, out_ref):
    """SAGE mean aggregation + lin_l/lin_r + fc2/ReLU + fc3 for one row tile.

    slab rows: 0=Wl price col, 1=Wr price col, 2=lin_l bias, 3=fc2 bias,
               4=fc3 weight row, 5=fc3 bias (broadcast).
    Output is staged lane-dense as a (1, tm) row.
    """
    n, _ = xt_full_ref.shape
    tm, k = idx_ref.shape
    start = pl.multiple_of(pl.program_id(0) * tm, tm)

    xt_tile = xt_full_ref[pl.ds(start, tm), :]               # (tm, hs) root rows
    idx = idx_ref[...]                                        # (tm, K) int32
    wgt = w_ref[...]                                          # (tm, K) mask/deg

    # Rebuild the K-sparse mean-normalized adjacency rows in-kernel (one-hot
    # compares) -- no (N,N) A in HBM, no XLA scatter, no (tm,N) DMA.
    col = jax.lax.broadcasted_iota(jnp.int32, (tm, n), 1)
    a = jnp.zeros((tm, n), jnp.float32)
    for kk in range(k):
        a = a + jnp.where(col == idx[:, kk:kk + 1], wgt[:, kk:kk + 1], 0.0)

    # SAGE mean aggregation of [tanh(fc1(x)) | x_price1] over neighbors.
    aggr_x = jnp.dot(a, xt_full_ref[...],
                     preferred_element_type=jnp.float32)      # (tm, hs)  MXU
    aggr_p = jnp.sum(a * xp_row_ref[...], axis=-1, keepdims=True)  # (tm, 1) VPU

    # lin_l(aggr) + lin_r(x_i) fused into one (tm, 2hs) @ (2hs, hs) matmul
    # (K=256 contraction fills the v6e/v7x systolic depth).
    # TODO(synk): on v5e (4x128 MXU) splitting into two K=128 matmuls and
    # skipping the concat copy is slightly better; kept fused here.
    stacked = jnp.concatenate([aggr_x, xt_tile], axis=-1)     # (tm, 2hs)
    g = (jnp.dot(stacked, wstack_ref[...], preferred_element_type=jnp.float32)
         + aggr_p * slab_ref[0:1, :]             # Wl price column
         + xp_tile_ref[...] * slab_ref[1:2, :]   # Wr price column
         + slab_ref[2:3, :])                     # lin_l bias

    # fc2 + ReLU
    f2 = jnp.maximum(
        jnp.dot(g, w2_ref[...], preferred_element_type=jnp.float32)
        + slab_ref[3:4, :], 0.0)

    # fc3 as a (1,hs) x (tm,hs) contraction -> lane-dense (1, tm) row store
    # (no width-1 masked stores).
    out_ref[...] = (jax.lax.dot_general(slab_ref[4:5, :], f2,
                                        (((1,), (1,)), ((), ())),
                                        preferred_element_type=jnp.float32)
                    + slab_ref[5:6, 0:1])


# ----------------------------- kernel wrappers ------------------------------

def fc1_topk(xw, w1t, b1_row, k):
    """Fused fc1 + tanh + cosine top-K.  Returns (xt (N,hs), pack (N,128))."""
    n, fin = xw.shape
    hs = w1t.shape[1]
    tm = _row_tile(n, 64)          # small tile keeps the top-K scan in vregs
    grid_n = n // tm
    cost = pl.CostEstimate(
        flops=int(2 * n * n * hs + grid_n * 2 * n * fin * hs + 3 * k * n * n),
        transcendentals=int(n * hs + grid_n * n),
        bytes_accessed=int(4 * (grid_n * (n * fin + fin * hs + hs)
                                + n * hs + n * _PACK_W)))
    return pl.pallas_call(
        functools.partial(_fc1_topk_kernel, k=k),
        grid=(grid_n,),
        out_shape=(jax.ShapeDtypeStruct((n, hs), jnp.float32),
                   jax.ShapeDtypeStruct((n, _PACK_W), jnp.float32)),
        in_specs=[pl.BlockSpec((n, fin), lambda i: (0, 0)),    # full x (once)
                  pl.BlockSpec((fin, hs), lambda i: (0, 0)),   # W1^T
                  pl.BlockSpec((1, hs), lambda i: (0, 0))],    # b1
        out_specs=(pl.BlockSpec((tm, hs), lambda i: (i, 0)),
                   pl.BlockSpec((tm, _PACK_W), lambda i: (i, 0))),
        compiler_params=pltpu.CompilerParams(
            dimension_semantics=("parallel",),
            vmem_limit_bytes=_VMEM_LIMIT),
        cost_estimate=cost,
    )(xw, w1t, b1_row)


def graph_head(xt, idx, w, xp, wstack, w2t, slab):
    """SAGE aggregation + combine + fc2/ReLU + fc3.  Returns (N, 1)."""
    n, hs = xt.shape
    k = idx.shape[1]
    tm = _row_tile(n, 128)
    grid_n = n // tm
    xp_row = xp.reshape(1, n)
    cost = pl.CostEstimate(
        flops=int(2 * n * n * hs + 4 * n * hs * hs + 2 * n * hs * hs
                  + 2 * n * hs + 2 * k * n * n),
        transcendentals=0,
        bytes_accessed=int(4 * (grid_n * (n * hs + n + 3 * hs * hs + 6 * hs)
                                + 2 * n * k + 2 * n + n)))
    out_row = pl.pallas_call(
        _graph_head_kernel,
        grid=(grid_n,),
        out_shape=jax.ShapeDtypeStruct((1, n), jnp.float32),
        in_specs=[pl.BlockSpec((n, hs), lambda i: (0, 0)),      # xt full (aggr + tile slice)
                  pl.BlockSpec((tm, k), lambda i: (i, 0)),      # neighbor idx tile
                  pl.BlockSpec((tm, k), lambda i: (i, 0)),      # mask/deg weights tile
                  pl.BlockSpec((1, n), lambda i: (0, 0)),       # x_price1 as row
                  pl.BlockSpec((tm, 1), lambda i: (i, 0)),      # x_price1 col tile
                  pl.BlockSpec((2 * hs, hs), lambda i: (0, 0)),  # [Wlx;Wrx]^T
                  pl.BlockSpec((hs, hs), lambda i: (0, 0)),     # W2^T
                  pl.BlockSpec((6, hs), lambda i: (0, 0))],     # packed slab
        out_specs=pl.BlockSpec((1, tm), lambda i: (0, i)),      # lane-dense row
        compiler_params=pltpu.CompilerParams(
            dimension_semantics=("parallel",),
            vmem_limit_bytes=_VMEM_LIMIT),
        cost_estimate=cost,
    )(xt, idx, w, xp_row, xp, wstack, w2t, slab)
    return out_row.reshape(n, 1)


# ------------------------------ model wrapper -------------------------------

def _linear_init(key, fan_in, fan_out, bias=True):
    kw, kb = jax.random.split(key)
    bound = 1.0 / math.sqrt(fan_in)
    W = jax.random.uniform(kw, (fan_out, fan_in), jnp.float32, -bound, bound)
    b = (jax.random.uniform(kb, (fan_out,), jnp.float32, -bound, bound)
         if bias else None)
    return W, b


def init_params(key, input_size, hs):
    k1, k2, k3, k4, k5 = jax.random.split(key, 5)
    W1, b1 = _linear_init(k1, input_size - 1, hs)           # fc1
    Wl, bl = _linear_init(k2, hs + 1, hs)                    # SAGEConv lin_l (bias)
    Wr, _ = _linear_init(k3, hs + 1, hs, bias=False)         # SAGEConv lin_r
    W2, b2 = _linear_init(k4, hs, hs)                         # fc2
    W3, b3 = _linear_init(k5, hs, 1)                          # fc3
    return dict(W1=W1, b1=b1, Wl=Wl, bl=bl, Wr=Wr, W2=W2, b2=b2, W3=W3, b3=b3)


def my_model_forward(x, params, K=5, sim_threshold=0.98):
    N = x.shape[0]
    hs = params['W1'].shape[0]
    price = x[:, 0:1]
    x_wo_price = x[:, 1:]

    # Pallas kernel A (fused): fc1 + tanh + cosine normalize + top-K.
    xt, pack = fc1_topk(x_wo_price, params['W1'].T, params['b1'][None, :], K)
    vals = pack[:, :K]
    idx = pack[:, K:2 * K].astype(jnp.int32)

    # create_edges glue: keep cos-sim > 0.98, drop self-loops, per-node mean
    # weights.  No (N,N) adjacency and no scatter -- only (N,K) arrays.
    # TODO(synk): softmax edge_attrs are computed in PyTorch but never used
    # downstream in forward(); omitted here.
    row = jnp.arange(N, dtype=jnp.int32)[:, None]
    mask = (vals > sim_threshold) & (idx != row)
    maskf = mask.astype(jnp.float32)
    deg = jnp.sum(maskf, axis=1, keepdims=True)
    w = maskf / jnp.maximum(deg, 1.0)                         # (N, K)

    # x_price1[i] = mean price of i's valid neighbors (tiny (N,K) gather).
    price_nb = jnp.take(price[:, 0], idx, axis=0)             # (N, K)
    xp = jnp.sum(w * price_nb, axis=1, keepdims=True)         # (N, 1)

    # Fused / packed SAGE + head weights.
    Wl, bl, Wr = params['Wl'], params['bl'], params['Wr']
    wstack = jnp.concatenate([Wl[:, :hs].T, Wr[:, :hs].T], axis=0)   # (2hs, hs)
    slab = jnp.stack([Wl[:, hs],                  # wlp
                      Wr[:, hs],                  # wrp
                      bl,                         # lin_l bias
                      params['b2'],               # fc2 bias
                      params['W3'][0],            # fc3 weight row
                      jnp.full((hs,), params['b3'][0])], axis=0)     # fc3 bias

    # Pallas kernel B: K-sparse SAGE aggregation + combine + fc2/ReLU + fc3.
    out = graph_head(xt, idx, w, xp, wstack, params['W2'].T, slab)

    # Static-shaped edge representation (src=idx, dst=row, valid=mask) standing
    # in for the dynamic-size r1_edge returned by PyTorch.
    edges = (idx, jnp.broadcast_to(row, idx.shape), mask)
    return out, edges


# ----------------------------------- main -----------------------------------

if __name__ == "__main__":
    N, input_size, hs, K = 256, 9, 128, 5

    key = jax.random.PRNGKey(0)
    k_x, k_dup, k_params = jax.random.split(key, 3)

    x = jax.random.normal(k_x, (N, input_size), dtype=jnp.float32)
    # Make node 1 nearly identical to node 0 so the cosine-similarity graph
    # (threshold 0.98) contains at least one real edge.
    x = x.at[1].set(x[0] + 1e-3 * jax.random.normal(k_dup, (input_size,)))

    params = init_params(k_params, input_size, hs)

    fwd = jax.jit(functools.partial(my_model_forward, K=K))
    out, (edge_src, edge_dst, edge_valid) = fwd(x, params)
    jax.block_until_ready(out)

    assert out.shape == (N, 1)
    assert bool(jnp.all(jnp.isfinite(out)))
    print("KERNEL_OK")
</pallas_src>

<mosaic_0001>
module attributes {stable_mosaic.version = 11 : i64} {
  func.func @_fc1_topk_kernel(%arg0: i32, %arg1: memref<256x8xf32, #tpu.memory_space<vmem>>, %arg2: memref<8x128xf32, #tpu.memory_space<vmem>>, %arg3: memref<1x128xf32, #tpu.memory_space<vmem>>, %arg4: memref<64x128xf32, #tpu.memory_space<vmem>>, %arg5: memref<64x128xf32, #tpu.memory_space<vmem>>) attributes {dimension_semantics = [#tpu.dimension_semantics<parallel>], iteration_bounds = array<i64: 4>, scalar_prefetch = 0 : i64, scratch_operands = 0 : i64, tpu.core_type = #tpu.core_type<tc>, window_params = [{pipeline_mode = #tpu.pipeline_mode<synchronous>, transform_indices = @transform_0, window_bounds = array<i64: 256, 8>}, {pipeline_mode = #tpu.pipeline_mode<synchronous>, transform_indices = @transform_1, window_bounds = array<i64: 8, 128>}, {pipeline_mode = #tpu.pipeline_mode<synchronous>, transform_indices = @transform_2, window_bounds = array<i64: 1, 128>}, {transform_indices = @transform_3, window_bounds = array<i64: 64, 128>}, {transform_indices = @transform_4, window_bounds = array<i64: 64, 128>}]} {
    %c64_i32 = arith.constant 64 : i32
    %0 = arith.muli %arg0, %c64_i32 : i32
    %1 = tpu.assume_multiple %0, 64 : i32
    %c0 = arith.constant 0 : index
    %c0_0 = arith.constant 0 : index
    %2 = vector.load %arg2[%c0, %c0_0] : memref<8x128xf32, #tpu.memory_space<vmem>>, vector<8x128xf32>
    %c0_1 = arith.constant 0 : index
    %c0_2 = arith.constant 0 : index
    %3 = vector.load %arg3[%c0_1, %c0_2] : memref<1x128xf32, #tpu.memory_space<vmem>>, vector<1x128xf32>
    %c0_3 = arith.constant 0 : index
    %c0_4 = arith.constant 0 : index
    %4 = vector.load %arg1[%c0_3, %c0_4] : memref<256x8xf32, #tpu.memory_space<vmem>>, vector<256x8xf32>
    %cst = arith.constant dense<0.000000e+00> : vector<256x128xf32>
    %5 = tpu.matmul %4, %2, %cst {dimension_numbers = #tpu.dot_dimension_numbers<[1], [0], [0], [1], [0, 0, 1, 1], [], []>} : vector<256x8xf32>, vector<8x128xf32>, vector<256x128xf32> -> vector<256x128xf32>
    %6 = vector.broadcast %3 : vector<1x128xf32> to vector<256x128xf32>
    %7 = arith.addf %5, %6 : vector<256x128xf32>
    %8 = arith.mulf %7, %7 : vector<256x128xf32>
    %cst_5 = arith.constant dense<0.000000e+00> : vector<256xf32>
    %9 = vector.multi_reduction <add>, %8, %cst_5 [1] : vector<256x128xf32> to vector<256xf32>
    %10 = vector.shape_cast %9 : vector<256xf32> to vector<256x1xf32>
    %cst_6 = arith.constant 9.99999996E-13 : f32
    %11 = vector.broadcast %cst_6 : f32 to vector<256x1xf32>
    %12 = arith.addf %10, %11 : vector<256x1xf32>
    %13 = math.rsqrt %12 : vector<256x1xf32>
    %14 = vector.broadcast %13 : vector<256x1xf32> to vector<256x128xf32>
    %15 = arith.mulf %7, %14 : vector<256x128xf32>
    %16 = arith.index_cast %1 : i32 to index
    %c0_7 = arith.constant 0 : index
    %17 = vector.load %arg1[%16, %c0_7] : memref<256x8xf32, #tpu.memory_space<vmem>>, vector<64x8xf32>
    %cst_8 = arith.constant dense<0.000000e+00> : vector<64x128xf32>
    %18 = tpu.matmul %17, %2, %cst_8 {dimension_numbers = #tpu.dot_dimension_numbers<[1], [0], [0], [1], [0, 0, 1, 1], [], []>} : vector<64x8xf32>, vector<8x128xf32>, vector<64x128xf32> -> vector<64x128xf32>
    %19 = vector.broadcast %3 : vector<1x128xf32> to vector<64x128xf32>
    %20 = arith.addf %18, %19 : vector<64x128xf32>
    %21 = math.tanh %20 : vector<64x128xf32>
    %c0_9 = arith.constant 0 : index
    %c0_10 = arith.constant 0 : index
    %22 = vector.load %arg4[%c0_9, %c0_10] : memref<64x128xf32, #tpu.memory_space<vmem>>, vector<64x128xf32>
    tpu.vector_store %arg4[%c0_9, %c0_10], %21 {strides = array<i32>} : memref<64x128xf32, #tpu.memory_space<vmem>>, vector<64x128xf32>,
    %23 = arith.mulf %20, %20 : vector<64x128xf32>
    %cst_11 = arith.constant dense<0.000000e+00> : vector<64xf32>
    %24 = vector.multi_reduction <add>, %23, %cst_11 [1] : vector<64x128xf32> to vector<64xf32>
    %25 = vector.shape_cast %24 : vector<64xf32> to vector<64x1xf32>
    %cst_12 = arith.constant 9.99999996E-13 : f32
    %26 = vector.broadcast %cst_12 : f32 to vector<64x1xf32>
    %27 = arith.addf %25, %26 : vector<64x1xf32>
    %28 = math.rsqrt %27 : vector<64x1xf32>
    %29 = vector.broadcast %28 : vector<64x1xf32> to vector<64x128xf32>
    %30 = arith.mulf %20, %29 : vector<64x128xf32>
    %cst_13 = arith.constant dense<0.000000e+00> : vector<64x256xf32>
    %31 = tpu.matmul %30, %15, %cst_13 {dimension_numbers = #tpu.dot_dimension_numbers<[1], [1], [0], [0], [0, 0, 1, 0], [], []>} : vector<64x128xf32>, vector<256x128xf32>, vector<64x256xf32> -> vector<64x256xf32>
    %32 = tpu.iota {dimensions = array<i32: 1>} : vector<64x256xi32>
    %cst_14 = arith.constant dense<0xFF800000> : vector<64xf32>
    %33 = vector.multi_reduction <maximumf>, %31, %cst_14 [1] : vector<64x256xf32> to vector<64xf32>
    %34 = vector.shape_cast %33 : vector<64xf32> to vector<64x1xf32>
    %35 = vector.broadcast %34 : vector<64x1xf32> to vector<64x256xf32>
    %36 = arith.cmpf oeq, %31, %35 : vector<64x256xf32>
    %c256_i32 = arith.constant 256 : i32
    %37 = vector.broadcast %c256_i32 : i32 to vector<64x256xi32>
    %38 = arith.select %36, %32, %37 : vector<64x256xi1>, vector<64x256xi32>
    %cst_15 = arith.constant dense<2147483647> : vector<64xi32>
    %39 = vector.multi_reduction <minsi>, %38, %cst_15 [1] : vector<64x256xi32> to vector<64xi32>
    %40 = vector.shape_cast %39 : vector<64xi32> to vector<64x1xi32>
    %41 = arith.sitofp %40 : vector<64x1xi32> to vector<64x1xf32>
    %42 = vector.broadcast %40 : vector<64x1xi32> to vector<64x256xi32>
    %43 = arith.cmpi eq, %32, %42 : vector<64x256xi32>
    %cst_16 = arith.constant 0xFF800000 : f32
    %44 = vector.broadcast %cst_16 : f32 to vector<64x256xf32>
    %45 = arith.select %43, %44, %31 : vector<64x256xi1>, vector<64x256xf32>
    %46 = tpu.iota {dimensions = array<i32: 1>} : vector<64x256xi32>
    %cst_17 = arith.constant dense<0xFF800000> : vector<64xf32>
    %47 = vector.multi_reduction <maximumf>, %45, %cst_17 [1] : vector<64x256xf32> to vector<64xf32>
    %48 = vector.shape_cast %47 : vector<64xf32> to vector<64x1xf32>
    %49 = vector.broadcast %48 : vector<64x1xf32> to vector<64x256xf32>
    %50 = arith.cmpf oeq, %45, %49 : vector<64x256xf32>
    %c256_i32_18 = arith.constant 256 : i32
    %51 = vector.broadcast %c256_i32_18 : i32 to vector<64x256xi32>
    %52 = arith.select %50, %46, %51 : vector<64x256xi1>, vector<64x256xi32>
    %cst_19 = arith.constant dense<2147483647> : vector<64xi32>
    %53 = vector.multi_reduction <minsi>, %52, %cst_19 [1] : vector<64x256xi32> to vector<64xi32>
    %54 = vector.shape_cast %53 : vector<64xi32> to vector<64x1xi32>
    %55 = arith.sitofp %54 : vector<64x1xi32> to vector<64x1xf32>
    %56 = vector.broadcast %54 : vector<64x1xi32> to vector<64x256xi32>
    %57 = arith.cmpi eq, %46, %56 : vector<64x256xi32>
    %cst_20 = arith.constant 0xFF800000 : f32
    %58 = vector.broadcast %cst_20 : f32 to vector<64x256xf32>
    %59 = arith.select %57, %58, %45 : vector<64x256xi1>, vector<64x256xf32>
    %60 = tpu.iota {dimensions = array<i32: 1>} : vector<64x256xi32>
    %cst_21 = arith.constant dense<0xFF800000> : vector<64xf32>
    %61 = vector.multi_reduction <maximumf>, %59, %cst_21 [1] : vector<64x256xf32> to vector<64xf32>
    %62 = vector.shape_cast %61 : vector<64xf32> to vector<64x1xf32>
    %63 = vector.broadcast %62 : vector<64x1xf32> to vector<64x256xf32>
    %64 = arith.cmpf oeq, %59, %63 : vector<64x256xf32>
    %c256_i32_22 = arith.constant 256 : i32
    %65 = vector.broadcast %c256_i32_22 : i32 to vector<64x256xi32>
    %66 = arith.select %64, %60, %65 : vector<64x256xi1>, vector<64x256xi32>
    %cst_23 = arith.constant dense<2147483647> : vector<64xi32>
    %67 = vector.multi_reduction <minsi>, %66, %cst_23 [1] : vector<64x256xi32> to vector<64xi32>
    %68 = vector.shape_cast %67 : vector<64xi32> to vector<64x1xi32>
    %69 = arith.sitofp %68 : vector<64x1xi32> to vector<64x1xf32>
    %70 = vector.broadcast %68 : vector<64x1xi32> to vector<64x256xi32>
    %71 = arith.cmpi eq, %60, %70 : vector<64x256xi32>
    %cst_24 = arith.constant 0xFF800000 : f32
    %72 = vector.broadcast %cst_24 : f32 to vector<64x256xf32>
    %73 = arith.select %71, %72, %59 : vector<64x256xi1>, vector<64x256xf32>
    %74 = tpu.iota {dimensions = array<i32: 1>} : vector<64x256xi32>
    %cst_25 = arith.constant dense<0xFF800000> : vector<64xf32>
    %75 = vector.multi_reduction <maximumf>, %73, %cst_25 [1] : vector<64x256xf32> to vector<64xf32>
    %76 = vector.shape_cast %75 : vector<64xf32> to vector<64x1xf32>
    %77 = vector.broadcast %76 : vector<64x1xf32> to vector<64x256xf32>
    %78 = arith.cmpf oeq, %73, %77 : vector<64x256xf32>
    %c256_i32_26 = arith.constant 256 : i32
    %79 = vector.broadcast %c256_i32_26 : i32 to vector<64x256xi32>
    %80 = arith.select %78, %74, %79 : vector<64x256xi1>, vector<64x256xi32>
    %cst_27 = arith.constant dense<2147483647> : vector<64xi32>
    %81 = vector.multi_reduction <minsi>, %80, %cst_27 [1] : vector<64x256xi32> to vector<64xi32>
    %82 = vector.shape_cast %81 : vector<64xi32> to vector<64x1xi32>
    %83 = arith.sitofp %82 : vector<64x1xi32> to vector<64x1xf32>
    %84 = vector.broadcast %82 : vector<64x1xi32> to vector<64x256xi32>
    %85 = arith.cmpi eq, %74, %84 : vector<64x256xi32>
    %cst_28 = arith.constant 0xFF800000 : f32
    %86 = vector.broadcast %cst_28 : f32 to vector<64x256xf32>
    %87 = arith.select %85, %86, %73 : vector<64x256xi1>, vector<64x256xf32>
    %88 = tpu.iota {dimensions = array<i32: 1>} : vector<64x256xi32>
    %cst_29 = arith.constant dense<0xFF800000> : vector<64xf32>
    %89 = vector.multi_reduction <maximumf>, %87, %cst_29 [1] : vector<64x256xf32> to vector<64xf32>
    %90 = vector.shape_cast %89 : vector<64xf32> to vector<64x1xf32>
    %91 = vector.broadcast %90 : vector<64x1xf32> to vector<64x256xf32>
    %92 = arith.cmpf oeq, %87, %91 : vector<64x256xf32>
    %c256_i32_30 = arith.constant 256 : i32
    %93 = vector.broadcast %c256_i32_30 : i32 to vector<64x256xi32>
    %94 = arith.select %92, %88, %93 : vector<64x256xi1>, vector<64x256xi32>
    %cst_31 = arith.constant dense<2147483647> : vector<64xi32>
    %95 = vector.multi_reduction <minsi>, %94, %cst_31 [1] : vector<64x256xi32> to vector<64xi32>
    %96 = vector.shape_cast %95 : vector<64xi32> to vector<64x1xi32>
    %97 = arith.sitofp %96 : vector<64x1xi32> to vector<64x1xf32>
    %cst_32 = arith.constant 0.000000e+00 : f32
    %98 = vector.broadcast %cst_32 : f32 to vector<64x118xf32>
    %99 = tpu.concatenate %34, %48, %62, %76, %90, %41, %55, %69, %83, %97, %98 in 1 : vector<64x1xf32>, vector<64x1xf32>, vector<64x1xf32>, vector<64x1xf32>, vector<64x1xf32>, vector<64x1xf32>, vector<64x1xf32>, vector<64x1xf32>, vector<64x1xf32>, vector<64x1xf32>, vector<64x118xf32> -> vector<64x128xf32>
    %c0_33 = arith.constant 0 : index
    %c0_34 = arith.constant 0 : index
    %100 = vector.load %arg5[%c0_33, %c0_34] : memref<64x128xf32, #tpu.memory_space<vmem>>, vector<64x128xf32>
    tpu.vector_store %arg5[%c0_33, %c0_34], %99 {strides = array<i32>} : memref<64x128xf32, #tpu.memory_space<vmem>>, vector<64x128xf32>,
    return
  }
  func.func @transform_0(%arg0: i32) -> (i32, i32) {
    %c0_i32 = arith.constant 0 : i32
    %c0_i32_0 = arith.constant 0 : i32
    %c0_i32_1 = arith.constant 0 : i32
    return %c0_i32, %c0_i32_0 : i32, i32
  }
  func.func @transform_1(%arg0: i32) -> (i32, i32) {
    %c0_i32 = arith.constant 0 : i32
    %c0_i32_0 = arith.constant 0 : i32
    %c0_i32_1 = arith.constant 0 : i32
    return %c0_i32, %c0_i32_0 : i32, i32
  }
  func.func @transform_2(%arg0: i32) -> (i32, i32) {
    %c0_i32 = arith.constant 0 : i32
    %c0_i32_0 = arith.constant 0 : i32
    %c0_i32_1 = arith.constant 0 : i32
    return %c0_i32, %c0_i32_0 : i32, i32
  }
  func.func @transform_3(%arg0: i32) -> (i32, i32) {
    %c0_i32 = arith.constant 0 : i32
    %c0_i32_0 = arith.constant 0 : i32
    return %arg0, %c0_i32 : i32, i32
  }
  func.func @transform_4(%arg0: i32) -> (i32, i32) {
    %c0_i32 = arith.constant 0 : i32
    %c0_i32_0 = arith.constant 0 : i32
    return %arg0, %c0_i32 : i32, i32
  }
}

module attributes {stable_mosaic.version = 11 : i64} {
  func.func @_graph_head_kernel(%arg0: i32, %arg1: memref<256x128xf32, #tpu.memory_space<vmem>>, %arg2: memref<128x5xi32, #tpu.memory_space<vmem>>, %arg3: memref<128x5xf32, #tpu.memory_space<vmem>>, %arg4: memref<1x256xf32, #tpu.memory_space<vmem>>, %arg5: memref<128x1xf32, #tpu.memory_space<vmem>>, %arg6: memref<256x128xf32, #tpu.memory_space<vmem>>, %arg7: memref<128x128xf32, #tpu.memory_space<vmem>>, %arg8: memref<6x128xf32, #tpu.memory_space<vmem>>, %arg9: memref<1x128xf32, #tpu.memory_space<vmem>>) attributes {dimension_semantics = [#tpu.dimension_semantics<parallel>], iteration_bounds = array<i64: 2>, scalar_prefetch = 0 : i64, scratch_operands = 0 : i64, tpu.core_type = #tpu.core_type<tc>, window_params = [{pipeline_mode = #tpu.pipeline_mode<synchronous>, transform_indices = @transform_0, window_bounds = array<i64: 256, 128>}, {transform_indices = @transform_1, window_bounds = array<i64: 128, 5>}, {transform_indices = @transform_2, window_bounds = array<i64: 128, 5>}, {pipeline_mode = #tpu.pipeline_mode<synchronous>, transform_indices = @transform_3, window_bounds = array<i64: 1, 256>}, {transform_indices = @transform_4, window_bounds = array<i64: 128, 1>}, {pipeline_mode = #tpu.pipeline_mode<synchronous>, transform_indices = @transform_5, window_bounds = array<i64: 256, 128>}, {pipeline_mode = #tpu.pipeline_mode<synchronous>, transform_indices = @transform_6, window_bounds = array<i64: 128, 128>}, {pipeline_mode = #tpu.pipeline_mode<synchronous>, transform_indices = @transform_7, window_bounds = array<i64: 6, 128>}, {transform_indices = @transform_8, window_bounds = array<i64: 1, 128>}]} {
    %c128_i32 = arith.constant 128 : i32
    %0 = arith.muli %arg0, %c128_i32 : i32
    %1 = tpu.assume_multiple %0, 128 : i32
    %2 = arith.index_cast %1 : i32 to index
    %c0 = arith.constant 0 : index
    %3 = vector.load %arg1[%2, %c0] : memref<256x128xf32, #tpu.memory_space<vmem>>, vector<128x128xf32>
    %c0_0 = arith.constant 0 : index
    %c0_1 = arith.constant 0 : index
    %4 = vector.load %arg2[%c0_0, %c0_1] : memref<128x5xi32, #tpu.memory_space<vmem>>, vector<128x5xi32>
    %c0_2 = arith.constant 0 : index
    %c0_3 = arith.constant 0 : index
    %5 = vector.load %arg3[%c0_2, %c0_3] : memref<128x5xf32, #tpu.memory_space<vmem>>, vector<128x5xf32>
    %6 = tpu.iota {dimensions = array<i32: 1>} : vector<128x256xi32>
    %cst = arith.constant 0.000000e+00 : f32
    %7 = vector.broadcast %cst : f32 to vector<128x256xf32>
    %8 = vector.extract_strided_slice %4 {offsets = [0, 0], sizes = [128, 1], strides = [1, 1]} : vector<128x5xi32> to vector<128x1xi32>
    %9 = vector.broadcast %8 : vector<128x1xi32> to vector<128x256xi32>
    %10 = arith.cmpi eq, %6, %9 : vector<128x256xi32>
    %11 = vector.extract_strided_slice %5 {offsets = [0, 0], sizes = [128, 1], strides = [1, 1]} : vector<128x5xf32> to vector<128x1xf32>
    %cst_4 = arith.constant 0.000000e+00 : f32
    %12 = vector.shape_cast %11 : vector<128x1xf32> to vector<128x1xf32>
    %13 = vector.broadcast %12 : vector<128x1xf32> to vector<128x256xf32>
    %14 = vector.broadcast %cst_4 : f32 to vector<128x256xf32>
    %15 = arith.select %10, %13, %14 : vector<128x256xi1>, vector<128x256xf32>
    %16 = arith.addf %7, %15 : vector<128x256xf32>
    %17 = vector.extract_strided_slice %4 {offsets = [0, 1], sizes = [128, 1], strides = [1, 1]} : vector<128x5xi32> to vector<128x1xi32>
    %18 = vector.broadcast %17 : vector<128x1xi32> to vector<128x256xi32>
    %19 = arith.cmpi eq, %6, %18 : vector<128x256xi32>
    %20 = vector.extract_strided_slice %5 {offsets = [0, 1], sizes = [128, 1], strides = [1, 1]} : vector<128x5xf32> to vector<128x1xf32>
    %cst_5 = arith.constant 0.000000e+00 : f32
    %21 = vector.shape_cast %20 : vector<128x1xf32> to vector<128x1xf32>
    %22 = vector.broadcast %21 : vector<128x1xf32> to vector<128x256xf32>
    %23 = vector.broadcast %cst_5 : f32 to vector<128x256xf32>
    %24 = arith.select %19, %22, %23 : vector<128x256xi1>, vector<128x256xf32>
    %25 = arith.addf %16, %24 : vector<128x256xf32>
    %26 = vector.extract_strided_slice %4 {offsets = [0, 2], sizes = [128, 1], strides = [1, 1]} : vector<128x5xi32> to vector<128x1xi32>
    %27 = vector.broadcast %26 : vector<128x1xi32> to vector<128x256xi32>
    %28 = arith.cmpi eq, %6, %27 : vector<128x256xi32>
    %29 = vector.extract_strided_slice %5 {offsets = [0, 2], sizes = [128, 1], strides = [1, 1]} : vector<128x5xf32> to vector<128x1xf32>
    %cst_6 = arith.constant 0.000000e+00 : f32
    %30 = vector.shape_cast %29 : vector<128x1xf32> to vector<128x1xf32>
    %31 = vector.broadcast %30 : vector<128x1xf32> to vector<128x256xf32>
    %32 = vector.broadcast %cst_6 : f32 to vector<128x256xf32>
    %33 = arith.select %28, %31, %32 : vector<128x256xi1>, vector<128x256xf32>
    %34 = arith.addf %25, %33 : vector<128x256xf32>
    %35 = vector.extract_strided_slice %4 {offsets = [0, 3], sizes = [128, 1], strides = [1, 1]} : vector<128x5xi32> to vector<128x1xi32>
    %36 = vector.broadcast %35 : vector<128x1xi32> to vector<128x256xi32>
    %37 = arith.cmpi eq, %6, %36 : vector<128x256xi32>
    %38 = vector.extract_strided_slice %5 {offsets = [0, 3], sizes = [128, 1], strides = [1, 1]} : vector<128x5xf32> to vector<128x1xf32>
    %cst_7 = arith.constant 0.000000e+00 : f32
    %39 = vector.shape_cast %38 : vector<128x1xf32> to vector<128x1xf32>
    %40 = vector.broadcast %39 : vector<128x1xf32> to vector<128x256xf32>
    %41 = vector.broadcast %cst_7 : f32 to vector<128x256xf32>
    %42 = arith.select %37, %40, %41 : vector<128x256xi1>, vector<128x256xf32>
    %43 = arith.addf %34, %42 : vector<128x256xf32>
    %44 = vector.extract_strided_slice %4 {offsets = [0, 4], sizes = [128, 1], strides = [1, 1]} : vector<128x5xi32> to vector<128x1xi32>
    %45 = vector.broadcast %44 : vector<128x1xi32> to vector<128x256xi32>
    %46 = arith.cmpi eq, %6, %45 : vector<128x256xi32>
    %47 = vector.extract_strided_slice %5 {offsets = [0, 4], sizes = [128, 1], strides = [1, 1]} : vector<128x5xf32> to vector<128x1xf32>
    %cst_8 = arith.constant 0.000000e+00 : f32
    %48 = vector.shape_cast %47 : vector<128x1xf32> to vector<128x1xf32>
    %49 = vector.broadcast %48 : vector<128x1xf32> to vector<128x256xf32>
    %50 = vector.broadcast %cst_8 : f32 to vector<128x256xf32>
    %51 = arith.select %46, %49, %50 : vector<128x256xi1>, vector<128x256xf32>
    %52 = arith.addf %43, %51 : vector<128x256xf32>
    %c0_9 = arith.constant 0 : index
    %c0_10 = arith.constant 0 : index
    %53 = vector.load %arg1[%c0_9, %c0_10] : memref<256x128xf32, #tpu.memory_space<vmem>>, vector<256x128xf32>
    %cst_11 = arith.constant dense<0.000000e+00> : vector<128x128xf32>
    %54 = tpu.matmul %52, %53, %cst_11 {dimension_numbers = #tpu.dot_dimension_numbers<[1], [0], [0], [1], [0, 0, 1, 1], [], []>} : vector<128x256xf32>, vector<256x128xf32>, vector<128x128xf32> -> vector<128x128xf32>
    %c0_12 = arith.constant 0 : index
    %c0_13 = arith.constant 0 : index
    %55 = vector.load %arg4[%c0_12, %c0_13] : memref<1x256xf32, #tpu.memory_space<vmem>>, vector<1x256xf32>
    %56 = vector.broadcast %55 : vector<1x256xf32> to vector<128x256xf32>
    %57 = arith.mulf %52, %56 : vector<128x256xf32>
    %cst_14 = arith.constant dense<0.000000e+00> : vector<128xf32>
    %58 = vector.multi_reduction <add>, %57, %cst_14 [1] : vector<128x256xf32> to vector<128xf32>
    %59 = vector.shape_cast %58 : vector<128xf32> to vector<128x1xf32>
    %60 = tpu.concatenate %54, %3 in 1 : vector<128x128xf32>, vector<128x128xf32> -> vector<128x256xf32>
    %c0_15 = arith.constant 0 : index
    %c0_16 = arith.constant 0 : index
    %61 = vector.load %arg6[%c0_15, %c0_16] : memref<256x128xf32, #tpu.memory_space<vmem>>, vector<256x128xf32>
    %cst_17 = arith.constant dense<0.000000e+00> : vector<128x128xf32>
    %62 = tpu.matmul %60, %61, %cst_17 {dimension_numbers = #tpu.dot_dimension_numbers<[1], [0], [0], [1], [0, 0, 1, 1], [], []>} : vector<128x256xf32>, vector<256x128xf32>, vector<128x128xf32> -> vector<128x128xf32>
    %c0_18 = arith.constant 0 : index
    %c0_19 = arith.constant 0 : index
    %63 = vector.load %arg8[%c0_18, %c0_19] : memref<6x128xf32, #tpu.memory_space<vmem>>, vector<1x128xf32>
    %64 = vector.broadcast %59 : vector<128x1xf32> to vector<128x128xf32>
    %65 = vector.broadcast %63 : vector<1x128xf32> to vector<128x128xf32>
    %66 = arith.mulf %64, %65 : vector<128x128xf32>
    %67 = arith.addf %62, %66 : vector<128x128xf32>
    %c0_20 = arith.constant 0 : index
    %c0_21 = arith.constant 0 : index
    %68 = vector.load %arg5[%c0_20, %c0_21] : memref<128x1xf32, #tpu.memory_space<vmem>>, vector<128x1xf32>
    %c1 = arith.constant 1 : index
    %c0_22 = arith.constant 0 : index
    %69 = vector.load %arg8[%c1, %c0_22] : memref<6x128xf32, #tpu.memory_space<vmem>>, vector<1x128xf32>
    %70 = vector.broadcast %68 : vector<128x1xf32> to vector<128x128xf32>
    %71 = vector.broadcast %69 : vector<1x128xf32> to vector<128x128xf32>
    %72 = arith.mulf %70, %71 : vector<128x128xf32>
    %73 = arith.addf %67, %72 : vector<128x128xf32>
    %c2 = arith.constant 2 : index
    %c0_23 = arith.constant 0 : index
    %74 = vector.load %arg8[%c2, %c0_23] : memref<6x128xf32, #tpu.memory_space<vmem>>, vector<1x128xf32>
    %75 = vector.broadcast %74 : vector<1x128xf32> to vector<128x128xf32>
    %76 = arith.addf %73, %75 : vector<128x128xf32>
    %c0_24 = arith.constant 0 : index
    %c0_25 = arith.constant 0 : index
    %77 = vector.load %arg7[%c0_24, %c0_25] : memref<128x128xf32, #tpu.memory_space<vmem>>, vector<128x128xf32>
    %cst_26 = arith.constant dense<0.000000e+00> : vector<128x128xf32>
    %78 = tpu.matmul %76, %77, %cst_26 {dimension_numbers = #tpu.dot_dimension_numbers<[1], [0], [0], [1], [0, 0, 1, 1], [], []>} : vector<128x128xf32>, vector<128x128xf32>, vector<128x128xf32> -> vector<128x128xf32>
    %c3 = arith.constant 3 : index
    %c0_27 = arith.constant 0 : index
    %79 = vector.load %arg8[%c3, %c0_27] : memref<6x128xf32, #tpu.memory_space<vmem>>, vector<1x128xf32>
    %80 = vector.broadcast %79 : vector<1x128xf32> to vector<128x128xf32>
    %81 = arith.addf %78, %80 : vector<128x128xf32>
    %cst_28 = arith.constant 0.000000e+00 : f32
    %82 = vector.broadcast %cst_28 : f32 to vector<128x128xf32>
    %83 = arith.maximumf %81, %82 : vector<128x128xf32>
    %c4 = arith.constant 4 : index
    %c0_29 = arith.constant 0 : index
    %84 = vector.load %arg8[%c4, %c0_29] : memref<6x128xf32, #tpu.memory_space<vmem>>, vector<1x128xf32>
    %cst_30 = arith.constant dense<0.000000e+00> : vector<1x128xf32>
    %85 = tpu.matmul %84, %83, %cst_30 {dimension_numbers = #tpu.dot_dimension_numbers<[1], [1], [0], [0], [0, 0, 1, 0], [], []>} : vector<1x128xf32>, vector<128x128xf32>, vector<1x128xf32> -> vector<1x128xf32>
    %c5 = arith.constant 5 : index
    %c0_31 = arith.constant 0 : index
    %86 = vector.load %arg8[%c5, %c0_31] : memref<6x128xf32, #tpu.memory_space<vmem>>, vector<1x1xf32>
    %87 = vector.broadcast %86 : vector<1x1xf32> to vector<1x128xf32>
    %88 = arith.addf %85, %87 : vector<1x128xf32>
    %c0_32 = arith.constant 0 : index
    %c0_33 = arith.constant 0 : index
    %89 = vector.load %arg9[%c0_32, %c0_33] : memref<1x128xf32, #tpu.memory_space<vmem>>, vector<1x128xf32>
    tpu.vector_store %arg9[%c0_32, %c0_33], %88 {strides = array<i32>} : memref<1x128xf32, #tpu.memory_space<vmem>>, vector<1x128xf32>,
    return
  }
  func.func @transform_0(%arg0: i32) -> (i32, i32) {
    %c0_i32 = arith.constant 0 : i32
    %c0_i32_0 = arith.constant 0 : i32
    %c0_i32_1 = arith.constant 0 : i32
    return %c0_i32, %c0_i32_0 : i32, i32
  }
  func.func @transform_1(%arg0: i32) -> (i32, i32) {
    %c0_i32 = arith.constant 0 : i32
    %c0_i32_0 = arith.constant 0 : i32
    return %arg0, %c0_i32 : i32, i32
  }
  func.func @transform_2(%arg0: i32) -> (i32, i32) {
    %c0_i32 = arith.constant 0 : i32
    %c0_i32_0 = arith.constant 0 : i32
    return %arg0, %c0_i32 : i32, i32
  }
  func.func @transform_3(%arg0: i32) -> (i32, i32) {
    %c0_i32 = arith.constant 0 : i32
    %c0_i32_0 = arith.constant 0 : i32
    %c0_i32_1 = arith.constant 0 : i32
    return %c0_i32, %c0_i32_0 : i32, i32
  }
  func.func @transform_4(%arg0: i32) -> (i32, i32) {
    %c0_i32 = arith.constant 0 : i32
    %c0_i32_0 = arith.constant 0 : i32
    return %arg0, %c0_i32 : i32, i32
  }
  func.func @transform_5(%arg0: i32) -> (i32, i32) {
    %c0_i32 = arith.constant 0 : i32
    %c0_i32_0 = arith.constant 0 : i32
    %c0_i32_1 = arith.constant 0 : i32
    return %c0_i32, %c0_i32_0 : i32, i32
  }
  func.func @transform_6(%arg0: i32) -> (i32, i32) {
    %c0_i32 = arith.constant 0 : i32
    %c0_i32_0 = arith.constant 0 : i32
    %c0_i32_1 = arith.constant 0 : i32
    return %c0_i32, %c0_i32_0 : i32, i32
  }
  func.func @transform_7(%arg0: i32) -> (i32, i32) {
    %c0_i32 = arith.constant 0 : i32
    %c0_i32_0 = arith.constant 0 : i32
    %c0_i32_1 = arith.constant 0 : i32
    return %c0_i32, %c0_i32_0 : i32, i32
  }
  func.func @transform_8(%arg0: i32) -> (i32, i32) {
    %c0_i32 = arith.constant 0 : i32
    %c0_i32_0 = arith.constant 0 : i32
    return %c0_i32, %arg0 : i32, i32
  }
}

</mosaic_0001>

<llo_original>
// kernel: my_model_forward.2
$region0: #{my_model_forward.2}
  #allocation0 [shape = 'u32[]', space=smem, size = 0x4, offset = 0x4, fixed_abs, tag = 'smem constant byte address 0x4 - core index']
  #allocation1 [shape = 'u32[144,128]{1,0:T(1,128)}', space=vmem, size = 0x12000, scoped, tag = 'internal scratch']
  %s0 = inlined_call_operand.vmem [shape: f32[256,8], index: 0, kind: input, shape index: {}]
  %s1 = inlined_call_operand.vmem [shape: f32[8,128], index: 1, kind: input, shape index: {}]
  %s2 = inlined_call_operand.vmem [shape: f32[1,128], index: 2, kind: input, shape index: {}]
  %s3 = inlined_call_operand.vmem [shape: f32[256,128], index: 3, kind: output, shape index: {0}]
  %s4 = inlined_call_operand.vmem [shape: f32[256,128], index: 4, kind: output, shape index: {1}]
  %5 = xla_tuple %s3, %s4
  %s6 = sld [smem:[#allocation0]]
  $region53: #{my_model_forward.2} parent=0
    _
  %s8 = ssub.s32 1, %s6
  %s9 = scalar_select 0, %s8, %s6
  loop: start=0, step=1, limit=6
  $region2: #{my_model_forward.2} parent=0 // loop_pre_header
    _
  $region3: #{my_model_forward.2} parent=0 // loop_header
    %s11 = sphi 0, %s15
    %p12 = scmp.ge.s32.totalorder %s11, 6
    %s19 = sphi 0, %s19
    %s21 = sphi 0, %s19
    %s22 = sphi 0, %s21
    %s36 = sphi 0, %s22
    %s40 = sphi 0, %s40
    %s42 = sphi 0, %s40
    %s43 = sphi 0, %s42
    %s57 = sphi 0, %s43
    %s61 = sphi 0, %s61
    %s63 = sphi 0, %s61
    %s64 = sphi 0, %s63
    %s78 = sphi 0, %s64
    %s84 = sphi 0, %s86
    %s87 = sphi 0, %s84
    %s88 = sphi 0, %s87
    %s104 = sphi 0, %s88
    %s110 = sphi 0, %s112
    %s113 = sphi 0, %s110
    %s114 = sphi 0, %s113
    %s130 = sphi 0, %s114
  $region4: #{my_model_forward.2} parent=0 // loop_header_branch
    %14 = sbr.rel (%p12) target = $region8
  $region5: #{my_model_forward.2} parent=0 // loop_body
    %s16 = ssub.s32 %s11, 1
    %s17 = ssub.s32 %s11, 2
    %s18 = sadd.s32 %s11, 1
    %s20 = sadd.s32 %s19, 1
    %p23 = scmp.eq.s32.totalorder %s11, 3
    %p24 = scmp.ne.s32.totalorder %s19, %s21
    %p25 = scmp.eq.s32.totalorder %s11, 0
    %p26 = por %p24, %p25
    %p27 = scmp.ne.s32.totalorder %s19, %s21
    %p28 = scmp.eq.s32.totalorder %s16, 3
    %p29 = por %p27, %p28
    %p30 = scmp.ne.s32.totalorder %s21, %s22
    %p31 = scmp.eq.s32.totalorder %s16, 0
    %p32 = por %p30, %p31
    %p33 = scmp.ne.s32.totalorder %s21, %s22
    %p34 = scmp.eq.s32.totalorder %s17, 3
    %p35 = por %p33, %p34
    %p37 = scmp.ne.s32.totalorder %s22, %s36
    %p38 = scmp.eq.s32.totalorder %s17, 0
    %p39 = por %p37, %p38
    %s41 = sadd.s32 %s40, 1
    %p44 = scmp.eq.s32.totalorder %s11, 3
    %p45 = scmp.ne.s32.totalorder %s40, %s42
    %p46 = scmp.eq.s32.totalorder %s11, 0
    %p47 = por %p45, %p46
    %p48 = scmp.ne.s32.totalorder %s40, %s42
    %p49 = scmp.eq.s32.totalorder %s16, 3
    %p50 = por %p48, %p49
    %p51 = scmp.ne.s32.totalorder %s42, %s43
    %p52 = scmp.eq.s32.totalorder %s16, 0
    %p53 = por %p51, %p52
    %p54 = scmp.ne.s32.totalorder %s42, %s43
    %p55 = scmp.eq.s32.totalorder %s17, 3
    %p56 = por %p54, %p55
    %p58 = scmp.ne.s32.totalorder %s43, %s57
    %p59 = scmp.eq.s32.totalorder %s17, 0
    %p60 = por %p58, %p59
    %s62 = sadd.s32 %s61, 1
    %p65 = scmp.eq.s32.totalorder %s11, 3
    %p66 = scmp.ne.s32.totalorder %s61, %s63
    %p67 = scmp.eq.s32.totalorder %s11, 0
    %p68 = por %p66, %p67
    %p69 = scmp.ne.s32.totalorder %s61, %s63
    %p70 = scmp.eq.s32.totalorder %s16, 3
    %p71 = por %p69, %p70
    %p72 = scmp.ne.s32.totalorder %s63, %s64
    %p73 = scmp.eq.s32.totalorder %s16, 0
    %p74 = por %p72, %p73
    %p75 = scmp.ne.s32.totalorder %s63, %s64
    %p76 = scmp.eq.s32.totalorder %s17, 3
    %p77 = por %p75, %p76
    %p79 = scmp.ne.s32.totalorder %s64, %s78
    %p80 = scmp.eq.s32.totalorder %s17, 0
    %p81 = por %p79, %p80
    %s82 = ssub.s32 %s11, %s18
    %p83 = scmp.eq.s32.totalorder %s82, 0
    %s85 = sadd.s32 %s84, 1
    %s86 = scalar_select %p83, %s84, %s85
    %p89 = pneg %p83
    %p90 = scmp.eq.s32.totalorder %s11, 3
    %p91 = por %p89, %p90
    %p92 = scmp.ne.s32.totalorder %s84, %s87
    %p93 = scmp.eq.s32.totalorder %s11, 0
    %p94 = por %p92, %p93
    %p95 = scmp.ne.s32.totalorder %s84, %s87
    %p96 = scmp.eq.s32.totalorder %s16, 3
    %p97 = por %p95, %p96
    %p98 = scmp.ne.s32.totalorder %s87, %s88
    %p99 = scmp.eq.s32.totalorder %s16, 0
    %p100 = por %p98, %p99
    %p101 = scmp.ne.s32.totalorder %s87, %s88
    %p102 = scmp.eq.s32.totalorder %s17, 3
    %p103 = por %p101, %p102
    %p105 = scmp.ne.s32.totalorder %s88, %s104
    %p106 = scmp.eq.s32.totalorder %s17, 0
    %p107 = por %p105, %p106
    %s108 = ssub.s32 %s11, %s18
    %p109 = scmp.eq.s32.totalorder %s108, 0
    %s111 = sadd.s32 %s110, 1
    %s112 = scalar_select %p109, %s110, %s111
    %p115 = pneg %p109
    %p116 = scmp.eq.s32.totalorder %s11, 3
    %p117 = por %p115, %p116
    %p118 = scmp.ne.s32.totalorder %s110, %s113
    %p119 = scmp.eq.s32.totalorder %s11, 0
    %p120 = por %p118, %p119
    %p121 = scmp.ne.s32.totalorder %s110, %s113
    %p122 = scmp.eq.s32.totalorder %s16, 3
    %p123 = por %p121, %p122
    %p124 = scmp.ne.s32.totalorder %s113, %s114
    %p125 = scmp.eq.s32.totalorder %s16, 0
    %p126 = por %p124, %p125
    %p127 = scmp.ne.s32.totalorder %s113, %s114
    %p128 = scmp.eq.s32.totalorder %s17, 3
    %p129 = por %p127, %p128
    %p131 = scmp.ne.s32.totalorder %s114, %s130
    %p132 = scmp.eq.s32.totalorder %s17, 0
    %p133 = por %p131, %p132
    %p134 = scmp.le.s32.totalorder 1, %s11
    %p135 = scmp.lt.s32.totalorder %s11, 5
    %p136 = pnand %p134, %p135
    %p137 = pneg %p136
    // Predicated region
    $region9: #{my_model_forward.2} parent=5 // pred_check
      _
    $region10: #{my_model_forward.2} parent=5 // pred_check_branch
      %139 = sbr.rel (%p136) target = $region12
    $region11: #{my_model_forward.2} parent=5 // pred_region
      %s140 = ssub.s32 %s11, 1
      // Predicated region
      $region13: #{my_model_forward.2} parent=11 // pred_check
        %p141 = pneg %p32
      $region14: #{my_model_forward.2} parent=11 // pred_check_branch
        %143 = sbr.rel (%p141) target = $region16
      $region15: #{my_model_forward.2} parent=11 // pred_region
        _
      $region16: #{my_model_forward.2} parent=11 // pred_fallthru
        _
      // Predicated region
      $region17: #{my_model_forward.2} parent=11 // pred_check
        %p144 = pneg %p53
      $region18: #{my_model_forward.2} parent=11 // pred_check_branch
        %146 = sbr.rel (%p144) target = $region20
      $region19: #{my_model_forward.2} parent=11 // pred_region
        _
      $region20: #{my_model_forward.2} parent=11 // pred_fallthru
        _
      // Predicated region
      $region21: #{my_model_forward.2} parent=11 // pred_check
        %p147 = pneg %p74
      $region22: #{my_model_forward.2} parent=11 // pred_check_branch
        %149 = sbr.rel (%p147) target = $region24
      $region23: #{my_model_forward.2} parent=11 // pred_region
        _
      $region24: #{my_model_forward.2} parent=11 // pred_fallthru
        _
    $region12: #{my_model_forward.2} parent=5 // pred_fallthru
      _
    %p150 = scmp.lt.s32.totalorder %s11, 4
    // Predicated region
    $region25: #{my_model_forward.2} parent=5 // pred_check
      %p151 = pneg %p150
    $region26: #{my_model_forward.2} parent=5 // pred_check_branch
      %153 = sbr.rel (%p151) target = $region28
    $region27: #{my_model_forward.2} parent=5 // pred_region
      _
    $region28: #{my_model_forward.2} parent=5 // pred_fallthru
      _
    %p154 = scmp.le.s32.totalorder 1, %s11
    %p155 = scmp.lt.s32.totalorder %s11, 5
    %p156 = pnand %p154, %p155
    %p157 = pneg %p156
    // Predicated region
    $region29: #{my_model_forward.2} parent=5 // pred_check
      _
    $region30: #{my_model_forward.2} parent=5 // pred_check_branch
      %159 = sbr.rel (%p156) target = $region32
    $region31: #{my_model_forward.2} parent=5 // pred_region
      %s160 = ssub.s32 %s11, 1
      %p161 = pneg %p32
      %p162 = pneg %p29
      %p163 = pneg %p53
      %p164 = pneg %p50
      %p165 = pneg %p74
      %p166 = pneg %p71
      %p167 = pneg %p100
      %p168 = pneg %p97
      %s169 = smul.u32 8, %s16
      %p170 = scmp.lt.s32.totalorder %s169, 31
      %s171 = scalar_select %p170, %s169, 31
      %s172 = smul.addr %s171, 8
      %s173 = scalar_lea.vmem %s3, %s172
      %p174 = pneg %p126
      %p175 = pneg %p123
      %s176 = smul.u32 8, %s16
      %p177 = scmp.lt.s32.totalorder %s176, 31
      %s178 = scalar_select %p177, %s176, 31
      %s179 = smul.addr %s178, 8
      %s180 = scalar_lea.vmem %s4, %s179
      %s181 = smul.u32 8, %s16
      %p182 = scmp.lt.s32.totalorder %s181, 31
      %s183 = scalar_select %p182, %s181, 31
      %s184 = smul.addr %s183, 8
      %s185 = scalar_lea.vmem %s3, %s184
      %s186 = smul.u32 8, %s16
      %s187 = smul.u32 8, %s16
      %p188 = scmp.lt.s32.totalorder %s187, 31
      %s189 = scalar_select %p188, %s187, 31
      %s190 = smul.addr %s189, 8
      %s191 = scalar_lea.vmem %s4, %s190
      %s192 = smul.u32 8, %s16
      %s193 = smul.u32 %s16, 64
      %v194 = vld [vmem:[%s1] sm:$0xff]
      %v195 = vld [vmem:[%s2] sm:$0x1]
      %v196 = vld [vmem:[%s0] sm:$0xff]
      %v197 = vld [vmem:[%s0 + $0x8] sm:$0xff]
      %v198 = vld [vmem:[%s0 + $0x10] sm:$0xff]
      %v199 = vld [vmem:[%s0 + $0x18] sm:$0xff]
      %v200 = vld [vmem:[%s0 + $0x20] sm:$0xff]
      %v201 = vld [vmem:[%s0 + $0x28] sm:$0xff]
      %v202 = vld [vmem:[%s0 + $0x30] sm:$0xff]
      %v203 = vld [vmem:[%s0 + $0x38] sm:$0xff]
      %v204 = vld [vmem:[%s0 + $0x40] sm:$0xff]
      %v205 = vld [vmem:[%s0 + $0x48] sm:$0xff]
      %v206 = vld [vmem:[%s0 + $0x50] sm:$0xff]
      %v207 = vld [vmem:[%s0 + $0x58] sm:$0xff]
      %v208 = vld [vmem:[%s0 + $0x60] sm:$0xff]
      %v209 = vld [vmem:[%s0 + $0x68] sm:$0xff]
      %v210 = vld [vmem:[%s0 + $0x70] sm:$0xff]
      %v211 = vld [vmem:[%s0 + $0x78] sm:$0xff]
      %v212 = vld [vmem:[%s0 + $0x80] sm:$0xff]
      %v213 = vld [vmem:[%s0 + $0x88] sm:$0xff]
      %v214 = vld [vmem:[%s0 + $0x90] sm:$0xff]
      %v215 = vld [vmem:[%s0 + $0x98] sm:$0xff]
      %v216 = vld [vmem:[%s0 + $0xa0] sm:$0xff]
      %v217 = vld [vmem:[%s0 + $0xa8] sm:$0xff]
      %v218 = vld [vmem:[%s0 + $0xb0] sm:$0xff]
      %v219 = vld [vmem:[%s0 + $0xb8] sm:$0xff]
      %v220 = vld [vmem:[%s0 + $0xc0] sm:$0xff]
      %v221 = vld [vmem:[%s0 + $0xc8] sm:$0xff]
      %v222 = vld [vmem:[%s0 + $0xd0] sm:$0xff]
      %v223 = vld [vmem:[%s0 + $0xd8] sm:$0xff]
      %v224 = vld [vmem:[%s0 + $0xe0] sm:$0xff]
      %v225 = vld [vmem:[%s0 + $0xe8] sm:$0xff]
      %v226 = vld [vmem:[%s0 + $0xf0] sm:$0xff]
      %v227 = vld [vmem:[%s0 + $0xf8] sm:$0xff]
      %v229 = vlaneseq
      %v230 = vshrl.u32 %v229, 7
      %v231 = vsub.s32 0, %v230
      %v232 = vrot.slane %v195, %v231
      %vm234 = vcmask 64512
      %v236 = vsel %vm234, %v196, 0
      %v239 = vsel %vm234, %v197, 0
      %v242 = vsel %vm234, %v198, 0
      %v245 = vsel %vm234, %v199, 0
      %v248 = vsel %vm234, %v200, 0
      %v251 = vsel %vm234, %v201, 0
      %v254 = vsel %vm234, %v202, 0
      %v257 = vsel %vm234, %v203, 0
      %v260 = vsel %vm234, %v204, 0
      %v263 = vsel %vm234, %v205, 0
      %v266 = vsel %vm234, %v206, 0
      %v269 = vsel %vm234, %v207, 0
      %v272 = vsel %vm234, %v208, 0
      %v275 = vsel %vm234, %v209, 0
      %v278 = vsel %vm234, %v210, 0
      %v281 = vsel %vm234, %v211, 0
      %v284 = vsel %vm234, %v212, 0
      %v287 = vsel %vm234, %v213, 0
      %v290 = vsel %vm234, %v214, 0
      %v293 = vsel %vm234, %v215, 0
      %v296 = vsel %vm234, %v216, 0
      %v299 = vsel %vm234, %v217, 0
      %v302 = vsel %vm234, %v218, 0
      %v305 = vsel %vm234, %v219, 0
      %v308 = vsel %vm234, %v220, 0
      %v311 = vsel %vm234, %v221, 0
      %v314 = vsel %vm234, %v222, 0
      %v317 = vsel %vm234, %v223, 0
      %v320 = vsel %vm234, %v224, 0
      %v323 = vsel %vm234, %v225, 0
      %v326 = vsel %vm234, %v226, 0
      %v329 = vsel %vm234, %v227, 0
      %331 = vmatprep.subr.mxu0 0.0
      %332 = vmatpush1.msra.mxu0 %v194
      %333 = vmatprep.subr.mxu0 0.0
      %334 = vmatpush1.msra.mxu0 0.0
      %335 = vmatprep.subr.mxu0 0.0
      %336 = vmatpush1.msra.mxu0 0.0
      %337 = vmatprep.subr.mxu0 0.0
      %338 = vmatpush1.msra.mxu0 0.0
      %339 = vmatprep.subr.mxu0 0.0
      %340 = vmatpush1.msra.mxu0 0.0
      %341 = vmatprep.subr.mxu0 0.0
      %342 = vmatpush1.msra.mxu0 0.0
      %343 = vmatprep.subr.mxu0 0.0
      %344 = vmatpush1.msra.mxu0 0.0
      %345 = vmatprep.subr.mxu0 0.0
      %346 = vmatpush1.msra.mxu0 0.0
      %347 = vmatprep.subr.mxu0 0.0
      %348 = vmatpush1.msra.mxu0 0.0
      %349 = vmatprep.subr.mxu0 0.0
      %350 = vmatpush1.msra.mxu0 0.0
      %351 = vmatprep.subr.mxu0 0.0
      %352 = vmatpush1.msra.mxu0 0.0
      %353 = vmatprep.subr.mxu0 0.0
      %354 = vmatpush1.msra.mxu0 0.0
      %355 = vmatprep.subr.mxu0 0.0
      %356 = vmatpush1.msra.mxu0 0.0
      %357 = vmatprep.subr.mxu0 0.0
      %358 = vmatpush1.msra.mxu0 0.0
      %359 = vmatprep.subr.mxu0 0.0
      %360 = vmatpush1.msra.mxu0 0.0
      %361 = vmatprep.subr.mxu0 0.0
      %362 = vmatpush1.msra.mxu0 0.0
      %363 = vmatprep.subr.mxu0 0.0
      %364 = vmatpush1.msra.mxu0 0.0
      %365 = vmatprep.subr.mxu0 0.0
      %366 = vmatpush1.msra.mxu0 0.0
      %367 = vmatprep.subr.mxu0 0.0
      %368 = vmatpush1.msra.mxu0 0.0
      %369 = vmatprep.subr.mxu0 0.0
      %370 = vmatpush1.msra.mxu0 0.0
      %371 = vmatprep.subr.mxu0 0.0
      %372 = vmatpush1.msra.mxu0 0.0
      %373 = vmatprep.subr.mxu0 0.0
      %374 = vmatpush1.msra.mxu0 0.0
      %375 = vmatprep.subr.mxu0 0.0
      %376 = vmatpush1.msra.mxu0 0.0
      %377 = vmatprep.subr.mxu0 0.0
      %378 = vmatpush1.msra.mxu0 0.0
      %379 = vmatprep.subr.mxu0 0.0
      %380 = vmatpush1.msra.mxu0 0.0
      %381 = vmatprep.subr.mxu0 0.0
      %382 = vmatpush1.msra.mxu0 0.0
      %383 = vmatprep.subr.mxu0 0.0
      %384 = vmatpush1.msra.mxu0 0.0
      %385 = vmatprep.subr.mxu0 0.0
      %386 = vmatpush1.msra.mxu0 0.0
      %387 = vmatprep.subr.mxu0 0.0
      %388 = vmatpush1.msra.mxu0 0.0
      %389 = vmatprep.subr.mxu0 0.0
      %390 = vmatpush1.msra.mxu0 0.0
      %391 = vmatprep.subr.mxu0 0.0
      %392 = vmatpush1.msra.mxu0 0.0
      %393 = vmatprep.subr.mxu0 0.0
      %394 = vmatpush1.msra.mxu0 0.0
      %395 = vmatprep.mubr.f32.mxu0 0.0
      %396 = vmatmul.mubr.f32.gmra.mrb[0].mxu0 %v236
      %v397 = vpop.f32.mrb[0].mxu0
      %v398 = vadd.f32 %v232, %v397
      %v399 = vpop.f32.mrb[0].mxu0
      %400 = vmatprep.mubr.f32.mxu0 0.0
      %401 = vmatmul.mubr.f32.gmra.mrb[0].mxu0 %v239
      %v402 = vpop.f32.mrb[0].mxu0
      %v403 = vadd.f32 %v232, %v402
      %v404 = vpop.f32.mrb[0].mxu0
      %405 = vmatprep.mubr.f32.mxu0 0.0
      %406 = vmatmul.mubr.f32.gmra.mrb[0].mxu0 %v242
      %v407 = vpop.f32.mrb[0].mxu0
      %v408 = vadd.f32 %v232, %v407
      %v409 = vpop.f32.mrb[0].mxu0
      %410 = vmatprep.mubr.f32.mxu0 0.0
      %411 = vmatmul.mubr.f32.gmra.mrb[0].mxu0 %v245
      %v412 = vpop.f32.mrb[0].mxu0
      %v413 = vadd.f32 %v232, %v412
      %v414 = vpop.f32.mrb[0].mxu0
      %415 = vmatprep.mubr.f32.mxu0 0.0
      %416 = vmatmul.mubr.f32.gmra.mrb[0].mxu0 %v248
      %v417 = vpop.f32.mrb[0].mxu0
      %v418 = vadd.f32 %v232, %v417
      %v419 = vpop.f32.mrb[0].mxu0
      %420 = vmatprep.mubr.f32.mxu0 0.0
      %421 = vmatmul.mubr.f32.gmra.mrb[0].mxu0 %v251
      %v422 = vpop.f32.mrb[0].mxu0
      %v423 = vadd.f32 %v232, %v422
      %v424 = vpop.f32.mrb[0].mxu0
      %425 = vmatprep.mubr.f32.mxu0 0.0
      %426 = vmatmul.mubr.f32.gmra.mrb[0].mxu0 %v254
      %v427 = vpop.f32.mrb[0].mxu0
      %v428 = vadd.f32 %v232, %v427
      %v429 = vpop.f32.mrb[0].mxu0
      %430 = vmatprep.mubr.f32.mxu0 0.0
      %431 = vmatmul.mubr.f32.gmra.mrb[0].mxu0 %v257
      %v432 = vpop.f32.mrb[0].mxu0
      %v433 = vadd.f32 %v232, %v432
      %v434 = vpop.f32.mrb[0].mxu0
      %435 = vmatprep.mubr.f32.mxu0 0.0
      %436 = vmatmul.mubr.f32.gmra.mrb[0].mxu0 %v260
      %v437 = vpop.f32.mrb[0].mxu0
      %v438 = vadd.f32 %v232, %v437
      %v439 = vpop.f32.mrb[0].mxu0
      %440 = vmatprep.mubr.f32.mxu0 0.0
      %441 = vmatmul.mubr.f32.gmra.mrb[0].mxu0 %v263
      %v442 = vpop.f32.mrb[0].mxu0
      %v443 = vadd.f32 %v232, %v442
      %v444 = vpop.f32.mrb[0].mxu0
      %445 = vmatprep.mubr.f32.mxu0 0.0
      %446 = vmatmul.mubr.f32.gmra.mrb[0].mxu0 %v266
      %v447 = vpop.f32.mrb[0].mxu0
      %v448 = vadd.f32 %v232, %v447
      %v449 = vpop.f32.mrb[0].mxu0
      %450 = vmatprep.mubr.f32.mxu0 0.0
      %451 = vmatmul.mubr.f32.gmra.mrb[0].mxu0 %v269
      %v452 = vpop.f32.mrb[0].mxu0
      %v453 = vadd.f32 %v232, %v452
      %v454 = vpop.f32.mrb[0].mxu0
      %455 = vmatprep.mubr.f32.mxu0 0.0
      %456 = vmatmul.mubr.f32.gmra.mrb[0].mxu0 %v272
      %v457 = vpop.f32.mrb[0].mxu0
      %v458 = vadd.f32 %v232, %v457
      %v459 = vpop.f32.mrb[0].mxu0
      %460 = vmatprep.mubr.f32.mxu0 0.0
      %461 = vmatmul.mubr.f32.gmra.mrb[0].mxu0 %v275
      %v462 = vpop.f32.mrb[0].mxu0
      %v463 = vadd.f32 %v232, %v462
      %v464 = vpop.f32.mrb[0].mxu0
      %465 = vmatprep.mubr.f32.mxu0 0.0
      %466 = vmatmul.mubr.f32.gmra.mrb[0].mxu0 %v278
      %v467 = vpop.f32.mrb[0].mxu0
      %v468 = vadd.f32 %v232, %v467
      %v469 = vpop.f32.mrb[0].mxu0
      %470 = vmatprep.mubr.f32.mxu0 0.0
      %471 = vmatmul.mubr.f32.gmra.mrb[0].mxu0 %v281
      %v472 = vpop.f32.mrb[0].mxu0
      %v473 = vadd.f32 %v232, %v472
      %v474 = vpop.f32.mrb[0].mxu0
      %475 = vmatprep.mubr.f32.mxu0 0.0
      %476 = vmatmul.mubr.f32.gmra.mrb[0].mxu0 %v284
      %v477 = vpop.f32.mrb[0].mxu0
      %v478 = vadd.f32 %v232, %v477
      %v479 = vpop.f32.mrb[0].mxu0
      %480 = vmatprep.mubr.f32.mxu0 0.0
      %481 = vmatmul.mubr.f32.gmra.mrb[0].mxu0 %v287
      %v482 = vpop.f32.mrb[0].mxu0
      %v483 = vadd.f32 %v232, %v482
      %v484 = vpop.f32.mrb[0].mxu0
      %485 = vmatprep.mubr.f32.mxu0 0.0
      %486 = vmatmul.mubr.f32.gmra.mrb[0].mxu0 %v290
      %v487 = vpop.f32.mrb[0].mxu0
      %v488 = vadd.f32 %v232, %v487
      %v489 = vpop.f32.mrb[0].mxu0
      %490 = vmatprep.mubr.f32.mxu0 0.0
      %491 = vmatmul.mubr.f32.gmra.mrb[0].mxu0 %v293
      %v492 = vpop.f32.mrb[0].mxu0
      %v493 = vadd.f32 %v232, %v492
      %v494 = vpop.f32.mrb[0].mxu0
      %495 = vmatprep.mubr.f32.mxu0 0.0
      %496 = vmatmul.mubr.f32.gmra.mrb[0].mxu0 %v296
      %v497 = vpop.f32.mrb[0].mxu0
      %v498 = vadd.f32 %v232, %v497
      %v499 = vpop.f32.mrb[0].mxu0
      %500 = vmatprep.mubr.f32.mxu0 0.0
      %501 = vmatmul.mubr.f32.gmra.mrb[0].mxu0 %v299
      %v502 = vpop.f32.mrb[0].mxu0
      %v503 = vadd.f32 %v232, %v502
      %v504 = vpop.f32.mrb[0].mxu0
      %505 = vmatprep.mubr.f32.mxu0 0.0
      %506 = vmatmul.mubr.f32.gmra.mrb[0].mxu0 %v302
      %v507 = vpop.f32.mrb[0].mxu0
      %v508 = vadd.f32 %v232, %v507
      %v509 = vpop.f32.mrb[0].mxu0
      %510 = vmatprep.mubr.f32.mxu0 0.0
      %511 = vmatmul.mubr.f32.gmra.mrb[0].mxu0 %v305
      %v512 = vpop.f32.mrb[0].mxu0
      %v513 = vadd.f32 %v232, %v512
      %v514 = vpop.f32.mrb[0].mxu0
      %515 = vmatprep.mubr.f32.mxu0 0.0
      %516 = vmatmul.mubr.f32.gmra.mrb[0].mxu0 %v308
      %v517 = vpop.f32.mrb[0].mxu0
      %v518 = vadd.f32 %v232, %v517
      %v519 = vpop.f32.mrb[0].mxu0
      %520 = vmatprep.mubr.f32.mxu0 0.0
      %521 = vmatmul.mubr.f32.gmra.mrb[0].mxu0 %v311
      %v522 = vpop.f32.mrb[0].mxu0
      %v523 = vadd.f32 %v232, %v522
      %v524 = vpop.f32.mrb[0].mxu0
      %525 = vmatprep.mubr.f32.mxu0 0.0
      %526 = vmatmul.mubr.f32.gmra.mrb[0].mxu0 %v314
      %v527 = vpop.f32.mrb[0].mxu0
      %v528 = vadd.f32 %v232, %v527
      %v529 = vpop.f32.mrb[0].mxu0
      %530 = vmatprep.mubr.f32.mxu0 0.0
      %531 = vmatmul.mubr.f32.gmra.mrb[0].mxu0 %v317
      %v532 = vpop.f32.mrb[0].mxu0
      %v533 = vadd.f32 %v232, %v532
      %v534 = vpop.f32.mrb[0].mxu0
      %535 = vmatprep.mubr.f32.mxu0 0.0
      %536 = vmatmul.mubr.f32.gmra.mrb[0].mxu0 %v320
      %v537 = vpop.f32.mrb[0].mxu0
      %v538 = vadd.f32 %v232, %v537
      %v539 = vpop.f32.mrb[0].mxu0
      %540 = vmatprep.mubr.f32.mxu0 0.0
      %541 = vmatmul.mubr.f32.gmra.mrb[0].mxu0 %v323
      %v542 = vpop.f32.mrb[0].mxu0
      %v543 = vadd.f32 %v232, %v542
      %v544 = vpop.f32.mrb[0].mxu0
      %545 = vmatprep.mubr.f32.mxu0 0.0
      %546 = vmatmul.mubr.f32.gmra.mrb[0].mxu0 %v326
      %v547 = vpop.f32.mrb[0].mxu0
      %v548 = vadd.f32 %v232, %v547
      %v549 = vpop.f32.mrb[0].mxu0
      %550 = vmatprep.mubr.f32.mxu0 0.0
      %551 = vmatmul.mubr.f32.gmra.mrb[0].mxu0 %v329
      %v552 = vpop.f32.mrb[0].mxu0
      %v553 = vadd.f32 %v232, %v552
      %v554 = vpop.f32.mrb[0].mxu0
      %555 = vdwg.mxu0
      %v556 = vmul.f32 %v398, %v398
      %v557 = vmul.f32 %v403, %v403
      %v558 = vmul.f32 %v408, %v408
      %v559 = vmul.f32 %v413, %v413
      %v560 = vmul.f32 %v418, %v418
      %v561 = vmul.f32 %v423, %v423
      %v562 = vmul.f32 %v428, %v428
      %v563 = vmul.f32 %v433, %v433
      %v564 = vmul.f32 %v438, %v438
      %v565 = vmul.f32 %v443, %v443
      %v566 = vmul.f32 %v448, %v448
      %v567 = vmul.f32 %v453, %v453
      %v568 = vmul.f32 %v458, %v458
      %v569 = vmul.f32 %v463, %v463
      %v570 = vmul.f32 %v468, %v468
      %v571 = vmul.f32 %v473, %v473
      %v572 = vmul.f32 %v478, %v478
      %v573 = vmul.f32 %v483, %v483
      %v574 = vmul.f32 %v488, %v488
      %v575 = vmul.f32 %v493, %v493
      %v576 = vmul.f32 %v498, %v498
      %v577 = vmul.f32 %v503, %v503
      %v578 = vmul.f32 %v508, %v508
      %v579 = vmul.f32 %v513, %v513
      %v580 = vmul.f32 %v518, %v518
      %v581 = vmul.f32 %v523, %v523
      %v582 = vmul.f32 %v528, %v528
      %v583 = vmul.f32 %v533, %v533
      %v584 = vmul.f32 %v538, %v538
      %v585 = vmul.f32 %v543, %v543
      %v586 = vmul.f32 %v548, %v548
      %v587 = vmul.f32 %v553, %v553
      %588 = vadd.xlane.f32.xlu0 %v556
      %v589 = vpop.xlane.xlu0 %588
      %590 = vadd.xlane.f32.xlu0 %v557
      %v591 = vpop.xlane.xlu0 %590
      %592 = vadd.xlane.f32.xlu0 %v558
      %v593 = vpop.xlane.xlu0 %592
      %594 = vadd.xlane.f32.xlu0 %v559
      %v595 = vpop.xlane.xlu0 %594
      %596 = vadd.xlane.f32.xlu0 %v560
      %v597 = vpop.xlane.xlu0 %596
      %598 = vadd.xlane.f32.xlu0 %v561
      %v599 = vpop.xlane.xlu0 %598
      %600 = vadd.xlane.f32.xlu0 %v562
      %v601 = vpop.xlane.xlu0 %600
      %602 = vadd.xlane.f32.xlu0 %v563
      %v603 = vpop.xlane.xlu0 %602
      %604 = vadd.xlane.f32.xlu0 %v564
      %v605 = vpop.xlane.xlu0 %604
      %606 = vadd.xlane.f32.xlu0 %v565
      %v607 = vpop.xlane.xlu0 %606
      %608 = vadd.xlane.f32.xlu0 %v566
      %v609 = vpop.xlane.xlu0 %608
      %610 = vadd.xlane.f32.xlu0 %v567
      %v611 = vpop.xlane.xlu0 %610
      %612 = vadd.xlane.f32.xlu0 %v568
      %v613 = vpop.xlane.xlu0 %612
      %614 = vadd.xlane.f32.xlu0 %v569
      %v615 = vpop.xlane.xlu0 %614
      %616 = vadd.xlane.f32.xlu0 %v570
      %v617 = vpop.xlane.xlu0 %616
      %618 = vadd.xlane.f32.xlu0 %v571
      %v619 = vpop.xlane.xlu0 %618
      %620 = vadd.xlane.f32.xlu0 %v572
      %v621 = vpop.xlane.xlu0 %620
      %622 = vadd.xlane.f32.xlu0 %v573
      %v623 = vpop.xlane.xlu0 %622
      %624 = vadd.xlane.f32.xlu0 %v574
      %v625 = vpop.xlane.xlu0 %624
      %626 = vadd.xlane.f32.xlu0 %v575
      %v627 = vpop.xlane.xlu0 %626
      %628 = vadd.xlane.f32.xlu0 %v576
      %v629 = vpop.xlane.xlu0 %628
      %630 = vadd.xlane.f32.xlu0 %v577
      %v631 = vpop.xlane.xlu0 %630
      %632 = vadd.xlane.f32.xlu0 %v578
      %v633 = vpop.xlane.xlu0 %632
      %634 = vadd.xlane.f32.xlu0 %v579
      %v635 = vpop.xlane.xlu0 %634
      %636 = vadd.xlane.f32.xlu0 %v580
      %v637 = vpop.xlane.xlu0 %636
      %638 = vadd.xlane.f32.xlu0 %v581
      %v639 = vpop.xlane.xlu0 %638
      %640 = vadd.xlane.f32.xlu0 %v582
      %v641 = vpop.xlane.xlu0 %640
      %642 = vadd.xlane.f32.xlu0 %v583
      %v643 = vpop.xlane.xlu0 %642
      %644 = vadd.xlane.f32.xlu0 %v584
      %v645 = vpop.xlane.xlu0 %644
      %646 = vadd.xlane.f32.xlu0 %v585
      %v647 = vpop.xlane.xlu0 %646
      %648 = vadd.xlane.f32.xlu0 %v586
      %v649 = vpop.xlane.xlu0 %648
      %650 = vadd.xlane.f32.xlu0 %v587
      %v651 = vpop.xlane.xlu0 %650
      %v652 = vadd.f32 %v589, 1e-12
      %v653 = vadd.f32 %v591, 1e-12
      %v654 = vadd.f32 %v593, 1e-12
      %v655 = vadd.f32 %v595, 1e-12
      %v656 = vadd.f32 %v597, 1e-12
      %v657 = vadd.f32 %v599, 1e-12
      %v658 = vadd.f32 %v601, 1e-12
      %v659 = vadd.f32 %v603, 1e-12
      %v660 = vadd.f32 %v605, 1e-12
      %v661 = vadd.f32 %v607, 1e-12
      %v662 = vadd.f32 %v609, 1e-12
      %v663 = vadd.f32 %v611, 1e-12
      %v664 = vadd.f32 %v613, 1e-12
      %v665 = vadd.f32 %v615, 1e-12
      %v666 = vadd.f32 %v617, 1e-12
      %v667 = vadd.f32 %v619, 1e-12
      %v668 = vadd.f32 %v621, 1e-12
      %v669 = vadd.f32 %v623, 1e-12
      %v670 = vadd.f32 %v625, 1e-12
      %v671 = vadd.f32 %v627, 1e-12
      %v672 = vadd.f32 %v629, 1e-12
      %v673 = vadd.f32 %v631, 1e-12
      %v674 = vadd.f32 %v633, 1e-12
      %v675 = vadd.f32 %v635, 1e-12
      %v676 = vadd.f32 %v637, 1e-12
      %v677 = vadd.f32 %v639, 1e-12
      %v678 = vadd.f32 %v641, 1e-12
      %v679 = vadd.f32 %v643, 1e-12
      %v680 = vadd.f32 %v645, 1e-12
      %v681 = vadd.f32 %v647, 1e-12
      %v682 = vadd.f32 %v649, 1e-12
      %v683 = vadd.f32 %v651, 1e-12
      %v684 = vrsqrt.pop %v652
      %v685 = vrsqrt.pop %v653
      %v686 = vrsqrt.pop %v654
      %v687 = vrsqrt.pop %v655
      %v688 = vrsqrt.pop %v656
      %v689 = vrsqrt.pop %v657
      %v690 = vrsqrt.pop %v658
      %v691 = vrsqrt.pop %v659
      %v692 = vrsqrt.pop %v660
      %v693 = vrsqrt.pop %v661
      %v694 = vrsqrt.pop %v662
      %v695 = vrsqrt.pop %v663
      %v696 = vrsqrt.pop %v664
      %v697 = vrsqrt.pop %v665
      %v698 = vrsqrt.pop %v666
      %v699 = vrsqrt.pop %v667
      %v700 = vrsqrt.pop %v668
      %v701 = vrsqrt.pop %v669
      %v702 = vrsqrt.pop %v670
      %v703 = vrsqrt.pop %v671
      %v704 = vrsqrt.pop %v672
      %v705 = vrsqrt.pop %v673
      %v706 = vrsqrt.pop %v674
      %v707 = vrsqrt.pop %v675
      %v708 = vrsqrt.pop %v676
      %v709 = vrsqrt.pop %v677
      %v710 = vrsqrt.pop %v678
      %v711 = vrsqrt.pop %v679
      %v712 = vrsqrt.pop %v680
      %v713 = vrsqrt.pop %v681
      %v714 = vrsqrt.pop %v682
      %v715 = vrsqrt.pop %v683
      %v716 = vmul.f32 %v398, %v684
      %v717 = vmul.f32 %v403, %v685
      %v718 = vmul.f32 %v408, %v686
      %v719 = vmul.f32 %v413, %v687
      %v720 = vmul.f32 %v418, %v688
      %v721 = vmul.f32 %v423, %v689
      %v722 = vmul.f32 %v428, %v690
      %v723 = vmul.f32 %v433, %v691
      %v724 = vmul.f32 %v438, %v692
      %v725 = vmul.f32 %v443, %v693
      %v726 = vmul.f32 %v448, %v694
      %v727 = vmul.f32 %v453, %v695
      %v728 = vmul.f32 %v458, %v696
      %v729 = vmul.f32 %v463, %v697
      %v730 = vmul.f32 %v468, %v698
      %v731 = vmul.f32 %v473, %v699
      %v732 = vmul.f32 %v478, %v700
      %v733 = vmul.f32 %v483, %v701
      %v734 = vmul.f32 %v488, %v702
      %v735 = vmul.f32 %v493, %v703
      %v736 = vmul.f32 %v498, %v704
      %v737 = vmul.f32 %v503, %v705
      %v738 = vmul.f32 %v508, %v706
      %v739 = vmul.f32 %v513, %v707
      %v740 = vmul.f32 %v518, %v708
      %v741 = vmul.f32 %v523, %v709
      %v742 = vmul.f32 %v528, %v710
      %v743 = vmul.f32 %v533, %v711
      %v744 = vmul.f32 %v538, %v712
      %v745 = vmul.f32 %v543, %v713
      %v746 = vmul.f32 %v548, %v714
      %v747 = vmul.f32 %v553, %v715
      %s748 = scalar_lea.vmem %s0, %s193
      %v749 = vld [vmem:[%s748] sm:$0xff]
      %v750 = vld [vmem:[%s748 + $0x8] sm:$0xff]
      %v751 = vld [vmem:[%s748 + $0x10] sm:$0xff]
      %v752 = vld [vmem:[%s748 + $0x18] sm:$0xff]
      %v753 = vld [vmem:[%s748 + $0x20] sm:$0xff]
      %v754 = vld [vmem:[%s748 + $0x28] sm:$0xff]
      %v755 = vld [vmem:[%s748 + $0x30] sm:$0xff]
      %v756 = vld [vmem:[%s748 + $0x38] sm:$0xff]
      %v758 = vsel %vm234, %v749, 0
      %v761 = vsel %vm234, %v750, 0
      %v764 = vsel %vm234, %v751, 0
      %v767 = vsel %vm234, %v752, 0
      %v770 = vsel %vm234, %v753, 0
      %v773 = vsel %vm234, %v754, 0
      %v776 = vsel %vm234, %v755, 0
      %v779 = vsel %vm234, %v756, 0
      %781 = vmatprep.subr.mxu0 0.0
      %782 = vmatpush1.msra.mxu0 %v194
      %783 = vmatprep.subr.mxu0 0.0
      %784 = vmatpush1.msra.mxu0 0.0
      %785 = vmatprep.subr.mxu0 0.0
      %786 = vmatpush1.msra.mxu0 0.0
      %787 = vmatprep.subr.mxu0 0.0
      %788 = vmatpush1.msra.mxu0 0.0
      %789 = vmatprep.subr.mxu0 0.0
      %790 = vmatpush1.msra.mxu0 0.0
      %791 = vmatprep.subr.mxu0 0.0
      %792 = vmatpush1.msra.mxu0 0.0
      %793 = vmatprep.subr.mxu0 0.0
      %794 = vmatpush1.msra.mxu0 0.0
      %795 = vmatprep.subr.mxu0 0.0
      %796 = vmatpush1.msra.mxu0 0.0
      %797 = vmatprep.subr.mxu0 0.0
      %798 = vmatpush1.msra.mxu0 0.0
      %799 = vmatprep.subr.mxu0 0.0
      %800 = vmatpush1.msra.mxu0 0.0
      %801 = vmatprep.subr.mxu0 0.0
      %802 = vmatpush1.msra.mxu0 0.0
      %803 = vmatprep.subr.mxu0 0.0
      %804 = vmatpush1.msra.mxu0 0.0
      %805 = vmatprep.subr.mxu0 0.0
      %806 = vmatpush1.msra.mxu0 0.0
      %807 = vmatprep.subr.mxu0 0.0
      %808 = vmatpush1.msra.mxu0 0.0
      %809 = vmatprep.subr.mxu0 0.0
      %810 = vmatpush1.msra.mxu0 0.0
      %811 = vmatprep.subr.mxu0 0.0
      %812 = vmatpush1.msra.mxu0 0.0
      %813 = vmatprep.subr.mxu0 0.0
      %814 = vmatpush1.msra.mxu0 0.0
      %815 = vmatprep.subr.mxu0 0.0
      %816 = vmatpush1.msra.mxu0 0.0
      %817 = vmatprep.subr.mxu0 0.0
      %818 = vmatpush1.msra.mxu0 0.0
      %819 = vmatprep.subr.mxu0 0.0
      %820 = vmatpush1.msra.mxu0 0.0
      %821 = vmatprep.subr.mxu0 0.0
      %822 = vmatpush1.msra.mxu0 0.0
      %823 = vmatprep.subr.mxu0 0.0
      %824 = vmatpush1.msra.mxu0 0.0
      %825 = vmatprep.subr.mxu0 0.0
      %826 = vmatpush1.msra.mxu0 0.0
      %827 = vmatprep.subr.mxu0 0.0
      %828 = vmatpush1.msra.mxu0 0.0
      %829 = vmatprep.subr.mxu0 0.0
      %830 = vmatpush1.msra.mxu0 0.0
      %831 = vmatprep.subr.mxu0 0.0
      %832 = vmatpush1.msra.mxu0 0.0
      %833 = vmatprep.subr.mxu0 0.0
      %834 = vmatpush1.msra.mxu0 0.0
      %835 = vmatprep.subr.mxu0 0.0
      %836 = vmatpush1.msra.mxu0 0.0
      %837 = vmatprep.subr.mxu0 0.0
      %838 = vmatpush1.msra.mxu0 0.0
      %839 = vmatprep.subr.mxu0 0.0
      %840 = vmatpush1.msra.mxu0 0.0
      %841 = vmatprep.subr.mxu0 0.0
      %842 = vmatpush1.msra.mxu0 0.0
      %843 = vmatprep.subr.mxu0 0.0
      %844 = vmatpush1.msra.mxu0 0.0
      %845 = vmatprep.mubr.f32.mxu0 0.0
      %846 = vmatmul.mubr.f32.gmra.mrb[0].mxu0 %v758
      %v847 = vpop.f32.mrb[0].mxu0
      %v848 = vadd.f32 %v232, %v847
      %v849 = vpop.f32.mrb[0].mxu0
      %850 = vmatprep.mubr.f32.mxu0 0.0
      %851 = vmatmul.mubr.f32.gmra.mrb[0].mxu0 %v761
      %v852 = vpop.f32.mrb[0].mxu0
      %v853 = vadd.f32 %v232, %v852
      %v854 = vpop.f32.mrb[0].mxu0
      %855 = vmatprep.mubr.f32.mxu0 0.0
      %856 = vmatmul.mubr.f32.gmra.mrb[0].mxu0 %v764
      %v857 = vpop.f32.mrb[0].mxu0
      %v858 = vadd.f32 %v232, %v857
      %v859 = vpop.f32.mrb[0].mxu0
      %860 = vmatprep.mubr.f32.mxu0 0.0
      %861 = vmatmul.mubr.f32.gmra.mrb[0].mxu0 %v767
      %v862 = vpop.f32.mrb[0].mxu0
      %v863 = vadd.f32 %v232, %v862
      %v864 = vpop.f32.mrb[0].mxu0
      %865 = vmatprep.mubr.f32.mxu0 0.0
      %866 = vmatmul.mubr.f32.gmra.mrb[0].mxu0 %v770
      %v867 = vpop.f32.mrb[0].mxu0
      %v868 = vadd.f32 %v232, %v867
      %v869 = vpop.f32.mrb[0].mxu0
      %870 = vmatprep.mubr.f32.mxu0 0.0
      %871 = vmatmul.mubr.f32.gmra.mrb[0].mxu0 %v773
      %v872 = vpop.f32.mrb[0].mxu0
      %v873 = vadd.f32 %v232, %v872
      %v874 = vpop.f32.mrb[0].mxu0
      %875 = vmatprep.mubr.f32.mxu0 0.0
      %876 = vmatmul.mubr.f32.gmra.mrb[0].mxu0 %v776
      %v877 = vpop.f32.mrb[0].mxu0
      %v878 = vadd.f32 %v232, %v877
      %v879 = vpop.f32.mrb[0].mxu0
      %880 = vmatprep.mubr.f32.mxu0 0.0
      %881 = vmatmul.mubr.f32.gmra.mrb[0].mxu0 %v779
      %v882 = vpop.f32.mrb[0].mxu0
      %v883 = vadd.f32 %v232, %v882
      %v884 = vpop.f32.mrb[0].mxu0
      %885 = vdwg.mxu0
      %v886 = vtanh.pop %v848
      %v887 = vtanh.pop %v853
      %v888 = vtanh.pop %v858
      %v889 = vtanh.pop %v863
      %v890 = vtanh.pop %v868
      %v891 = vtanh.pop %v873
      %v892 = vtanh.pop %v878
      %v893 = vtanh.pop %v883
      %894 = vst [vmem:[%s185] sm:$0xff] %v886
      %895 = vst [vmem:[%s185 + $0x8] sm:$0xff] %v887
      %896 = vst [vmem:[%s185 + $0x10] sm:$0xff] %v888
      %897 = vst [vmem:[%s185 + $0x18] sm:$0xff] %v889
      %898 = vst [vmem:[%s185 + $0x20] sm:$0xff] %v890
      %899 = vst [vmem:[%s185 + $0x28] sm:$0xff] %v891
      %900 = vst [vmem:[%s185 + $0x30] sm:$0xff] %v892
      %901 = vst [vmem:[%s185 + $0x38] sm:$0xff] %v893
      %v902 = vmul.f32 %v848, %v848
      %v903 = vmul.f32 %v853, %v853
      %v904 = vmul.f32 %v858, %v858
      %v905 = vmul.f32 %v863, %v863
      %v906 = vmul.f32 %v868, %v868
      %v907 = vmul.f32 %v873, %v873
      %v908 = vmul.f32 %v878, %v878
      %v909 = vmul.f32 %v883, %v883
      %910 = vadd.xlane.f32.xlu0 %v902
      %v911 = vpop.xlane.xlu0 %910
      %912 = vadd.xlane.f32.xlu0 %v903
      %v913 = vpop.xlane.xlu0 %912
      %914 = vadd.xlane.f32.xlu0 %v904
      %v915 = vpop.xlane.xlu0 %914
      %916 = vadd.xlane.f32.xlu0 %v905
      %v917 = vpop.xlane.xlu0 %916
      %918 = vadd.xlane.f32.xlu0 %v906
      %v919 = vpop.xlane.xlu0 %918
      %920 = vadd.xlane.f32.xlu0 %v907
      %v921 = vpop.xlane.xlu0 %920
      %922 = vadd.xlane.f32.xlu0 %v908
      %v923 = vpop.xlane.xlu0 %922
      %924 = vadd.xlane.f32.xlu0 %v909
      %v925 = vpop.xlane.xlu0 %924
      %v926 = vadd.f32 %v911, 1e-12
      %v927 = vadd.f32 %v913, 1e-12
      %v928 = vadd.f32 %v915, 1e-12
      %v929 = vadd.f32 %v917, 1e-12
      %v930 = vadd.f32 %v919, 1e-12
      %v931 = vadd.f32 %v921, 1e-12
      %v932 = vadd.f32 %v923, 1e-12
      %v933 = vadd.f32 %v925, 1e-12
      %v934 = vrsqrt.pop %v926
      %v935 = vrsqrt.pop %v927
      %v936 = vrsqrt.pop %v928
      %v937 = vrsqrt.pop %v929
      %v938 = vrsqrt.pop %v930
      %v939 = vrsqrt.pop %v931
      %v940 = vrsqrt.pop %v932
      %v941 = vrsqrt.pop %v933
      %v942 = vmul.f32 %v848, %v934
      %v943 = vmul.f32 %v853, %v935
      %v944 = vmul.f32 %v858, %v936
      %v945 = vmul.f32 %v863, %v937
      %v946 = vmul.f32 %v868, %v938
      %v947 = vmul.f32 %v873, %v939
      %v948 = vmul.f32 %v878, %v940
      %v949 = vmul.f32 %v883, %v941
      %950 = vmatprep.subr.mxu0 0.0
      %951 = vmatpush1.xpose.msra.mxu0 %v716
      %952 = vmatprep.subr.mxu0 0.0
      %953 = vmatpush1.xpose.msra.mxu0 %v717
      %954 = vmatprep.subr.mxu0 0.0
      %955 = vmatpush1.xpose.msra.mxu0 %v718
      %956 = vmatprep.subr.mxu0 0.0
      %957 = vmatpush1.xpose.msra.mxu0 %v719
      %958 = vmatprep.subr.mxu0 0.0
      %959 = vmatpush1.xpose.msra.mxu0 %v720
      %960 = vmatprep.subr.mxu0 0.0
      %961 = vmatpush1.xpose.msra.mxu0 %v721
      %962 = vmatprep.subr.mxu0 0.0
      %963 = vmatpush1.xpose.msra.mxu0 %v722
      %964 = vmatprep.subr.mxu0 0.0
      %965 = vmatpush1.xpose.msra.mxu0 %v723
      %966 = vmatprep.subr.mxu0 0.0
      %967 = vmatpush1.xpose.msra.mxu0 %v724
      %968 = vmatprep.subr.mxu0 0.0
      %969 = vmatpush1.xpose.msra.mxu0 %v725
      %970 = vmatprep.subr.mxu0 0.0
      %971 = vmatpush1.xpose.msra.mxu0 %v726
      %972 = vmatprep.subr.mxu0 0.0
      %973 = vmatpush1.xpose.msra.mxu0 %v727
      %974 = vmatprep.subr.mxu0 0.0
      %975 = vmatpush1.xpose.msra.mxu0 %v728
      %976 = vmatprep.subr.mxu0 0.0
      %977 = vmatpush1.xpose.msra.mxu0 %v729
      %978 = vmatprep.subr.mxu0 0.0
      %979 = vmatpush1.xpose.msra.mxu0 %v730
      %980 = vmatprep.subr.mxu0 0.0
      %981 = vmatpush1.xpose.msra.mxu0 %v731
      %982 = vmatprep.subr.mxu0 0.0
      %983 = vmatpush1.xpose.msra.mxu0 %v732
      %984 = vmatprep.subr.mxu0 0.0
      %985 = vmatpush1.xpose.msra.mxu0 %v733
      %986 = vmatprep.subr.mxu0 0.0
      %987 = vmatpush1.xpose.msra.mxu0 %v734
      %988 = vmatprep.subr.mxu0 0.0
      %989 = vmatpush1.xpose.msra.mxu0 %v735
      %990 = vmatprep.subr.mxu0 0.0
      %991 = vmatpush1.xpose.msra.mxu0 %v736
      %992 = vmatprep.subr.mxu0 0.0
      %993 = vmatpush1.xpose.msra.mxu0 %v737
      %994 = vmatprep.subr.mxu0 0.0
      %995 = vmatpush1.xpose.msra.mxu0 %v738
      %996 = vmatprep.subr.mxu0 0.0
      %997 = vmatpush1.xpose.msra.mxu0 %v739
      %998 = vmatprep.subr.mxu0 0.0
      %999 = vmatpush1.xpose.msra.mxu0 %v740
      %1000 = vmatprep.subr.mxu0 0.0
      %1001 = vmatpush1.xpose.msra.mxu0 %v741
      %1002 = vmatprep.subr.mxu0 0.0
      %1003 = vmatpush1.xpose.msra.mxu0 %v742
      %1004 = vmatprep.subr.mxu0 0.0
      %1005 = vmatpush1.xpose.msra.mxu0 %v743
      %1006 = vmatprep.subr.mxu0 0.0
      %1007 = vmatpush1.xpose.msra.mxu0 %v744
      %1008 = vmatprep.subr.mxu0 0.0
      %1009 = vmatpush1.xpose.msra.mxu0 %v745
      %1010 = vmatprep.subr.mxu0 0.0
      %1011 = vmatpush1.xpose.msra.mxu0 %v746
      %1012 = vmatprep.subr.mxu0 0.0
      %1013 = vmatpush1.xpose.msra.mxu0 %v747
      %1014 = vmatprep.mubr.f32.mxu0 0.0
      %1015 = vmatmul.mubr.f32.gmra.mrb[0].mxu0 %v942
      %v1016 = vpop.f32.mrb[0].mxu0
      %v1017 = vadd.f32 0.0, %v1016
      %v1018 = vpop.f32.mrb[0].mxu0
      %v1019 = vadd.f32 0.0, %v1018
      %1020 = vmatprep.mubr.f32.mxu0 0.0
      %1021 = vmatmul.mubr.f32.gmra.mrb[0].mxu0 %v943
      %v1022 = vpop.f32.mrb[0].mxu0
      %v1023 = vadd.f32 0.0, %v1022
      %v1024 = vpop.f32.mrb[0].mxu0
      %v1025 = vadd.f32 0.0, %v1024
      %1026 = vmatprep.mubr.f32.mxu0 0.0
      %1027 = vmatmul.mubr.f32.gmra.mrb[0].mxu0 %v944
      %v1028 = vpop.f32.mrb[0].mxu0
      %v1029 = vadd.f32 0.0, %v1028
      %v1030 = vpop.f32.mrb[0].mxu0
      %v1031 = vadd.f32 0.0, %v1030
      %1032 = vmatprep.mubr.f32.mxu0 0.0
      %1033 = vmatmul.mubr.f32.gmra.mrb[0].mxu0 %v945
      %v1034 = vpop.f32.mrb[0].mxu0
      %v1035 = vadd.f32 0.0, %v1034
      %v1036 = vpop.f32.mrb[0].mxu0
      %v1037 = vadd.f32 0.0, %v1036
      %1038 = vmatprep.mubr.f32.mxu0 0.0
      %1039 = vmatmul.mubr.f32.gmra.mrb[0].mxu0 %v946
      %v1040 = vpop.f32.mrb[0].mxu0
      %v1041 = vadd.f32 0.0, %v1040
      %v1042 = vpop.f32.mrb[0].mxu0
      %v1043 = vadd.f32 0.0, %v1042
      %1044 = vmatprep.mubr.f32.mxu0 0.0
      %1045 = vmatmul.mubr.f32.gmra.mrb[0].mxu0 %v947
      %v1046 = vpop.f32.mrb[0].mxu0
      %v1047 = vadd.f32 0.0, %v1046
      %v1048 = vpop.f32.mrb[0].mxu0
      %v1049 = vadd.f32 0.0, %v1048
      %1050 = vmatprep.mubr.f32.mxu0 0.0
      %1051 = vmatmul.mubr.f32.gmra.mrb[0].mxu0 %v948
      %v1052 = vpop.f32.mrb[0].mxu0
      %v1053 = vadd.f32 0.0, %v1052
      %v1054 = vpop.f32.mrb[0].mxu0
      %v1055 = vadd.f32 0.0, %v1054
      %1056 = vmatprep.mubr.f32.mxu0 0.0
      %1057 = vmatmul.mubr.f32.gmra.mrb[0].mxu0 %v949
      %v1058 = vpop.f32.mrb[0].mxu0
      %v1059 = vadd.f32 0.0, %v1058
      %v1060 = vpop.f32.mrb[0].mxu0
      %v1061 = vadd.f32 0.0, %v1060
      %1062 = vdwg.mxu0
      %v1063 = vlaneseq
      %v1064 = vand.u32 %v1063, 127
      %v1065 = vadd.s32 %v1064, 128
      %v1066 = vmax.f32 %v1017, %v1019
      %1067 = vmax.xlane.f32.xlu0 %v1066
      %v1068 = vpop.xlane.xlu0 %1067
      %v1069 = vmax.f32 %v1023, %v1025
      %1070 = vmax.xlane.f32.xlu0 %v1069
      %v1071 = vpop.xlane.xlu0 %1070
      %v1072 = vmax.f32 %v1029, %v1031
      %1073 = vmax.xlane.f32.xlu0 %v1072
      %v1074 = vpop.xlane.xlu0 %1073
      %v1075 = vmax.f32 %v1035, %v1037
      %1076 = vmax.xlane.f32.xlu0 %v1075
      %v1077 = vpop.xlane.xlu0 %1076
      %v1078 = vmax.f32 %v1041, %v1043
      %1079 = vmax.xlane.f32.xlu0 %v1078
      %v1080 = vpop.xlane.xlu0 %1079
      %v1081 = vmax.f32 %v1047, %v1049
      %1082 = vmax.xlane.f32.xlu0 %v1081
      %v1083 = vpop.xlane.xlu0 %1082
      %v1084 = vmax.f32 %v1053, %v1055
      %1085 = vmax.xlane.f32.xlu0 %v1084
      %v1086 = vpop.xlane.xlu0 %1085
      %v1087 = vmax.f32 %v1059, %v1061
      %1088 = vmax.xlane.f32.xlu0 %v1087
      %v1089 = vpop.xlane.xlu0 %1088
      %vm1090 = vcmp.eq.f32.partialorder %v1017, %v1068
      %vm1091 = vcmp.eq.f32.partialorder %v1019, %v1068
      %vm1092 = vcmp.eq.f32.partialorder %v1023, %v1071
      %vm1093 = vcmp.eq.f32.partialorder %v1025, %v1071
      %vm1094 = vcmp.eq.f32.partialorder %v1029, %v1074
      %vm1095 = vcmp.eq.f32.partialorder %v1031, %v1074
      %vm1096 = vcmp.eq.f32.partialorder %v1035, %v1077
      %vm1097 = vcmp.eq.f32.partialorder %v1037, %v1077
      %vm1098 = vcmp.eq.f32.partialorder %v1041, %v1080
      %vm1099 = vcmp.eq.f32.partialorder %v1043, %v1080
      %vm1100 = vcmp.eq.f32.partialorder %v1047, %v1083
      %vm1101 = vcmp.eq.f32.partialorder %v1049, %v1083
      %vm1102 = vcmp.eq.f32.partialorder %v1053, %v1086
      %vm1103 = vcmp.eq.f32.partialorder %v1055, %v1086
      %vm1104 = vcmp.eq.f32.partialorder %v1059, %v1089
      %vm1105 = vcmp.eq.f32.partialorder %v1061, %v1089
      %v1106 = vsel %vm1090, %v1064, 256
      %v1107 = vsel %vm1091, %v1065, 256
      %v1108 = vsel %vm1092, %v1064, 256
      %v1109 = vsel %vm1093, %v1065, 256
      %v1110 = vsel %vm1094, %v1064, 256
      %v1111 = vsel %vm1095, %v1065, 256
      %v1112 = vsel %vm1096, %v1064, 256
      %v1113 = vsel %vm1097, %v1065, 256
      %v1114 = vsel %vm1098, %v1064, 256
      %v1115 = vsel %vm1099, %v1065, 256
      %v1116 = vsel %vm1100, %v1064, 256
      %v1117 = vsel %vm1101, %v1065, 256
      %v1118 = vsel %vm1102, %v1064, 256
      %v1119 = vsel %vm1103, %v1065, 256
      %v1120 = vsel %vm1104, %v1064, 256
      %v1121 = vsel %vm1105, %v1065, 256
      %vm1122 = vcmp.lt.s32.totalorder %v1106, %v1107
      %v1123 = vsel %vm1122, %v1106, %v1107
      %v1124 = vand.u32 %v1123, 65535
      %v1125 = vshra.s32 %v1123, 16
      %v1126 = vcvt.s32.f32 %v1124
      %v1127 = vcvt.s32.f32 %v1125
      %1128 = vmin.xlane.f32.xlu0 %v1127
      %v1129 = vpop.xlane.xlu0 %1128
      %vm1130 = vcmp.eq.f32.partialorder %v1127, %v1129
      %v1131 = vsel %vm1130, %v1126, inf
      %1132 = vmin.xlane.f32.xlu0 %v1131
      %v1133 = vpop.xlane.xlu0 %1132
      %v1134 = vcvt.f32.s32 %v1133
      %v1135 = vcvt.f32.s32 %v1129
      %v1136 = vshll.u32 %v1135, 16
      %v1137 = vadd.s32 %v1136, %v1134
      %vm1138 = vcmp.lt.s32.totalorder %v1108, %v1109
      %v1139 = vsel %vm1138, %v1108, %v1109
      %v1140 = vand.u32 %v1139, 65535
      %v1141 = vshra.s32 %v1139, 16
      %v1142 = vcvt.s32.f32 %v1140
      %v1143 = vcvt.s32.f32 %v1141
      %1144 = vmin.xlane.f32.xlu0 %v1143
      %v1145 = vpop.xlane.xlu0 %1144
      %vm1146 = vcmp.eq.f32.partialorder %v1143, %v1145
      %v1147 = vsel %vm1146, %v1142, inf
      %1148 = vmin.xlane.f32.xlu0 %v1147
      %v1149 = vpop.xlane.xlu0 %1148
      %v1150 = vcvt.f32.s32 %v1149
      %v1151 = vcvt.f32.s32 %v1145
      %v1152 = vshll.u32 %v1151, 16
      %v1153 = vadd.s32 %v1152, %v1150
      %vm1154 = vcmp.lt.s32.totalorder %v1110, %v1111
      %v1155 = vsel %vm1154, %v1110, %v1111
      %v1156 = vand.u32 %v1155, 65535
      %v1157 = vshra.s32 %v1155, 16
      %v1158 = vcvt.s32.f32 %v1156
      %v1159 = vcvt.s32.f32 %v1157
      %1160 = vmin.xlane.f32.xlu0 %v1159
      %v1161 = vpop.xlane.xlu0 %1160
      %vm1162 = vcmp.eq.f32.partialorder %v1159, %v1161
      %v1163 = vsel %vm1162, %v1158, inf
      %1164 = vmin.xlane.f32.xlu0 %v1163
      %v1165 = vpop.xlane.xlu0 %1164
      %v1166 = vcvt.f32.s32 %v1165
      %v1167 = vcvt.f32.s32 %v1161
      %v1168 = vshll.u32 %v1167, 16
      %v1169 = vadd.s32 %v1168, %v1166
      %vm1170 = vcmp.lt.s32.totalorder %v1112, %v1113
      %v1171 = vsel %vm1170, %v1112, %v1113
      %v1172 = vand.u32 %v1171, 65535
      %v1173 = vshra.s32 %v1171, 16
      %v1174 = vcvt.s32.f32 %v1172
      %v1175 = vcvt.s32.f32 %v1173
      %1176 = vmin.xlane.f32.xlu0 %v1175
      %v1177 = vpop.xlane.xlu0 %1176
      %vm1178 = vcmp.eq.f32.partialorder %v1175, %v1177
      %v1179 = vsel %vm1178, %v1174, inf
      %1180 = vmin.xlane.f32.xlu0 %v1179
      %v1181 = vpop.xlane.xlu0 %1180
      %v1182 = vcvt.f32.s32 %v1181
      %v1183 = vcvt.f32.s32 %v1177
      %v1184 = vshll.u32 %v1183, 16
      %v1185 = vadd.s32 %v1184, %v1182
      %vm1186 = vcmp.lt.s32.totalorder %v1114, %v1115
      %v1187 = vsel %vm1186, %v1114, %v1115
      %v1188 = vand.u32 %v1187, 65535
      %v1189 = vshra.s32 %v1187, 16
      %v1190 = vcvt.s32.f32 %v1188
      %v1191 = vcvt.s32.f32 %v1189
      %1192 = vmin.xlane.f32.xlu0 %v1191
      %v1193 = vpop.xlane.xlu0 %1192
      %vm1194 = vcmp.eq.f32.partialorder %v1191, %v1193
      %v1195 = vsel %vm1194, %v1190, inf
      %1196 = vmin.xlane.f32.xlu0 %v1195
      %v1197 = vpop.xlane.xlu0 %1196
      %v1198 = vcvt.f32.s32 %v1197
      %v1199 = vcvt.f32.s32 %v1193
      %v1200 = vshll.u32 %v1199, 16
      %v1201 = vadd.s32 %v1200, %v1198
      %vm1202 = vcmp.lt.s32.totalorder %v1116, %v1117
      %v1203 = vsel %vm1202, %v1116, %v1117
      %v1204 = vand.u32 %v1203, 65535
      %v1205 = vshra.s32 %v1203, 16
      %v1206 = vcvt.s32.f32 %v1204
      %v1207 = vcvt.s32.f32 %v1205
      %1208 = vmin.xlane.f32.xlu0 %v1207
      %v1209 = vpop.xlane.xlu0 %1208
      %vm1210 = vcmp.eq.f32.partialorder %v1207, %v1209
      %v1211 = vsel %vm1210, %v1206, inf
      %1212 = vmin.xlane.f32.xlu0 %v1211
      %v1213 = vpop.xlane.xlu0 %1212
      %v1214 = vcvt.f32.s32 %v1213
      %v1215 = vcvt.f32.s32 %v1209
      %v1216 = vshll.u32 %v1215, 16
      %v1217 = vadd.s32 %v1216, %v1214
      %vm1218 = vcmp.lt.s32.totalorder %v1118, %v1119
      %v1219 = vsel %vm1218, %v1118, %v1119
      %v1220 = vand.u32 %v1219, 65535
      %v1221 = vshra.s32 %v1219, 16
      %v1222 = vcvt.s32.f32 %v1220
      %v1223 = vcvt.s32.f32 %v1221
      %1224 = vmin.xlane.f32.xlu0 %v1223
      %v1225 = vpop.xlane.xlu0 %1224
      %vm1226 = vcmp.eq.f32.partialorder %v1223, %v1225
      %v1227 = vsel %vm1226, %v1222, inf
      %1228 = vmin.xlane.f32.xlu0 %v1227
      %v1229 = vpop.xlane.xlu0 %1228
      %v1230 = vcvt.f32.s32 %v1229
      %v1231 = vcvt.f32.s32 %v1225
      %v1232 = vshll.u32 %v1231, 16
      %v1233 = vadd.s32 %v1232, %v1230
      %vm1234 = vcmp.lt.s32.totalorder %v1120, %v1121
      %v1235 = vsel %vm1234, %v1120, %v1121
      %v1236 = vand.u32 %v1235, 65535
      %v1237 = vshra.s32 %v1235, 16
      %v1238 = vcvt.s32.f32 %v1236
      %v1239 = vcvt.s32.f32 %v1237
      %1240 = vmin.xlane.f32.xlu0 %v1239
      %v1241 = vpop.xlane.xlu0 %1240
      %vm1242 = vcmp.eq.f32.partialorder %v1239, %v1241
      %v1243 = vsel %vm1242, %v1238, inf
      %1244 = vmin.xlane.f32.xlu0 %v1243
      %v1245 = vpop.xlane.xlu0 %1244
      %v1246 = vcvt.f32.s32 %v1245
      %v1247 = vcvt.f32.s32 %v1241
      %v1248 = vshll.u32 %v1247, 16
      %v1249 = vadd.s32 %v1248, %v1246
      %v1250 = vcvt.s32.f32 %v1137
      %v1251 = vcvt.s32.f32 %v1153
      %v1252 = vcvt.s32.f32 %v1169
      %v1253 = vcvt.s32.f32 %v1185
      %v1254 = vcvt.s32.f32 %v1201
      %v1255 = vcvt.s32.f32 %v1217
      %v1256 = vcvt.s32.f32 %v1233
      %v1257 = vcvt.s32.f32 %v1249
      %vm1258 = vcmp.eq.s32.totalorder %v1064, %v1137
      %vm1259 = vcmp.eq.s32.totalorder %v1065, %v1137
      %vm1260 = vcmp.eq.s32.totalorder %v1064, %v1153
      %vm1261 = vcmp.eq.s32.totalorder %v1065, %v1153
      %vm1262 = vcmp.eq.s32.totalorder %v1064, %v1169
      %vm1263 = vcmp.eq.s32.totalorder %v1065, %v1169
      %vm1264 = vcmp.eq.s32.totalorder %v1064, %v1185
      %vm1265 = vcmp.eq.s32.totalorder %v1065, %v1185
      %vm1266 = vcmp.eq.s32.totalorder %v1064, %v1201
      %vm1267 = vcmp.eq.s32.totalorder %v1065, %v1201
      %vm1268 = vcmp.eq.s32.totalorder %v1064, %v1217
      %vm1269 = vcmp.eq.s32.totalorder %v1065, %v1217
      %vm1270 = vcmp.eq.s32.totalorder %v1064, %v1233
      %vm1271 = vcmp.eq.s32.totalorder %v1065, %v1233
      %vm1272 = vcmp.eq.s32.totalorder %v1064, %v1249
      %vm1273 = vcmp.eq.s32.totalorder %v1065, %v1249
      %v1274 = vsel %vm1258, -inf, %v1017
      %v1275 = vsel %vm1259, -inf, %v1019
      %v1276 = vsel %vm1260, -inf, %v1023
      %v1277 = vsel %vm1261, -inf, %v1025
      %v1278 = vsel %vm1262, -inf, %v1029
      %v1279 = vsel %vm1263, -inf, %v1031
      %v1280 = vsel %vm1264, -inf, %v1035
      %v1281 = vsel %vm1265, -inf, %v1037
      %v1282 = vsel %vm1266, -inf, %v1041
      %v1283 = vsel %vm1267, -inf, %v1043
      %v1284 = vsel %vm1268, -inf, %v1047
      %v1285 = vsel %vm1269, -inf, %v1049
      %v1286 = vsel %vm1270, -inf, %v1053
      %v1287 = vsel %vm1271, -inf, %v1055
      %v1288 = vsel %vm1272, -inf, %v1059
      %v1289 = vsel %vm1273, -inf, %v1061
      %v1290 = vmax.f32 %v1274, %v1275
      %1291 = vmax.xlane.f32.xlu0 %v1290
      %v1292 = vpop.xlane.xlu0 %1291
      %v1293 = vmax.f32 %v1276, %v1277
      %1294 = vmax.xlane.f32.xlu0 %v1293
      %v1295 = vpop.xlane.xlu0 %1294
      %v1296 = vmax.f32 %v1278, %v1279
      %1297 = vmax.xlane.f32.xlu0 %v1296
      %v1298 = vpop.xlane.xlu0 %1297
      %v1299 = vmax.f32 %v1280, %v1281
      %1300 = vmax.xlane.f32.xlu0 %v1299
      %v1301 = vpop.xlane.xlu0 %1300
      %v1302 = vmax.f32 %v1282, %v1283
      %1303 = vmax.xlane.f32.xlu0 %v1302
      %v1304 = vpop.xlane.xlu0 %1303
      %v1305 = vmax.f32 %v1284, %v1285
      %1306 = vmax.xlane.f32.xlu0 %v1305
      %v1307 = vpop.xlane.xlu0 %1306
      %v1308 = vmax.f32 %v1286, %v1287
      %1309 = vmax.xlane.f32.xlu0 %v1308
      %v1310 = vpop.xlane.xlu0 %1309
      %v1311 = vmax.f32 %v1288, %v1289
      %1312 = vmax.xlane.f32.xlu0 %v1311
      %v1313 = vpop.xlane.xlu0 %1312
      %vm1314 = vcmp.eq.f32.partialorder %v1274, %v1292
      %vm1315 = vcmp.eq.f32.partialorder %v1275, %v1292
      %vm1316 = vcmp.eq.f32.partialorder %v1276, %v1295
      %vm1317 = vcmp.eq.f32.partialorder %v1277, %v1295
      %vm1318 = vcmp.eq.f32.partialorder %v1278, %v1298
      %vm1319 = vcmp.eq.f32.partialorder %v1279, %v1298
      %vm1320 = vcmp.eq.f32.partialorder %v1280, %v1301
      %vm1321 = vcmp.eq.f32.partialorder %v1281, %v1301
      %vm1322 = vcmp.eq.f32.partialorder %v1282, %v1304
      %vm1323 = vcmp.eq.f32.partialorder %v1283, %v1304
      %vm1324 = vcmp.eq.f32.partialorder %v1284, %v1307
      %vm1325 = vcmp.eq.f32.partialorder %v1285, %v1307
      %vm1326 = vcmp.eq.f32.partialorder %v1286, %v1310
      %vm1327 = vcmp.eq.f32.partialorder %v1287, %v1310
      %vm1328 = vcmp.eq.f32.partialorder %v1288, %v1313
      %vm1329 = vcmp.eq.f32.partialorder %v1289, %v1313
      %v1330 = vsel %vm1314, %v1064, 256
      %v1331 = vsel %vm1315, %v1065, 256
      %v1332 = vsel %vm1316, %v1064, 256
      %v1333 = vsel %vm1317, %v1065, 256
      %v1334 = vsel %vm1318, %v1064, 256
      %v1335 = vsel %vm1319, %v1065, 256
      %v1336 = vsel %vm1320, %v1064, 256
      %v1337 = vsel %vm1321, %v1065, 256
      %v1338 = vsel %vm1322, %v1064, 256
      %v1339 = vsel %vm1323, %v1065, 256
      %v1340 = vsel %vm1324, %v1064, 256
      %v1341 = vsel %vm1325, %v1065, 256
      %v1342 = vsel %vm1326, %v1064, 256
      %v1343 = vsel %vm1327, %v1065, 256
      %v1344 = vsel %vm1328, %v1064, 256
      %v1345 = vsel %vm1329, %v1065, 256
      %vm1346 = vcmp.lt.s32.totalorder %v1330, %v1331
      %v1347 = vsel %vm1346, %v1330, %v1331
      %v1348 = vand.u32 %v1347, 65535
      %v1349 = vshra.s32 %v1347, 16
      %v1350 = vcvt.s32.f32 %v1348
      %v1351 = vcvt.s32.f32 %v1349
      %1352 = vmin.xlane.f32.xlu0 %v1351
      %v1353 = vpop.xlane.xlu0 %1352
      %vm1354 = vcmp.eq.f32.partialorder %v1351, %v1353
      %v1355 = vsel %vm1354, %v1350, inf
      %1356 = vmin.xlane.f32.xlu0 %v1355
      %v1357 = vpop.xlane.xlu0 %1356
      %v1358 = vcvt.f32.s32 %v1357
      %v1359 = vcvt.f32.s32 %v1353
      %v1360 = vshll.u32 %v1359, 16
      %v1361 = vadd.s32 %v1360, %v1358
      %vm1362 = vcmp.lt.s32.totalorder %v1332, %v1333
      %v1363 = vsel %vm1362, %v1332, %v1333
      %v1364 = vand.u32 %v1363, 65535
      %v1365 = vshra.s32 %v1363, 16
      %v1366 = vcvt.s32.f32 %v1364
      %v1367 = vcvt.s32.f32 %v1365
      %1368 = vmin.xlane.f32.xlu0 %v1367
      %v1369 = vpop.xlane.xlu0 %1368
      %vm1370 = vcmp.eq.f32.partialorder %v1367, %v1369
      %v1371 = vsel %vm1370, %v1366, inf
      %1372 = vmin.xlane.f32.xlu0 %v1371
      %v1373 = vpop.xlane.xlu0 %1372
      %v1374 = vcvt.f32.s32 %v1373
      %v1375 = vcvt.f32.s32 %v1369
      %v1376 = vshll.u32 %v1375, 16
      %v1377 = vadd.s32 %v1376, %v1374
      %vm1378 = vcmp.lt.s32.totalorder %v1334, %v1335
      %v1379 = vsel %vm1378, %v1334, %v1335
      %v1380 = vand.u32 %v1379, 65535
      %v1381 = vshra.s32 %v1379, 16
      %v1382 = vcvt.s32.f32 %v1380
      %v1383 = vcvt.s32.f32 %v1381
      %1384 = vmin.xlane.f32.xlu0 %v1383
      %v1385 = vpop.xlane.xlu0 %1384
      %vm1386 = vcmp.eq.f32.partialorder %v1383, %v1385
      %v1387 = vsel %vm1386, %v1382, inf
      %1388 = vmin.xlane.f32.xlu0 %v1387
      %v1389 = vpop.xlane.xlu0 %1388
      %v1390 = vcvt.f32.s32 %v1389
      %v1391 = vcvt.f32.s32 %v1385
      %v1392 = vshll.u32 %v1391, 16
      %v1393 = vadd.s32 %v1392, %v1390
      %vm1394 = vcmp.lt.s32.totalorder %v1336, %v1337
      %v1395 = vsel %vm1394, %v1336, %v1337
      %v1396 = vand.u32 %v1395, 65535
      %v1397 = vshra.s32 %v1395, 16
      %v1398 = vcvt.s32.f32 %v1396
      %v1399 = vcvt.s32.f32 %v1397
      %1400 = vmin.xlane.f32.xlu0 %v1399
      %v1401 = vpop.xlane.xlu0 %1400
      %vm1402 = vcmp.eq.f32.partialorder %v1399, %v1401
      %v1403 = vsel %vm1402, %v1398, inf
      %1404 = vmin.xlane.f32.xlu0 %v1403
      %v1405 = vpop.xlane.xlu0 %1404
      %v1406 = vcvt.f32.s32 %v1405
      %v1407 = vcvt.f32.s32 %v1401
      %v1408 = vshll.u32 %v1407, 16
      %v1409 = vadd.s32 %v1408, %v1406
      %vm1410 = vcmp.lt.s32.totalorder %v1338, %v1339
      %v1411 = vsel %vm1410, %v1338, %v1339
      %v1412 = vand.u32 %v1411, 65535
      %v1413 = vshra.s32 %v1411, 16
      %v1414 = vcvt.s32.f32 %v1412
      %v1415 = vcvt.s32.f32 %v1413
      %1416 = vmin.xlane.f32.xlu0 %v1415
      %v1417 = vpop.xlane.xlu0 %1416
      %vm1418 = vcmp.eq.f32.partialorder %v1415, %v1417
      %v1419 = vsel %vm1418, %v1414, inf
      %1420 = vmin.xlane.f32.xlu0 %v1419
      %v1421 = vpop.xlane.xlu0 %1420
      %v1422 = vcvt.f32.s32 %v1421
      %v1423 = vcvt.f32.s32 %v1417
      %v1424 = vshll.u32 %v1423, 16
      %v1425 = vadd.s32 %v1424, %v1422
      %vm1426 = vcmp.lt.s32.totalorder %v1340, %v1341
      %v1427 = vsel %vm1426, %v1340, %v1341
      %v1428 = vand.u32 %v1427, 65535
      %v1429 = vshra.s32 %v1427, 16
      %v1430 = vcvt.s32.f32 %v1428
      %v1431 = vcvt.s32.f32 %v1429
      %1432 = vmin.xlane.f32.xlu0 %v1431
      %v1433 = vpop.xlane.xlu0 %1432
      %vm1434 = vcmp.eq.f32.partialorder %v1431, %v1433
      %v1435 = vsel %vm1434, %v1430, inf
      %1436 = vmin.xlane.f32.xlu0 %v1435
      %v1437 = vpop.xlane.xlu0 %1436
      %v1438 = vcvt.f32.s32 %v1437
      %v1439 = vcvt.f32.s32 %v1433
      %v1440 = vshll.u32 %v1439, 16
      %v1441 = vadd.s32 %v1440, %v1438
      %vm1442 = vcmp.lt.s32.totalorder %v1342, %v1343
      %v1443 = vsel %vm1442, %v1342, %v1343
      %v1444 = vand.u32 %v1443, 65535
      %v1445 = vshra.s32 %v1443, 16
      %v1446 = vcvt.s32.f32 %v1444
      %v1447 = vcvt.s32.f32 %v1445
      %1448 = vmin.xlane.f32.xlu0 %v1447
      %v1449 = vpop.xlane.xlu0 %1448
      %vm1450 = vcmp.eq.f32.partialorder %v1447, %v1449
      %v1451 = vsel %vm1450, %v1446, inf
      %1452 = vmin.xlane.f32.xlu0 %v1451
      %v1453 = vpop.xlane.xlu0 %1452
      %v1454 = vcvt.f32.s32 %v1453
      %v1455 = vcvt.f32.s32 %v1449
      %v1456 = vshll.u32 %v1455, 16
      %v1457 = vadd.s32 %v1456, %v1454
      %vm1458 = vcmp.lt.s32.totalorder %v1344, %v1345
      %v1459 = vsel %vm1458, %v1344, %v1345
      %v1460 = vand.u32 %v1459, 65535
      %v1461 = vshra.s32 %v1459, 16
      %v1462 = vcvt.s32.f32 %v1460
      %v1463 = vcvt.s32.f32 %v1461
      %1464 = vmin.xlane.f32.xlu0 %v1463
      %v1465 = vpop.xlane.xlu0 %1464
      %vm1466 = vcmp.eq.f32.partialorder %v1463, %v1465
      %v1467 = vsel %vm1466, %v1462, inf
      %1468 = vmin.xlane.f32.xlu0 %v1467
      %v1469 = vpop.xlane.xlu0 %1468
      %v1470 = vcvt.f32.s32 %v1469
      %v1471 = vcvt.f32.s32 %v1465
      %v1472 = vshll.u32 %v1471, 16
      %v1473 = vadd.s32 %v1472, %v1470
      %v1474 = vcvt.s32.f32 %v1361
      %v1475 = vcvt.s32.f32 %v1377
      %v1476 = vcvt.s32.f32 %v1393
      %v1477 = vcvt.s32.f32 %v1409
      %v1478 = vcvt.s32.f32 %v1425
      %v1479 = vcvt.s32.f32 %v1441
      %v1480 = vcvt.s32.f32 %v1457
      %v1481 = vcvt.s32.f32 %v1473
      %vm1482 = vcmp.eq.s32.totalorder %v1064, %v1361
      %vm1483 = vcmp.eq.s32.totalorder %v1065, %v1361
      %vm1484 = vcmp.eq.s32.totalorder %v1064, %v1377
      %vm1485 = vcmp.eq.s32.totalorder %v1065, %v1377
      %vm1486 = vcmp.eq.s32.totalorder %v1064, %v1393
      %vm1487 = vcmp.eq.s32.totalorder %v1065, %v1393
      %vm1488 = vcmp.eq.s32.totalorder %v1064, %v1409
      %vm1489 = vcmp.eq.s32.totalorder %v1065, %v1409
      %vm1490 = vcmp.eq.s32.totalorder %v1064, %v1425
      %vm1491 = vcmp.eq.s32.totalorder %v1065, %v1425
      %vm1492 = vcmp.eq.s32.totalorder %v1064, %v1441
      %vm1493 = vcmp.eq.s32.totalorder %v1065, %v1441
      %vm1494 = vcmp.eq.s32.totalorder %v1064, %v1457
      %vm1495 = vcmp.eq.s32.totalorder %v1065, %v1457
      %vm1496 = vcmp.eq.s32.totalorder %v1064, %v1473
      %vm1497 = vcmp.eq.s32.totalorder %v1065, %v1473
      %v1498 = vsel %vm1482, -inf, %v1274
      %v1499 = vsel %vm1483, -inf, %v1275
      %v1500 = vsel %vm1484, -inf, %v1276
      %v1501 = vsel %vm1485, -inf, %v1277
      %v1502 = vsel %vm1486, -inf, %v1278
      %v1503 = vsel %vm1487, -inf, %v1279
      %v1504 = vsel %vm1488, -inf, %v1280
      %v1505 = vsel %vm1489, -inf, %v1281
      %v1506 = vsel %vm1490, -inf, %v1282
      %v1507 = vsel %vm1491, -inf, %v1283
      %v1508 = vsel %vm1492, -inf, %v1284
      %v1509 = vsel %vm1493, -inf, %v1285
      %v1510 = vsel %vm1494, -inf, %v1286
      %v1511 = vsel %vm1495, -inf, %v1287
      %v1512 = vsel %vm1496, -inf, %v1288
      %v1513 = vsel %vm1497, -inf, %v1289
      %v1514 = vmax.f32 %v1498, %v1499
      %1515 = vmax.xlane.f32.xlu0 %v1514
      %v1516 = vpop.xlane.xlu0 %1515
      %v1517 = vmax.f32 %v1500, %v1501
      %1518 = vmax.xlane.f32.xlu0 %v1517
      %v1519 = vpop.xlane.xlu0 %1518
      %v1520 = vmax.f32 %v1502, %v1503
      %1521 = vmax.xlane.f32.xlu0 %v1520
      %v1522 = vpop.xlane.xlu0 %1521
      %v1523 = vmax.f32 %v1504, %v1505
      %1524 = vmax.xlane.f32.xlu0 %v1523
      %v1525 = vpop.xlane.xlu0 %1524
      %v1526 = vmax.f32 %v1506, %v1507
      %1527 = vmax.xlane.f32.xlu0 %v1526
      %v1528 = vpop.xlane.xlu0 %1527
      %v1529 = vmax.f32 %v1508, %v1509
      %1530 = vmax.xlane.f32.xlu0 %v1529
      %v1531 = vpop.xlane.xlu0 %1530
      %v1532 = vmax.f32 %v1510, %v1511
      %1533 = vmax.xlane.f32.xlu0 %v1532
      %v1534 = vpop.xlane.xlu0 %1533
      %v1535 = vmax.f32 %v1512, %v1513
      %1536 = vmax.xlane.f32.xlu0 %v1535
      %v1537 = vpop.xlane.xlu0 %1536
      %vm1538 = vcmp.eq.f32.partialorder %v1498, %v1516
      %vm1539 = vcmp.eq.f32.partialorder %v1499, %v1516
      %vm1540 = vcmp.eq.f32.partialorder %v1500, %v1519
      %vm1541 = vcmp.eq.f32.partialorder %v1501, %v1519
      %vm1542 = vcmp.eq.f32.partialorder %v1502, %v1522
      %vm1543 = vcmp.eq.f32.partialorder %v1503, %v1522
      %vm1544 = vcmp.eq.f32.partialorder %v1504, %v1525
      %vm1545 = vcmp.eq.f32.partialorder %v1505, %v1525
      %vm1546 = vcmp.eq.f32.partialorder %v1506, %v1528
      %vm1547 = vcmp.eq.f32.partialorder %v1507, %v1528
      %vm1548 = vcmp.eq.f32.partialorder %v1508, %v1531
      %vm1549 = vcmp.eq.f32.partialorder %v1509, %v1531
      %vm1550 = vcmp.eq.f32.partialorder %v1510, %v1534
      %vm1551 = vcmp.eq.f32.partialorder %v1511, %v1534
      %vm1552 = vcmp.eq.f32.partialorder %v1512, %v1537
      %vm1553 = vcmp.eq.f32.partialorder %v1513, %v1537
      %v1554 = vsel %vm1538, %v1064, 256
      %v1555 = vsel %vm1539, %v1065, 256
      %v1556 = vsel %vm1540, %v1064, 256
      %v1557 = vsel %vm1541, %v1065, 256
      %v1558 = vsel %vm1542, %v1064, 256
      %v1559 = vsel %vm1543, %v1065, 256
      %v1560 = vsel %vm1544, %v1064, 256
      %v1561 = vsel %vm1545, %v1065, 256
      %v1562 = vsel %vm1546, %v1064, 256
      %v1563 = vsel %vm1547, %v1065, 256
      %v1564 = vsel %vm1548, %v1064, 256
      %v1565 = vsel %vm1549, %v1065, 256
      %v1566 = vsel %vm1550, %v1064, 256
      %v1567 = vsel %vm1551, %v1065, 256
      %v1568 = vsel %vm1552, %v1064, 256
      %v1569 = vsel %vm1553, %v1065, 256
      %vm1570 = vcmp.lt.s32.totalorder %v1554, %v1555
      %v1571 = vsel %vm1570, %v1554, %v1555
      %v1572 = vand.u32 %v1571, 65535
      %v1573 = vshra.s32 %v1571, 16
      %v1574 = vcvt.s32.f32 %v1572
      %v1575 = vcvt.s32.f32 %v1573
      %1576 = vmin.xlane.f32.xlu0 %v1575
      %v1577 = vpop.xlane.xlu0 %1576
      %vm1578 = vcmp.eq.f32.partialorder %v1575, %v1577
      %v1579 = vsel %vm1578, %v1574, inf
      %1580 = vmin.xlane.f32.xlu0 %v1579
      %v1581 = vpop.xlane.xlu0 %1580
      %v1582 = vcvt.f32.s32 %v1581
      %v1583 = vcvt.f32.s32 %v1577
      %v1584 = vshll.u32 %v1583, 16
      %v1585 = vadd.s32 %v1584, %v1582
      %vm1586 = vcmp.lt.s32.totalorder %v1556, %v1557
      %v1587 = vsel %vm1586, %v1556, %v1557
      %v1588 = vand.u32 %v1587, 65535
      %v1589 = vshra.s32 %v1587, 16
      %v1590 = vcvt.s32.f32 %v1588
      %v1591 = vcvt.s32.f32 %v1589
      %1592 = vmin.xlane.f32.xlu0 %v1591
      %v1593 = vpop.xlane.xlu0 %1592
      %vm1594 = vcmp.eq.f32.partialorder %v1591, %v1593
      %v1595 = vsel %vm1594, %v1590, inf
      %1596 = vmin.xlane.f32.xlu0 %v1595
      %v1597 = vpop.xlane.xlu0 %1596
      %v1598 = vcvt.f32.s32 %v1597
      %v1599 = vcvt.f32.s32 %v1593
      %v1600 = vshll.u32 %v1599, 16
      %v1601 = vadd.s32 %v1600, %v1598
      %vm1602 = vcmp.lt.s32.totalorder %v1558, %v1559
      %v1603 = vsel %vm1602, %v1558, %v1559
      %v1604 = vand.u32 %v1603, 65535
      %v1605 = vshra.s32 %v1603, 16
      %v1606 = vcvt.s32.f32 %v1604
      %v1607 = vcvt.s32.f32 %v1605
      %1608 = vmin.xlane.f32.xlu0 %v1607
      %v1609 = vpop.xlane.xlu0 %1608
      %vm1610 = vcmp.eq.f32.partialorder %v1607, %v1609
      %v1611 = vsel %vm1610, %v1606, inf
      %1612 = vmin.xlane.f32.xlu0 %v1611
      %v1613 = vpop.xlane.xlu0 %1612
      %v1614 = vcvt.f32.s32 %v1613
      %v1615 = vcvt.f32.s32 %v1609
      %v1616 = vshll.u32 %v1615, 16
      %v1617 = vadd.s32 %v1616, %v1614
      %vm1618 = vcmp.lt.s32.totalorder %v1560, %v1561
      %v1619 = vsel %vm1618, %v1560, %v1561
      %v1620 = vand.u32 %v1619, 65535
      %v1621 = vshra.s32 %v1619, 16
      %v1622 = vcvt.s32.f32 %v1620
      %v1623 = vcvt.s32.f32 %v1621
      %1624 = vmin.xlane.f32.xlu0 %v1623
      %v1625 = vpop.xlane.xlu0 %1624
      %vm1626 = vcmp.eq.f32.partialorder %v1623, %v1625
      %v1627 = vsel %vm1626, %v1622, inf
      %1628 = vmin.xlane.f32.xlu0 %v1627
      %v1629 = vpop.xlane.xlu0 %1628
      %v1630 = vcvt.f32.s32 %v1629
      %v1631 = vcvt.f32.s32 %v1625
      %v1632 = vshll.u32 %v1631, 16
      %v1633 = vadd.s32 %v1632, %v1630
      %vm1634 = vcmp.lt.s32.totalorder %v1562, %v1563
      %v1635 = vsel %vm1634, %v1562, %v1563
      %v1636 = vand.u32 %v1635, 65535
      %v1637 = vshra.s32 %v1635, 16
      %v1638 = vcvt.s32.f32 %v1636
      %v1639 = vcvt.s32.f32 %v1637
      %1640 = vmin.xlane.f32.xlu0 %v1639
      %v1641 = vpop.xlane.xlu0 %1640
      %vm1642 = vcmp.eq.f32.partialorder %v1639, %v1641
      %v1643 = vsel %vm1642, %v1638, inf
      %1644 = vmin.xlane.f32.xlu0 %v1643
      %v1645 = vpop.xlane.xlu0 %1644
      %v1646 = vcvt.f32.s32 %v1645
      %v1647 = vcvt.f32.s32 %v1641
      %v1648 = vshll.u32 %v1647, 16
      %v1649 = vadd.s32 %v1648, %v1646
      %vm1650 = vcmp.lt.s32.totalorder %v1564, %v1565
      %v1651 = vsel %vm1650, %v1564, %v1565
      %v1652 = vand.u32 %v1651, 65535
      %v1653 = vshra.s32 %v1651, 16
      %v1654 = vcvt.s32.f32 %v1652
      %v1655 = vcvt.s32.f32 %v1653
      %1656 = vmin.xlane.f32.xlu0 %v1655
      %v1657 = vpop.xlane.xlu0 %1656
      %vm1658 = vcmp.eq.f32.partialorder %v1655, %v1657
      %v1659 = vsel %vm1658, %v1654, inf
      %1660 = vmin.xlane.f32.xlu0 %v1659
      %v1661 = vpop.xlane.xlu0 %1660
      %v1662 = vcvt.f32.s32 %v1661
      %v1663 = vcvt.f32.s32 %v1657
      %v1664 = vshll.u32 %v1663, 16
      %v1665 = vadd.s32 %v1664, %v1662
      %vm1666 = vcmp.lt.s32.totalorder %v1566, %v1567
      %v1667 = vsel %vm1666, %v1566, %v1567
      %v1668 = vand.u32 %v1667, 65535
      %v1669 = vshra.s32 %v1667, 16
      %v1670 = vcvt.s32.f32 %v1668
      %v1671 = vcvt.s32.f32 %v1669
      %1672 = vmin.xlane.f32.xlu0 %v1671
      %v1673 = vpop.xlane.xlu0 %1672
      %vm1674 = vcmp.eq.f32.partialorder %v1671, %v1673
      %v1675 = vsel %vm1674, %v1670, inf
      %1676 = vmin.xlane.f32.xlu0 %v1675
      %v1677 = vpop.xlane.xlu0 %1676
      %v1678 = vcvt.f32.s32 %v1677
      %v1679 = vcvt.f32.s32 %v1673
      %v1680 = vshll.u32 %v1679, 16
      %v1681 = vadd.s32 %v1680, %v1678
      %vm1682 = vcmp.lt.s32.totalorder %v1568, %v1569
      %v1683 = vsel %vm1682, %v1568, %v1569
      %v1684 = vand.u32 %v1683, 65535
      %v1685 = vshra.s32 %v1683, 16
      %v1686 = vcvt.s32.f32 %v1684
      %v1687 = vcvt.s32.f32 %v1685
      %1688 = vmin.xlane.f32.xlu0 %v1687
      %v1689 = vpop.xlane.xlu0 %1688
      %vm1690 = vcmp.eq.f32.partialorder %v1687, %v1689
      %v1691 = vsel %vm1690, %v1686, inf
      %1692 = vmin.xlane.f32.xlu0 %v1691
      %v1693 = vpop.xlane.xlu0 %1692
      %v1694 = vcvt.f32.s32 %v1693
      %v1695 = vcvt.f32.s32 %v1689
      %v1696 = vshll.u32 %v1695, 16
      %v1697 = vadd.s32 %v1696, %v1694
      %v1698 = vcvt.s32.f32 %v1585
      %v1699 = vcvt.s32.f32 %v1601
      %v1700 = vcvt.s32.f32 %v1617
      %v1701 = vcvt.s32.f32 %v1633
      %v1702 = vcvt.s32.f32 %v1649
      %v1703 = vcvt.s32.f32 %v1665
      %v1704 = vcvt.s32.f32 %v1681
      %v1705 = vcvt.s32.f32 %v1697
      %vm1706 = vcmp.eq.s32.totalorder %v1064, %v1585
      %vm1707 = vcmp.eq.s32.totalorder %v1065, %v1585
      %vm1708 = vcmp.eq.s32.totalorder %v1064, %v1601
      %vm1709 = vcmp.eq.s32.totalorder %v1065, %v1601
      %vm1710 = vcmp.eq.s32.totalorder %v1064, %v1617
      %vm1711 = vcmp.eq.s32.totalorder %v1065, %v1617
      %vm1712 = vcmp.eq.s32.totalorder %v1064, %v1633
      %vm1713 = vcmp.eq.s32.totalorder %v1065, %v1633
      %vm1714 = vcmp.eq.s32.totalorder %v1064, %v1649
      %vm1715 = vcmp.eq.s32.totalorder %v1065, %v1649
      %vm1716 = vcmp.eq.s32.totalorder %v1064, %v1665
      %vm1717 = vcmp.eq.s32.totalorder %v1065, %v1665
      %vm1718 = vcmp.eq.s32.totalorder %v1064, %v1681
      %vm1719 = vcmp.eq.s32.totalorder %v1065, %v1681
      %vm1720 = vcmp.eq.s32.totalorder %v1064, %v1697
      %vm1721 = vcmp.eq.s32.totalorder %v1065, %v1697
      %v1722 = vsel %vm1706, -inf, %v1498
      %v1723 = vsel %vm1707, -inf, %v1499
      %v1724 = vsel %vm1708, -inf, %v1500
      %v1725 = vsel %vm1709, -inf, %v1501
      %v1726 = vsel %vm1710, -inf, %v1502
      %v1727 = vsel %vm1711, -inf, %v1503
      %v1728 = vsel %vm1712, -inf, %v1504
      %v1729 = vsel %vm1713, -inf, %v1505
      %v1730 = vsel %vm1714, -inf, %v1506
      %v1731 = vsel %vm1715, -inf, %v1507
      %v1732 = vsel %vm1716, -inf, %v1508
      %v1733 = vsel %vm1717, -inf, %v1509
      %v1734 = vsel %vm1718, -inf, %v1510
      %v1735 = vsel %vm1719, -inf, %v1511
      %v1736 = vsel %vm1720, -inf, %v1512
      %v1737 = vsel %vm1721, -inf, %v1513
      %v1738 = vmax.f32 %v1722, %v1723
      %1739 = vmax.xlane.f32.xlu0 %v1738
      %v1740 = vpop.xlane.xlu0 %1739
      %v1741 = vmax.f32 %v1724, %v1725
      %1742 = vmax.xlane.f32.xlu0 %v1741
      %v1743 = vpop.xlane.xlu0 %1742
      %v1744 = vmax.f32 %v1726, %v1727
      %1745 = vmax.xlane.f32.xlu0 %v1744
      %v1746 = vpop.xlane.xlu0 %1745
      %v1747 = vmax.f32 %v1728, %v1729
      %1748 = vmax.xlane.f32.xlu0 %v1747
      %v1749 = vpop.xlane.xlu0 %1748
      %v1750 = vmax.f32 %v1730, %v1731
      %1751 = vmax.xlane.f32.xlu0 %v1750
      %v1752 = vpop.xlane.xlu0 %1751
      %v1753 = vmax.f32 %v1732, %v1733
      %1754 = vmax.xlane.f32.xlu0 %v1753
      %v1755 = vpop.xlane.xlu0 %1754
      %v1756 = vmax.f32 %v1734, %v1735
      %1757 = vmax.xlane.f32.xlu0 %v1756
      %v1758 = vpop.xlane.xlu0 %1757
      %v1759 = vmax.f32 %v1736, %v1737
      %1760 = vmax.xlane.f32.xlu0 %v1759
      %v1761 = vpop.xlane.xlu0 %1760
      %vm1762 = vcmp.eq.f32.partialorder %v1722, %v1740
      %vm1763 = vcmp.eq.f32.partialorder %v1723, %v1740
      %vm1764 = vcmp.eq.f32.partialorder %v1724, %v1743
      %vm1765 = vcmp.eq.f32.partialorder %v1725, %v1743
      %vm1766 = vcmp.eq.f32.partialorder %v1726, %v1746
      %vm1767 = vcmp.eq.f32.partialorder %v1727, %v1746
      %vm1768 = vcmp.eq.f32.partialorder %v1728, %v1749
      %vm1769 = vcmp.eq.f32.partialorder %v1729, %v1749
      %vm1770 = vcmp.eq.f32.partialorder %v1730, %v1752
      %vm1771 = vcmp.eq.f32.partialorder %v1731, %v1752
      %vm1772 = vcmp.eq.f32.partialorder %v1732, %v1755
      %vm1773 = vcmp.eq.f32.partialorder %v1733, %v1755
      %vm1774 = vcmp.eq.f32.partialorder %v1734, %v1758
      %vm1775 = vcmp.eq.f32.partialorder %v1735, %v1758
      %vm1776 = vcmp.eq.f32.partialorder %v1736, %v1761
      %vm1777 = vcmp.eq.f32.partialorder %v1737, %v1761
      %v1778 = vsel %vm1762, %v1064, 256
      %v1779 = vsel %vm1763, %v1065, 256
      %v1780 = vsel %vm1764, %v1064, 256
      %v1781 = vsel %vm1765, %v1065, 256
      %v1782 = vsel %vm1766, %v1064, 256
      %v1783 = vsel %vm1767, %v1065, 256
      %v1784 = vsel %vm1768, %v1064, 256
      %v1785 = vsel %vm1769, %v1065, 256
      %v1786 = vsel %vm1770, %v1064, 256
      %v1787 = vsel %vm1771, %v1065, 256
      %v1788 = vsel %vm1772, %v1064, 256
      %v1789 = vsel %vm1773, %v1065, 256
      %v1790 = vsel %vm1774, %v1064, 256
      %v1791 = vsel %vm1775, %v1065, 256
      %v1792 = vsel %vm1776, %v1064, 256
      %v1793 = vsel %vm1777, %v1065, 256
      %vm1794 = vcmp.lt.s32.totalorder %v1778, %v1779
      %v1795 = vsel %vm1794, %v1778, %v1779
      %v1796 = vand.u32 %v1795, 65535
      %v1797 = vshra.s32 %v1795, 16
      %v1798 = vcvt.s32.f32 %v1796
      %v1799 = vcvt.s32.f32 %v1797
      %1800 = vmin.xlane.f32.xlu0 %v1799
      %v1801 = vpop.xlane.xlu0 %1800
      %vm1802 = vcmp.eq.f32.partialorder %v1799, %v1801
      %v1803 = vsel %vm1802, %v1798, inf
      %1804 = vmin.xlane.f32.xlu0 %v1803
      %v1805 = vpop.xlane.xlu0 %1804
      %v1806 = vcvt.f32.s32 %v1805
      %v1807 = vcvt.f32.s32 %v1801
      %v1808 = vshll.u32 %v1807, 16
      %v1809 = vadd.s32 %v1808, %v1806
      %vm1810 = vcmp.lt.s32.totalorder %v1780, %v1781
      %v1811 = vsel %vm1810, %v1780, %v1781
      %v1812 = vand.u32 %v1811, 65535
      %v1813 = vshra.s32 %v1811, 16
      %v1814 = vcvt.s32.f32 %v1812
      %v1815 = vcvt.s32.f32 %v1813
      %1816 = vmin.xlane.f32.xlu0 %v1815
      %v1817 = vpop.xlane.xlu0 %1816
      %vm1818 = vcmp.eq.f32.partialorder %v1815, %v1817
      %v1819 = vsel %vm1818, %v1814, inf
      %1820 = vmin.xlane.f32.xlu0 %v1819
      %v1821 = vpop.xlane.xlu0 %1820
      %v1822 = vcvt.f32.s32 %v1821
      %v1823 = vcvt.f32.s32 %v1817
      %v1824 = vshll.u32 %v1823, 16
      %v1825 = vadd.s32 %v1824, %v1822
      %vm1826 = vcmp.lt.s32.totalorder %v1782, %v1783
      %v1827 = vsel %vm1826, %v1782, %v1783
      %v1828 = vand.u32 %v1827, 65535
      %v1829 = vshra.s32 %v1827, 16
      %v1830 = vcvt.s32.f32 %v1828
      %v1831 = vcvt.s32.f32 %v1829
      %1832 = vmin.xlane.f32.xlu0 %v1831
      %v1833 = vpop.xlane.xlu0 %1832
      %vm1834 = vcmp.eq.f32.partialorder %v1831, %v1833
      %v1835 = vsel %vm1834, %v1830, inf
      %1836 = vmin.xlane.f32.xlu0 %v1835
      %v1837 = vpop.xlane.xlu0 %1836
      %v1838 = vcvt.f32.s32 %v1837
      %v1839 = vcvt.f32.s32 %v1833
      %v1840 = vshll.u32 %v1839, 16
      %v1841 = vadd.s32 %v1840, %v1838
      %vm1842 = vcmp.lt.s32.totalorder %v1784, %v1785
      %v1843 = vsel %vm1842, %v1784, %v1785
      %v1844 = vand.u32 %v1843, 65535
      %v1845 = vshra.s32 %v1843, 16
      %v1846 = vcvt.s32.f32 %v1844
      %v1847 = vcvt.s32.f32 %v1845
      %1848 = vmin.xlane.f32.xlu0 %v1847
      %v1849 = vpop.xlane.xlu0 %1848
      %vm1850 = vcmp.eq.f32.partialorder %v1847, %v1849
      %v1851 = vsel %vm1850, %v1846, inf
      %1852 = vmin.xlane.f32.xlu0 %v1851
      %v1853 = vpop.xlane.xlu0 %1852
      %v1854 = vcvt.f32.s32 %v1853
      %v1855 = vcvt.f32.s32 %v1849
      %v1856 = vshll.u32 %v1855, 16
      %v1857 = vadd.s32 %v1856, %v1854
      %vm1858 = vcmp.lt.s32.totalorder %v1786, %v1787
      %v1859 = vsel %vm1858, %v1786, %v1787
      %v1860 = vand.u32 %v1859, 65535
      %v1861 = vshra.s32 %v1859, 16
      %v1862 = vcvt.s32.f32 %v1860
      %v1863 = vcvt.s32.f32 %v1861
      %1864 = vmin.xlane.f32.xlu0 %v1863
      %v1865 = vpop.xlane.xlu0 %1864
      %vm1866 = vcmp.eq.f32.partialorder %v1863, %v1865
      %v1867 = vsel %vm1866, %v1862, inf
      %1868 = vmin.xlane.f32.xlu0 %v1867
      %v1869 = vpop.xlane.xlu0 %1868
      %v1870 = vcvt.f32.s32 %v1869
      %v1871 = vcvt.f32.s32 %v1865
      %v1872 = vshll.u32 %v1871, 16
      %v1873 = vadd.s32 %v1872, %v1870
      %vm1874 = vcmp.lt.s32.totalorder %v1788, %v1789
      %v1875 = vsel %vm1874, %v1788, %v1789
      %v1876 = vand.u32 %v1875, 65535
      %v1877 = vshra.s32 %v1875, 16
      %v1878 = vcvt.s32.f32 %v1876
      %v1879 = vcvt.s32.f32 %v1877
      %1880 = vmin.xlane.f32.xlu0 %v1879
      %v1881 = vpop.xlane.xlu0 %1880
      %vm1882 = vcmp.eq.f32.partialorder %v1879, %v1881
      %v1883 = vsel %vm1882, %v1878, inf
      %1884 = vmin.xlane.f32.xlu0 %v1883
      %v1885 = vpop.xlane.xlu0 %1884
      %v1886 = vcvt.f32.s32 %v1885
      %v1887 = vcvt.f32.s32 %v1881
      %v1888 = vshll.u32 %v1887, 16
      %v1889 = vadd.s32 %v1888, %v1886
      %vm1890 = vcmp.lt.s32.totalorder %v1790, %v1791
      %v1891 = vsel %vm1890, %v1790, %v1791
      %v1892 = vand.u32 %v1891, 65535
      %v1893 = vshra.s32 %v1891, 16
      %v1894 = vcvt.s32.f32 %v1892
      %v1895 = vcvt.s32.f32 %v1893
      %1896 = vmin.xlane.f32.xlu0 %v1895
      %v1897 = vpop.xlane.xlu0 %1896
      %vm1898 = vcmp.eq.f32.partialorder %v1895, %v1897
      %v1899 = vsel %vm1898, %v1894, inf
      %1900 = vmin.xlane.f32.xlu0 %v1899
      %v1901 = vpop.xlane.xlu0 %1900
      %v1902 = vcvt.f32.s32 %v1901
      %v1903 = vcvt.f32.s32 %v1897
      %v1904 = vshll.u32 %v1903, 16
      %v1905 = vadd.s32 %v1904, %v1902
      %vm1906 = vcmp.lt.s32.totalorder %v1792, %v1793
      %v1907 = vsel %vm1906, %v1792, %v1793
      %v1908 = vand.u32 %v1907, 65535
      %v1909 = vshra.s32 %v1907, 16
      %v1910 = vcvt.s32.f32 %v1908
      %v1911 = vcvt.s32.f32 %v1909
      %1912 = vmin.xlane.f32.xlu0 %v1911
      %v1913 = vpop.xlane.xlu0 %1912
      %vm1914 = vcmp.eq.f32.partialorder %v1911, %v1913
      %v1915 = vsel %vm1914, %v1910, inf
      %1916 = vmin.xlane.f32.xlu0 %v1915
      %v1917 = vpop.xlane.xlu0 %1916
      %v1918 = vcvt.f32.s32 %v1917
      %v1919 = vcvt.f32.s32 %v1913
      %v1920 = vshll.u32 %v1919, 16
      %v1921 = vadd.s32 %v1920, %v1918
      %v1922 = vcvt.s32.f32 %v1809
      %v1923 = vcvt.s32.f32 %v1825
      %v1924 = vcvt.s32.f32 %v1841
      %v1925 = vcvt.s32.f32 %v1857
      %v1926 = vcvt.s32.f32 %v1873
      %v1927 = vcvt.s32.f32 %v1889
      %v1928 = vcvt.s32.f32 %v1905
      %v1929 = vcvt.s32.f32 %v1921
      %vm1930 = vcmp.eq.s32.totalorder %v1064, %v1809
      %vm1931 = vcmp.eq.s32.totalorder %v1065, %v1809
      %vm1932 = vcmp.eq.s32.totalorder %v1064, %v1825
      %vm1933 = vcmp.eq.s32.totalorder %v1065, %v1825
      %vm1934 = vcmp.eq.s32.totalorder %v1064, %v1841
      %vm1935 = vcmp.eq.s32.totalorder %v1065, %v1841
      %vm1936 = vcmp.eq.s32.totalorder %v1064, %v1857
      %vm1937 = vcmp.eq.s32.totalorder %v1065, %v1857
      %vm1938 = vcmp.eq.s32.totalorder %v1064, %v1873
      %vm1939 = vcmp.eq.s32.totalorder %v1065, %v1873
      %vm1940 = vcmp.eq.s32.totalorder %v1064, %v1889
      %vm1941 = vcmp.eq.s32.totalorder %v1065, %v1889
      %vm1942 = vcmp.eq.s32.totalorder %v1064, %v1905
      %vm1943 = vcmp.eq.s32.totalorder %v1065, %v1905
      %vm1944 = vcmp.eq.s32.totalorder %v1064, %v1921
      %vm1945 = vcmp.eq.s32.totalorder %v1065, %v1921
      %v1946 = vsel %vm1930, -inf, %v1722
      %v1947 = vsel %vm1931, -inf, %v1723
      %v1948 = vsel %vm1932, -inf, %v1724
      %v1949 = vsel %vm1933, -inf, %v1725
      %v1950 = vsel %vm1934, -inf, %v1726
      %v1951 = vsel %vm1935, -inf, %v1727
      %v1952 = vsel %vm1936, -inf, %v1728
      %v1953 = vsel %vm1937, -inf, %v1729
      %v1954 = vsel %vm1938, -inf, %v1730
      %v1955 = vsel %vm1939, -inf, %v1731
      %v1956 = vsel %vm1940, -inf, %v1732
      %v1957 = vsel %vm1941, -inf, %v1733
      %v1958 = vsel %vm1942, -inf, %v1734
      %v1959 = vsel %vm1943, -inf, %v1735
      %v1960 = vsel %vm1944, -inf, %v1736
      %v1961 = vsel %vm1945, -inf, %v1737
      %v1962 = vmax.f32 %v1946, %v1947
      %1963 = vmax.xlane.f32.xlu0 %v1962
      %v1964 = vpop.xlane.xlu0 %1963
      %v1965 = vmax.f32 %v1948, %v1949
      %1966 = vmax.xlane.f32.xlu0 %v1965
      %v1967 = vpop.xlane.xlu0 %1966
      %v1968 = vmax.f32 %v1950, %v1951
      %1969 = vmax.xlane.f32.xlu0 %v1968
      %v1970 = vpop.xlane.xlu0 %1969
      %v1971 = vmax.f32 %v1952, %v1953
      %1972 = vmax.xlane.f32.xlu0 %v1971
      %v1973 = vpop.xlane.xlu0 %1972
      %v1974 = vmax.f32 %v1954, %v1955
      %1975 = vmax.xlane.f32.xlu0 %v1974
      %v1976 = vpop.xlane.xlu0 %1975
      %v1977 = vmax.f32 %v1956, %v1957
      %1978 = vmax.xlane.f32.xlu0 %v1977
      %v1979 = vpop.xlane.xlu0 %1978
      %v1980 = vmax.f32 %v1958, %v1959
      %1981 = vmax.xlane.f32.xlu0 %v1980
      %v1982 = vpop.xlane.xlu0 %1981
      %v1983 = vmax.f32 %v1960, %v1961
      %1984 = vmax.xlane.f32.xlu0 %v1983
      %v1985 = vpop.xlane.xlu0 %1984
      %vm1986 = vcmp.eq.f32.partialorder %v1946, %v1964
      %vm1987 = vcmp.eq.f32.partialorder %v1947, %v1964
      %vm1988 = vcmp.eq.f32.partialorder %v1948, %v1967
      %vm1989 = vcmp.eq.f32.partialorder %v1949, %v1967
      %vm1990 = vcmp.eq.f32.partialorder %v1950, %v1970
      %vm1991 = vcmp.eq.f32.partialorder %v1951, %v1970
      %vm1992 = vcmp.eq.f32.partialorder %v1952, %v1973
      %vm1993 = vcmp.eq.f32.partialorder %v1953, %v1973
      %vm1994 = vcmp.eq.f32.partialorder %v1954, %v1976
      %vm1995 = vcmp.eq.f32.partialorder %v1955, %v1976
      %vm1996 = vcmp.eq.f32.partialorder %v1956, %v1979
      %vm1997 = vcmp.eq.f32.partialorder %v1957, %v1979
      %vm1998 = vcmp.eq.f32.partialorder %v1958, %v1982
      %vm1999 = vcmp.eq.f32.partialorder %v1959, %v1982
      %vm2000 = vcmp.eq.f32.partialorder %v1960, %v1985
      %vm2001 = vcmp.eq.f32.partialorder %v1961, %v1985
      %v2002 = vsel %vm1986, %v1064, 256
      %v2003 = vsel %vm1987, %v1065, 256
      %v2004 = vsel %vm1988, %v1064, 256
      %v2005 = vsel %vm1989, %v1065, 256
      %v2006 = vsel %vm1990, %v1064, 256
      %v2007 = vsel %vm1991, %v1065, 256
      %v2008 = vsel %vm1992, %v1064, 256
      %v2009 = vsel %vm1993, %v1065, 256
      %v2010 = vsel %vm1994, %v1064, 256
      %v2011 = vsel %vm1995, %v1065, 256
      %v2012 = vsel %vm1996, %v1064, 256
      %v2013 = vsel %vm1997, %v1065, 256
      %v2014 = vsel %vm1998, %v1064, 256
      %v2015 = vsel %vm1999, %v1065, 256
      %v2016 = vsel %vm2000, %v1064, 256
      %v2017 = vsel %vm2001, %v1065, 256
      %vm2018 = vcmp.lt.s32.totalorder %v2002, %v2003
      %v2019 = vsel %vm2018, %v2002, %v2003
      %v2020 = vand.u32 %v2019, 65535
      %v2021 = vshra.s32 %v2019, 16
      %v2022 = vcvt.s32.f32 %v2020
      %v2023 = vcvt.s32.f32 %v2021
      %2024 = vmin.xlane.f32.xlu0 %v2023
      %v2025 = vpop.xlane.xlu0 %2024
      %vm2026 = vcmp.eq.f32.partialorder %v2023, %v2025
      %v2027 = vsel %vm2026, %v2022, inf
      %2028 = vmin.xlane.f32.xlu0 %v2027
      %v2029 = vpop.xlane.xlu0 %2028
      %v2030 = vcvt.f32.s32 %v2029
      %v2031 = vcvt.f32.s32 %v2025
      %v2032 = vshll.u32 %v2031, 16
      %v2033 = vadd.s32 %v2032, %v2030
      %vm2034 = vcmp.lt.s32.totalorder %v2004, %v2005
      %v2035 = vsel %vm2034, %v2004, %v2005
      %v2036 = vand.u32 %v2035, 65535
      %v2037 = vshra.s32 %v2035, 16
      %v2038 = vcvt.s32.f32 %v2036
      %v2039 = vcvt.s32.f32 %v2037
      %2040 = vmin.xlane.f32.xlu0 %v2039
      %v2041 = vpop.xlane.xlu0 %2040
      %vm2042 = vcmp.eq.f32.partialorder %v2039, %v2041
      %v2043 = vsel %vm2042, %v2038, inf
      %2044 = vmin.xlane.f32.xlu0 %v2043
      %v2045 = vpop.xlane.xlu0 %2044
      %v2046 = vcvt.f32.s32 %v2045
      %v2047 = vcvt.f32.s32 %v2041
      %v2048 = vshll.u32 %v2047, 16
      %v2049 = vadd.s32 %v2048, %v2046
      %vm2050 = vcmp.lt.s32.totalorder %v2006, %v2007
      %v2051 = vsel %vm2050, %v2006, %v2007
      %v2052 = vand.u32 %v2051, 65535
      %v2053 = vshra.s32 %v2051, 16
      %v2054 = vcvt.s32.f32 %v2052
      %v2055 = vcvt.s32.f32 %v2053
      %2056 = vmin.xlane.f32.xlu0 %v2055
      %v2057 = vpop.xlane.xlu0 %2056
      %vm2058 = vcmp.eq.f32.partialorder %v2055, %v2057
      %v2059 = vsel %vm2058, %v2054, inf
      %2060 = vmin.xlane.f32.xlu0 %v2059
      %v2061 = vpop.xlane.xlu0 %2060
      %v2062 = vcvt.f32.s32 %v2061
      %v2063 = vcvt.f32.s32 %v2057
      %v2064 = vshll.u32 %v2063, 16
      %v2065 = vadd.s32 %v2064, %v2062
      %vm2066 = vcmp.lt.s32.totalorder %v2008, %v2009
      %v2067 = vsel %vm2066, %v2008, %v2009
      %v2068 = vand.u32 %v2067, 65535
      %v2069 = vshra.s32 %v2067, 16
      %v2070 = vcvt.s32.f32 %v2068
      %v2071 = vcvt.s32.f32 %v2069
      %2072 = vmin.xlane.f32.xlu0 %v2071
      %v2073 = vpop.xlane.xlu0 %2072
      %vm2074 = vcmp.eq.f32.partialorder %v2071, %v2073
      %v2075 = vsel %vm2074, %v2070, inf
      %2076 = vmin.xlane.f32.xlu0 %v2075
      %v2077 = vpop.xlane.xlu0 %2076
      %v2078 = vcvt.f32.s32 %v2077
      %v2079 = vcvt.f32.s32 %v2073
      %v2080 = vshll.u32 %v2079, 16
      %v2081 = vadd.s32 %v2080, %v2078
      %vm2082 = vcmp.lt.s32.totalorder %v2010, %v2011
      %v2083 = vsel %vm2082, %v2010, %v2011
      %v2084 = vand.u32 %v2083, 65535
      %v2085 = vshra.s32 %v2083, 16
      %v2086 = vcvt.s32.f32 %v2084
      %v2087 = vcvt.s32.f32 %v2085
      %2088 = vmin.xlane.f32.xlu0 %v2087
      %v2089 = vpop.xlane.xlu0 %2088
      %vm2090 = vcmp.eq.f32.partialorder %v2087, %v2089
      %v2091 = vsel %vm2090, %v2086, inf
      %2092 = vmin.xlane.f32.xlu0 %v2091
      %v2093 = vpop.xlane.xlu0 %2092
      %v2094 = vcvt.f32.s32 %v2093
      %v2095 = vcvt.f32.s32 %v2089
      %v2096 = vshll.u32 %v2095, 16
      %v2097 = vadd.s32 %v2096, %v2094
      %vm2098 = vcmp.lt.s32.totalorder %v2012, %v2013
      %v2099 = vsel %vm2098, %v2012, %v2013
      %v2100 = vand.u32 %v2099, 65535
      %v2101 = vshra.s32 %v2099, 16
      %v2102 = vcvt.s32.f32 %v2100
      %v2103 = vcvt.s32.f32 %v2101
      %2104 = vmin.xlane.f32.xlu0 %v2103
      %v2105 = vpop.xlane.xlu0 %2104
      %vm2106 = vcmp.eq.f32.partialorder %v2103, %v2105
      %v2107 = vsel %vm2106, %v2102, inf
      %2108 = vmin.xlane.f32.xlu0 %v2107
      %v2109 = vpop.xlane.xlu0 %2108
      %v2110 = vcvt.f32.s32 %v2109
      %v2111 = vcvt.f32.s32 %v2105
      %v2112 = vshll.u32 %v2111, 16
      %v2113 = vadd.s32 %v2112, %v2110
      %vm2114 = vcmp.lt.s32.totalorder %v2014, %v2015
      %v2115 = vsel %vm2114, %v2014, %v2015
      %v2116 = vand.u32 %v2115, 65535
      %v2117 = vshra.s32 %v2115, 16
      %v2118 = vcvt.s32.f32 %v2116
      %v2119 = vcvt.s32.f32 %v2117
      %2120 = vmin.xlane.f32.xlu0 %v2119
      %v2121 = vpop.xlane.xlu0 %2120
      %vm2122 = vcmp.eq.f32.partialorder %v2119, %v2121
      %v2123 = vsel %vm2122, %v2118, inf
      %2124 = vmin.xlane.f32.xlu0 %v2123
      %v2125 = vpop.xlane.xlu0 %2124
      %v2126 = vcvt.f32.s32 %v2125
      %v2127 = vcvt.f32.s32 %v2121
      %v2128 = vshll.u32 %v2127, 16
      %v2129 = vadd.s32 %v2128, %v2126
      %vm2130 = vcmp.lt.s32.totalorder %v2016, %v2017
      %v2131 = vsel %vm2130, %v2016, %v2017
      %v2132 = vand.u32 %v2131, 65535
      %v2133 = vshra.s32 %v2131, 16
      %v2134 = vcvt.s32.f32 %v2132
      %v2135 = vcvt.s32.f32 %v2133
      %2136 = vmin.xlane.f32.xlu0 %v2135
      %v2137 = vpop.xlane.xlu0 %2136
      %vm2138 = vcmp.eq.f32.partialorder %v2135, %v2137
      %v2139 = vsel %vm2138, %v2134, inf
      %2140 = vmin.xlane.f32.xlu0 %v2139
      %v2141 = vpop.xlane.xlu0 %2140
      %v2142 = vcvt.f32.s32 %v2141
      %v2143 = vcvt.f32.s32 %v2137
      %v2144 = vshll.u32 %v2143, 16
      %v2145 = vadd.s32 %v2144, %v2142
      %v2146 = vcvt.s32.f32 %v2033
      %v2147 = vcvt.s32.f32 %v2049
      %v2148 = vcvt.s32.f32 %v2065
      %v2149 = vcvt.s32.f32 %v2081
      %v2150 = vcvt.s32.f32 %v2097
      %v2151 = vcvt.s32.f32 %v2113
      %v2152 = vcvt.s32.f32 %v2129
      %v2153 = vcvt.s32.f32 %v2145
      %vm2154 = vcmask 7168
      %v2155 = vsel %vm2154, %v1068, %v1292
      %v2156 = vsel %vm2154, %v1071, %v1295
      %v2157 = vsel %vm2154, %v1074, %v1298
      %v2158 = vsel %vm2154, %v1077, %v1301
      %v2159 = vsel %vm2154, %v1080, %v1304
      %v2160 = vsel %vm2154, %v1083, %v1307
      %v2161 = vsel %vm2154, %v1086, %v1310
      %v2162 = vsel %vm2154, %v1089, %v1313
      %vm2163 = vcmask 15360
      %v2164 = vsel %vm2163, %v2155, %v1516
      %v2165 = vsel %vm2163, %v2156, %v1519
      %v2166 = vsel %vm2163, %v2157, %v1522
      %v2167 = vsel %vm2163, %v2158, %v1525
      %v2168 = vsel %vm2163, %v2159, %v1528
      %v2169 = vsel %vm2163, %v2160, %v1531
      %v2170 = vsel %vm2163, %v2161, %v1534
      %v2171 = vsel %vm2163, %v2162, %v1537
      %vm2172 = vcmask 23552
      %v2173 = vsel %vm2172, %v2164, %v1740
      %v2174 = vsel %vm2172, %v2165, %v1743
      %v2175 = vsel %vm2172, %v2166, %v1746
      %v2176 = vsel %vm2172, %v2167, %v1749
      %v2177 = vsel %vm2172, %v2168, %v1752
      %v2178 = vsel %vm2172, %v2169, %v1755
      %v2179 = vsel %vm2172, %v2170, %v1758
      %v2180 = vsel %vm2172, %v2171, %v1761
      %vm2181 = vcmask 31744
      %v2182 = vsel %vm2181, %v2173, %v1964
      %v2183 = vsel %vm2181, %v2174, %v1967
      %v2184 = vsel %vm2181, %v2175, %v1970
      %v2185 = vsel %vm2181, %v2176, %v1973
      %v2186 = vsel %vm2181, %v2177, %v1976
      %v2187 = vsel %vm2181, %v2178, %v1979
      %v2188 = vsel %vm2181, %v2179, %v1982
      %v2189 = vsel %vm2181, %v2180, %v1985
      %vm2190 = vcmask 39936
      %v2191 = vsel %vm2190, %v2182, %v1250
      %v2192 = vsel %vm2190, %v2183, %v1251
      %v2193 = vsel %vm2190, %v2184, %v1252
      %v2194 = vsel %vm2190, %v2185, %v1253
      %v2195 = vsel %vm2190, %v2186, %v1254
      %v2196 = vsel %vm2190, %v2187, %v1255
      %v2197 = vsel %vm2190, %v2188, %v1256
      %v2198 = vsel %vm2190, %v2189, %v1257
      %vm2199 = vcmask 48128
      %v2200 = vsel %vm2199, %v2191, %v1474
      %v2201 = vsel %vm2199, %v2192, %v1475
      %v2202 = vsel %vm2199, %v2193, %v1476
      %v2203 = vsel %vm2199, %v2194, %v1477
      %v2204 = vsel %vm2199, %v2195, %v1478
      %v2205 = vsel %vm2199, %v2196, %v1479
      %v2206 = vsel %vm2199, %v2197, %v1480
      %v2207 = vsel %vm2199, %v2198, %v1481
      %vm2208 = vcmask 56320
      %v2209 = vsel %vm2208, %v2200, %v1698
      %v2210 = vsel %vm2208, %v2201, %v1699
      %v2211 = vsel %vm2208, %v2202, %v1700
      %v2212 = vsel %vm2208, %v2203, %v1701
      %v2213 = vsel %vm2208, %v2204, %v1702
      %v2214 = vsel %vm2208, %v2205, %v1703
      %v2215 = vsel %vm2208, %v2206, %v1704
      %v2216 = vsel %vm2208, %v2207, %v1705
      %v2217 = vsel %vm234, %v2209, %v1922
      %v2218 = vsel %vm234, %v2210, %v1923
      %v2219 = vsel %vm234, %v2211, %v1924
      %v2220 = vsel %vm234, %v2212, %v1925
      %v2221 = vsel %vm234, %v2213, %v1926
      %v2222 = vsel %vm234, %v2214, %v1927
      %v2223 = vsel %vm234, %v2215, %v1928
      %v2224 = vsel %vm234, %v2216, %v1929
      %vm2225 = vcmask 72704
      %v2226 = vsel %vm2225, %v2217, %v2146
      %v2227 = vsel %vm2225, %v2218, %v2147
      %v2228 = vsel %vm2225, %v2219, %v2148
      %v2229 = vsel %vm2225, %v2220, %v2149
      %v2230 = vsel %vm2225, %v2221, %v2150
      %v2231 = vsel %vm2225, %v2222, %v2151
      %v2232 = vsel %vm2225, %v2223, %v2152
      %v2233 = vsel %vm2225, %v2224, %v2153
      %vm2234 = vcmask 80896
      %v2235 = vsel %vm2234, %v2226, 0.0
      %v2236 = vsel %vm2234, %v2227, 0.0
      %v2237 = vsel %vm2234, %v2228, 0.0
      %v2238 = vsel %vm2234, %v2229, 0.0
      %v2239 = vsel %vm2234, %v2230, 0.0
      %v2240 = vsel %vm2234, %v2231, 0.0
      %v2241 = vsel %vm2234, %v2232, 0.0
      %v2242 = vsel %vm2234, %v2233, 0.0
      %2243 = vst [vmem:[%s191] sm:$0xff] %v2235
      %2244 = vst [vmem:[%s191 + $0x8] sm:$0xff] %v2236
      %2245 = vst [vmem:[%s191 + $0x10] sm:$0xff] %v2237
      %2246 = vst [vmem:[%s191 + $0x18] sm:$0xff] %v2238
      %2247 = vst [vmem:[%s191 + $0x20] sm:$0xff] %v2239
      %2248 = vst [vmem:[%s191 + $0x28] sm:$0xff] %v2240
      %2249 = vst [vmem:[%s191 + $0x30] sm:$0xff] %v2241
      %2250 = vst [vmem:[%s191 + $0x38] sm:$0xff] %v2242
      %s2251 = smul.u32 8, %s16
      %p2252 = scmp.lt.s32.totalorder %s2251, 31
      %s2253 = scalar_select %p2252, %s2251, 31
      %s2254 = smul.addr %s2253, 8
      %s2255 = scalar_lea.vmem %s3, %s2254
      %s2256 = smul.u32 8, %s16
      %p2257 = scmp.lt.s32.totalorder %s2256, 31
      %s2258 = scalar_select %p2257, %s2256, 31
      %s2259 = smul.addr %s2258, 8
      %s2260 = scalar_lea.vmem %s4, %s2259
      // Predicated region
      $region33: #{my_model_forward.2} parent=31 // pred_check
        %p2261 = pneg %p97
      $region34: #{my_model_forward.2} parent=31 // pred_check_branch
        %2263 = sbr.rel (%p2261) target = $region36
      $region35: #{my_model_forward.2} parent=31 // pred_region
        %s2264 = smul.u32 8, %s16
      $region36: #{my_model_forward.2} parent=31 // pred_fallthru
        _
      // Predicated region
      $region37: #{my_model_forward.2} parent=31 // pred_check
        %p2265 = pneg %p123
      $region38: #{my_model_forward.2} parent=31 // pred_check_branch
        %2267 = sbr.rel (%p2265) target = $region40
      $region39: #{my_model_forward.2} parent=31 // pred_region
        %s2268 = smul.u32 8, %s16
      $region40: #{my_model_forward.2} parent=31 // pred_fallthru
        _
    $region32: #{my_model_forward.2} parent=5 // pred_fallthru
      _
    %p2269 = scmp.le.s32.totalorder 2, %s11
    // Predicated region
    $region41: #{my_model_forward.2} parent=5 // pred_check
      %p2270 = pneg %p2269
    $region42: #{my_model_forward.2} parent=5 // pred_check_branch
      %2272 = sbr.rel (%p2270) target = $region44
    $region43: #{my_model_forward.2} parent=5 // pred_region
      %s2273 = ssub.s32 %s11, 2
      // Predicated region
      $region45: #{my_model_forward.2} parent=43 // pred_check
        %p2274 = pneg %p103
      $region46: #{my_model_forward.2} parent=43 // pred_check_branch
        %2276 = sbr.rel (%p2274) target = $region48
      $region47: #{my_model_forward.2} parent=43 // pred_region
        %s2277 = smul.u32 8, %s17
        %p2278 = scmp.lt.s32.totalorder %s2277, 31
        %s2279 = scalar_select %p2278, %s2277, 31
        %s2280 = smul.addr %s2279, 8
        %s2281 = scalar_lea.vmem %s3, %s2280
      $region48: #{my_model_forward.2} parent=43 // pred_fallthru
        _
      // Predicated region
      $region49: #{my_model_forward.2} parent=43 // pred_check
        %p2282 = pneg %p129
      $region50: #{my_model_forward.2} parent=43 // pred_check_branch
        %2284 = sbr.rel (%p2282) target = $region52
      $region51: #{my_model_forward.2} parent=43 // pred_region
        %s2285 = smul.u32 8, %s17
        %p2286 = scmp.lt.s32.totalorder %s2285, 31
        %s2287 = scalar_select %p2286, %s2285, 31
        %s2288 = smul.addr %s2287, 8
        %s2289 = scalar_lea.vmem %s4, %s2288
      $region52: #{my_model_forward.2} parent=43 // pred_fallthru
        _
    $region44: #{my_model_forward.2} parent=5 // pred_fallthru
      _
  $region6: #{my_model_forward.2} parent=0 // loop_footer
    %s15 = sadd.s32 1, %s11
  $region7: #{my_model_forward.2} parent=0 // loop_footer_branch
    %10 = sbr.rel target = $region3
  $region8: #{my_model_forward.2} parent=0 // loop_exit
    _

// kernel: my_model_forward.3
$region0: #{my_model_forward.3}
  #allocation0 [shape = 'u32[]', space=smem, size = 0x4, offset = 0x4, fixed_abs, tag = 'smem constant byte address 0x4 - core index']
  #allocation1 [shape = 'u32[144,128]{1,0:T(1,128)}', space=vmem, size = 0x12000, scoped, tag = 'internal scratch']
  %s0 = inlined_call_operand.vmem [shape: f32[256,128], index: 0, kind: input, shape index: {}]
  %s1 = inlined_call_operand.vmem [shape: s32[256,5], index: 1, kind: input, shape index: {}]
  %s2 = inlined_call_operand.vmem [shape: f32[256,5], index: 2, kind: input, shape index: {}]
  %s3 = inlined_call_operand.vmem [shape: f32[1,256], index: 3, kind: input, shape index: {}]
  %s4 = inlined_call_operand.vmem [shape: f32[256,1], index: 4, kind: input, shape index: {}]
  %s5 = inlined_call_operand.vmem [shape: f32[256,128], index: 5, kind: input, shape index: {}]
  %s6 = inlined_call_operand.vmem [shape: f32[128,128], index: 6, kind: input, shape index: {}]
  %s7 = inlined_call_operand.vmem [shape: f32[6,128], index: 7, kind: input, shape index: {}]
  %s8 = inlined_call_operand.hbm [shape: f32[1,256], index: 8, kind: output, shape index: {}]
  %s9 = sld [smem:[#allocation0]]
  $region65: #{my_model_forward.3} parent=0
    _
  %s11 = ssub.s32 1, %s9
  %s12 = scalar_select 0, %s11, %s9
  $region1: #{my_model_forward.3} parent=0
    #allocation2 [shape = 'u8[1024]{0}', space=vmem, size = 0x400, scoped, tag = 'output window, operand 0']
    #allocation3 [shape = 's32[2]{0}', space=sflag, size = 0x8, scoped, tag = 'scoped memory for my_model_forward.3']
    %13 = vsyncpa [#allocation3], 0
    %s14 = scalar_lea.sflag [#allocation3], 1
    %15 = vsyncpa %s14, 0
    loop: start=0, step=1, limit=4
    $region2: #{my_model_forward.3} parent=1 // loop_pre_header
      _
    $region3: #{my_model_forward.3} parent=1 // loop_header
      %s17 = sphi 0, %s21
      %p18 = scmp.ge.s32.totalorder %s17, 4
      %s25 = sphi 0, %s25
      %s27 = sphi 0, %s25
      %s28 = sphi 0, %s27
      %s42 = sphi 0, %s28
      %s48 = sphi 0, %s50
      %s51 = sphi 0, %s48
      %s52 = sphi 0, %s51
      %s68 = sphi 0, %s52
      %s74 = sphi 0, %s76
      %s77 = sphi 0, %s74
      %s78 = sphi 0, %s77
      %s94 = sphi 0, %s78
      %s98 = sphi 0, %s98
      %s100 = sphi 0, %s98
      %s101 = sphi 0, %s100
      %s115 = sphi 0, %s101
      %s121 = sphi 0, %s123
      %s124 = sphi 0, %s121
      %s125 = sphi 0, %s124
      %s141 = sphi 0, %s125
      %s145 = sphi 0, %s145
      %s147 = sphi 0, %s145
      %s148 = sphi 0, %s147
      %s162 = sphi 0, %s148
      %s166 = sphi 0, %s166
      %s168 = sphi 0, %s166
      %s169 = sphi 0, %s168
      %s183 = sphi 0, %s169
      %s187 = sphi 0, %s187
      %s189 = sphi 0, %s187
      %s190 = sphi 0, %s189
      %s204 = sphi 0, %s190
      %s210 = sphi 0, %s212
      %s213 = sphi 0, %s210
      %s214 = sphi 0, %s213
      %s230 = sphi 0, %s214
    $region4: #{my_model_forward.3} parent=1 // loop_header_branch
      %20 = sbr.rel (%p18) target = $region8
    $region5: #{my_model_forward.3} parent=1 // loop_body
      %s22 = ssub.s32 %s17, 1
      %s23 = ssub.s32 %s17, 2
      %s24 = sadd.s32 %s17, 1
      %s26 = sadd.s32 %s25, 1
      %p29 = scmp.eq.s32.totalorder %s17, 1
      %p30 = scmp.ne.s32.totalorder %s25, %s27
      %p31 = scmp.eq.s32.totalorder %s17, 0
      %p32 = por %p30, %p31
      %p33 = scmp.ne.s32.totalorder %s25, %s27
      %p34 = scmp.eq.s32.totalorder %s22, 1
      %p35 = por %p33, %p34
      %p36 = scmp.ne.s32.totalorder %s27, %s28
      %p37 = scmp.eq.s32.totalorder %s22, 0
      %p38 = por %p36, %p37
      %p39 = scmp.ne.s32.totalorder %s27, %s28
      %p40 = scmp.eq.s32.totalorder %s23, 1
      %p41 = por %p39, %p40
      %p43 = scmp.ne.s32.totalorder %s28, %s42
      %p44 = scmp.eq.s32.totalorder %s23, 0
      %p45 = por %p43, %p44
      %s46 = ssub.s32 %s17, %s24
      %p47 = scmp.eq.s32.totalorder %s46, 0
      %s49 = sadd.s32 %s48, 1
      %s50 = scalar_select %p47, %s48, %s49
      %p53 = pneg %p47
      %p54 = scmp.eq.s32.totalorder %s17, 1
      %p55 = por %p53, %p54
      %p56 = scmp.ne.s32.totalorder %s48, %s51
      %p57 = scmp.eq.s32.totalorder %s17, 0
      %p58 = por %p56, %p57
      %p59 = scmp.ne.s32.totalorder %s48, %s51
      %p60 = scmp.eq.s32.totalorder %s22, 1
      %p61 = por %p59, %p60
      %p62 = scmp.ne.s32.totalorder %s51, %s52
      %p63 = scmp.eq.s32.totalorder %s22, 0
      %p64 = por %p62, %p63
      %p65 = scmp.ne.s32.totalorder %s51, %s52
      %p66 = scmp.eq.s32.totalorder %s23, 1
      %p67 = por %p65, %p66
      %p69 = scmp.ne.s32.totalorder %s52, %s68
      %p70 = scmp.eq.s32.totalorder %s23, 0
      %p71 = por %p69, %p70
      %s72 = ssub.s32 %s17, %s24
      %p73 = scmp.eq.s32.totalorder %s72, 0
      %s75 = sadd.s32 %s74, 1
      %s76 = scalar_select %p73, %s74, %s75
      %p79 = pneg %p73
      %p80 = scmp.eq.s32.totalorder %s17, 1
      %p81 = por %p79, %p80
      %p82 = scmp.ne.s32.totalorder %s74, %s77
      %p83 = scmp.eq.s32.totalorder %s17, 0
      %p84 = por %p82, %p83
      %p85 = scmp.ne.s32.totalorder %s74, %s77
      %p86 = scmp.eq.s32.totalorder %s22, 1
      %p87 = por %p85, %p86
      %p88 = scmp.ne.s32.totalorder %s77, %s78
      %p89 = scmp.eq.s32.totalorder %s22, 0
      %p90 = por %p88, %p89
      %p91 = scmp.ne.s32.totalorder %s77, %s78
      %p92 = scmp.eq.s32.totalorder %s23, 1
      %p93 = por %p91, %p92
      %p95 = scmp.ne.s32.totalorder %s78, %s94
      %p96 = scmp.eq.s32.totalorder %s23, 0
      %p97 = por %p95, %p96
      %s99 = sadd.s32 %s98, 1
      %p102 = scmp.eq.s32.totalorder %s17, 1
      %p103 = scmp.ne.s32.totalorder %s98, %s100
      %p104 = scmp.eq.s32.totalorder %s17, 0
      %p105 = por %p103, %p104
      %p106 = scmp.ne.s32.totalorder %s98, %s100
      %p107 = scmp.eq.s32.totalorder %s22, 1
      %p108 = por %p106, %p107
      %p109 = scmp.ne.s32.totalorder %s100, %s101
      %p110 = scmp.eq.s32.totalorder %s22, 0
      %p111 = por %p109, %p110
      %p112 = scmp.ne.s32.totalorder %s100, %s101
      %p113 = scmp.eq.s32.totalorder %s23, 1
      %p114 = por %p112, %p113
      %p116 = scmp.ne.s32.totalorder %s101, %s115
      %p117 = scmp.eq.s32.totalorder %s23, 0
      %p118 = por %p116, %p117
      %s119 = ssub.s32 %s17, %s24
      %p120 = scmp.eq.s32.totalorder %s119, 0
      %s122 = sadd.s32 %s121, 1
      %s123 = scalar_select %p120, %s121, %s122
      %p126 = pneg %p120
      %p127 = scmp.eq.s32.totalorder %s17, 1
      %p128 = por %p126, %p127
      %p129 = scmp.ne.s32.totalorder %s121, %s124
      %p130 = scmp.eq.s32.totalorder %s17, 0
      %p131 = por %p129, %p130
      %p132 = scmp.ne.s32.totalorder %s121, %s124
      %p133 = scmp.eq.s32.totalorder %s22, 1
      %p134 = por %p132, %p133
      %p135 = scmp.ne.s32.totalorder %s124, %s125
      %p136 = scmp.eq.s32.totalorder %s22, 0
      %p137 = por %p135, %p136
      %p138 = scmp.ne.s32.totalorder %s124, %s125
      %p139 = scmp.eq.s32.totalorder %s23, 1
      %p140 = por %p138, %p139
      %p142 = scmp.ne.s32.totalorder %s125, %s141
      %p143 = scmp.eq.s32.totalorder %s23, 0
      %p144 = por %p142, %p143
      %s146 = sadd.s32 %s145, 1
      %p149 = scmp.eq.s32.totalorder %s17, 1
      %p150 = scmp.ne.s32.totalorder %s145, %s147
      %p151 = scmp.eq.s32.totalorder %s17, 0
      %p152 = por %p150, %p151
      %p153 = scmp.ne.s32.totalorder %s145, %s147
      %p154 = scmp.eq.s32.totalorder %s22, 1
      %p155 = por %p153, %p154
      %p156 = scmp.ne.s32.totalorder %s147, %s148
      %p157 = scmp.eq.s32.totalorder %s22, 0
      %p158 = por %p156, %p157
      %p159 = scmp.ne.s32.totalorder %s147, %s148
      %p160 = scmp.eq.s32.totalorder %s23, 1
      %p161 = por %p159, %p160
      %p163 = scmp.ne.s32.totalorder %s148, %s162
      %p164 = scmp.eq.s32.totalorder %s23, 0
      %p165 = por %p163, %p164
      %s167 = sadd.s32 %s166, 1
      %p170 = scmp.eq.s32.totalorder %s17, 1
      %p171 = scmp.ne.s32.totalorder %s166, %s168
      %p172 = scmp.eq.s32.totalorder %s17, 0
      %p173 = por %p171, %p172
      %p174 = scmp.ne.s32.totalorder %s166, %s168
      %p175 = scmp.eq.s32.totalorder %s22, 1
      %p176 = por %p174, %p175
      %p177 = scmp.ne.s32.totalorder %s168, %s169
      %p178 = scmp.eq.s32.totalorder %s22, 0
      %p179 = por %p177, %p178
      %p180 = scmp.ne.s32.totalorder %s168, %s169
      %p181 = scmp.eq.s32.totalorder %s23, 1
      %p182 = por %p180, %p181
      %p184 = scmp.ne.s32.totalorder %s169, %s183
      %p185 = scmp.eq.s32.totalorder %s23, 0
      %p186 = por %p184, %p185
      %s188 = sadd.s32 %s187, 1
      %p191 = scmp.eq.s32.totalorder %s17, 1
      %p192 = scmp.ne.s32.totalorder %s187, %s189
      %p193 = scmp.eq.s32.totalorder %s17, 0
      %p194 = por %p192, %p193
      %p195 = scmp.ne.s32.totalorder %s187, %s189
      %p196 = scmp.eq.s32.totalorder %s22, 1
      %p197 = por %p195, %p196
      %p198 = scmp.ne.s32.totalorder %s189, %s190
      %p199 = scmp.eq.s32.totalorder %s22, 0
      %p200 = por %p198, %p199
      %p201 = scmp.ne.s32.totalorder %s189, %s190
      %p202 = scmp.eq.s32.totalorder %s23, 1
      %p203 = por %p201, %p202
      %p205 = scmp.ne.s32.totalorder %s190, %s204
      %p206 = scmp.eq.s32.totalorder %s23, 0
      %p207 = por %p205, %p206
      %s208 = ssub.s32 %s17, %s24
      %p209 = scmp.eq.s32.totalorder %s208, 0
      %s211 = sadd.s32 %s210, 1
      %s212 = scalar_select %p209, %s210, %s211
      %p215 = pneg %p209
      %p216 = scmp.eq.s32.totalorder %s17, 1
      %p217 = por %p215, %p216
      %p218 = scmp.ne.s32.totalorder %s210, %s213
      %p219 = scmp.eq.s32.totalorder %s17, 0
      %p220 = por %p218, %p219
      %p221 = scmp.ne.s32.totalorder %s210, %s213
      %p222 = scmp.eq.s32.totalorder %s22, 1
      %p223 = por %p221, %p222
      %p224 = scmp.ne.s32.totalorder %s213, %s214
      %p225 = scmp.eq.s32.totalorder %s22, 0
      %p226 = por %p224, %p225
      %p227 = scmp.ne.s32.totalorder %s213, %s214
      %p228 = scmp.eq.s32.totalorder %s23, 1
      %p229 = por %p227, %p228
      %p231 = scmp.ne.s32.totalorder %s214, %s230
      %p232 = scmp.eq.s32.totalorder %s23, 0
      %p233 = por %p231, %p232
      %p234 = scmp.le.s32.totalorder 1, %s17
      %p235 = scmp.lt.s32.totalorder %s17, 3
      %p236 = pnand %p234, %p235
      %p237 = pneg %p236
      // Predicated region
      $region9: #{my_model_forward.3} parent=5 // pred_check
        _
      $region10: #{my_model_forward.3} parent=5 // pred_check_branch
        %239 = sbr.rel (%p236) target = $region12
      $region11: #{my_model_forward.3} parent=5 // pred_region
        %s240 = ssub.s32 %s17, 1
        // Predicated region
        $region13: #{my_model_forward.3} parent=11 // pred_check
          %p241 = pneg %p38
        $region14: #{my_model_forward.3} parent=11 // pred_check_branch
          %243 = sbr.rel (%p241) target = $region16
        $region15: #{my_model_forward.3} parent=11 // pred_region
          _
        $region16: #{my_model_forward.3} parent=11 // pred_fallthru
          _
        // Predicated region
        $region17: #{my_model_forward.3} parent=11 // pred_check
          %p244 = pneg %p111
        $region18: #{my_model_forward.3} parent=11 // pred_check_branch
          %246 = sbr.rel (%p244) target = $region20
        $region19: #{my_model_forward.3} parent=11 // pred_region
          _
        $region20: #{my_model_forward.3} parent=11 // pred_fallthru
          _
        // Predicated region
        $region21: #{my_model_forward.3} parent=11 // pred_check
          %p247 = pneg %p158
        $region22: #{my_model_forward.3} parent=11 // pred_check_branch
          %249 = sbr.rel (%p247) target = $region24
        $region23: #{my_model_forward.3} parent=11 // pred_region
          _
        $region24: #{my_model_forward.3} parent=11 // pred_fallthru
          _
        // Predicated region
        $region25: #{my_model_forward.3} parent=11 // pred_check
          %p250 = pneg %p179
        $region26: #{my_model_forward.3} parent=11 // pred_check_branch
          %252 = sbr.rel (%p250) target = $region28
        $region27: #{my_model_forward.3} parent=11 // pred_region
          _
        $region28: #{my_model_forward.3} parent=11 // pred_fallthru
          _
        // Predicated region
        $region29: #{my_model_forward.3} parent=11 // pred_check
          %p253 = pneg %p200
        $region30: #{my_model_forward.3} parent=11 // pred_check_branch
          %255 = sbr.rel (%p253) target = $region32
        $region31: #{my_model_forward.3} parent=11 // pred_region
          _
        $region32: #{my_model_forward.3} parent=11 // pred_fallthru
          _
      $region12: #{my_model_forward.3} parent=5 // pred_fallthru
        _
      %p256 = scmp.lt.s32.totalorder %s17, 2
      // Predicated region
      $region33: #{my_model_forward.3} parent=5 // pred_check
        %p257 = pneg %p256
      $region34: #{my_model_forward.3} parent=5 // pred_check_branch
        %259 = sbr.rel (%p257) target = $region36
      $region35: #{my_model_forward.3} parent=5 // pred_region
        // Predicated region
        $region37: #{my_model_forward.3} parent=35 // pred_check
          %p260 = pneg %p58
        $region38: #{my_model_forward.3} parent=35 // pred_check_branch
          %262 = sbr.rel (%p260) target = $region40
        $region39: #{my_model_forward.3} parent=35 // pred_region
          %s263 = smul.u32 16, %s17
          %p264 = scmp.lt.s32.totalorder %s263, 31
          %s265 = scalar_select %p264, %s263, 31
          %s266 = smul.addr %s265, 8
          %s267 = scalar_lea.vmem %s1, %s266
          %s268 = smul.u32 16, %s17
        $region40: #{my_model_forward.3} parent=35 // pred_fallthru
          _
        // Predicated region
        $region41: #{my_model_forward.3} parent=35 // pred_check
          %p269 = pneg %p84
        $region42: #{my_model_forward.3} parent=35 // pred_check_branch
          %271 = sbr.rel (%p269) target = $region44
        $region43: #{my_model_forward.3} parent=35 // pred_region
          %s272 = smul.u32 16, %s17
          %p273 = scmp.lt.s32.totalorder %s272, 31
          %s274 = scalar_select %p273, %s272, 31
          %s275 = smul.addr %s274, 8
          %s276 = scalar_lea.vmem %s2, %s275
          %s277 = smul.u32 16, %s17
        $region44: #{my_model_forward.3} parent=35 // pred_fallthru
          _
        // Predicated region
        $region45: #{my_model_forward.3} parent=35 // pred_check
          %p278 = pneg %p131
        $region46: #{my_model_forward.3} parent=35 // pred_check_branch
          %280 = sbr.rel (%p278) target = $region48
        $region47: #{my_model_forward.3} parent=35 // pred_region
          %s281 = smul.u32 16, %s17
          %p282 = scmp.lt.s32.totalorder %s281, 31
          %s283 = scalar_select %p282, %s281, 31
          %s284 = smul.addr %s283, 8
          %s285 = scalar_lea.vmem %s4, %s284
          %s286 = smul.u32 16, %s17
        $region48: #{my_model_forward.3} parent=35 // pred_fallthru
          _
      $region36: #{my_model_forward.3} parent=5 // pred_fallthru
        _
      %p287 = scmp.le.s32.totalorder 1, %s17
      %p288 = scmp.lt.s32.totalorder %s17, 3
      %p289 = pnand %p287, %p288
      %p290 = pneg %p289
      // Predicated region
      $region49: #{my_model_forward.3} parent=5 // pred_check
        _
      $region50: #{my_model_forward.3} parent=5 // pred_check_branch
        %292 = sbr.rel (%p289) target = $region52
      $region51: #{my_model_forward.3} parent=5 // pred_region
        %s293 = ssub.s32 %s17, 1
        %p294 = pneg %p38
        %p295 = pneg %p35
        %s296 = smul.u32 16, %s22
        %p297 = scmp.lt.s32.totalorder %s296, 31
        %s298 = scalar_select %p297, %s296, 31
        %s299 = smul.addr %s298, 8
        %s300 = scalar_lea.vmem %s1, %s299
        %p301 = pneg %p64
        %p302 = pneg %p61
        %s303 = smul.u32 16, %s22
        %p304 = scmp.lt.s32.totalorder %s303, 31
        %s305 = scalar_select %p304, %s303, 31
        %s306 = smul.addr %s305, 8
        %s307 = scalar_lea.vmem %s2, %s306
        %p308 = pneg %p90
        %p309 = pneg %p87
        %p310 = pneg %p111
        %p311 = pneg %p108
        %s312 = smul.u32 16, %s22
        %p313 = scmp.lt.s32.totalorder %s312, 31
        %s314 = scalar_select %p313, %s312, 31
        %s315 = smul.addr %s314, 8
        %s316 = scalar_lea.vmem %s4, %s315
        %p317 = pneg %p137
        %p318 = pneg %p134
        %p319 = pneg %p158
        %p320 = pneg %p155
        %p321 = pneg %p179
        %p322 = pneg %p176
        %p323 = pneg %p200
        %p324 = pneg %p197
        %p325 = pneg %p226
        %p326 = pneg %p223
        %s327 = sand.u32 %s213, 1
        %s328 = scalar_lea.sflag [#allocation3], %s327
        %s329 = sand.u32 %s213, 1
        %s330 = scalar_lea.vmem [#allocation2], %s329
        %s331 = smul.u32 16, %s22
        %p332 = scmp.lt.s32.totalorder %s331, 31
        %s333 = scalar_select %p332, %s331, 31
        %s334 = smul.addr %s333, 8
        %s335 = scalar_lea.vmem %s1, %s334
        %s336 = smul.u32 16, %s22
        %s337 = smul.u32 16, %s22
        %p338 = scmp.lt.s32.totalorder %s337, 31
        %s339 = scalar_select %p338, %s337, 31
        %s340 = smul.addr %s339, 8
        %s341 = scalar_lea.vmem %s2, %s340
        %s342 = smul.u32 16, %s22
        %s343 = smul.u32 16, %s22
        %p344 = scmp.lt.s32.totalorder %s343, 31
        %s345 = scalar_select %p344, %s343, 31
        %s346 = smul.addr %s345, 8
        %s347 = scalar_lea.vmem %s4, %s346
        %s348 = smul.u32 16, %s22
        %s349 = smul.u32 %s22, 128
        %s350 = scalar_lea.vmem %s0, %s349
        %v351 = vld [vmem:[%s350] sm:$0xff]
        %v352 = vld [vmem:[%s350 + $0x8] sm:$0xff]
        %v353 = vld [vmem:[%s350 + $0x10] sm:$0xff]
        %v354 = vld [vmem:[%s350 + $0x18] sm:$0xff]
        %v355 = vld [vmem:[%s350 + $0x20] sm:$0xff]
        %v356 = vld [vmem:[%s350 + $0x28] sm:$0xff]
        %v357 = vld [vmem:[%s350 + $0x30] sm:$0xff]
        %v358 = vld [vmem:[%s350 + $0x38] sm:$0xff]
        %v359 = vld [vmem:[%s350 + $0x40] sm:$0xff]
        %v360 = vld [vmem:[%s350 + $0x48] sm:$0xff]
        %v361 = vld [vmem:[%s350 + $0x50] sm:$0xff]
        %v362 = vld [vmem:[%s350 + $0x58] sm:$0xff]
        %v363 = vld [vmem:[%s350 + $0x60] sm:$0xff]
        %v364 = vld [vmem:[%s350 + $0x68] sm:$0xff]
        %v365 = vld [vmem:[%s350 + $0x70] sm:$0xff]
        %v366 = vld [vmem:[%s350 + $0x78] sm:$0xff]
        %v367 = vld [vmem:[%s335] sm:$0xff]
        %v368 = vld [vmem:[%s335 + $0x8] sm:$0xff]
        %v369 = vld [vmem:[%s335 + $0x10] sm:$0xff]
        %v370 = vld [vmem:[%s335 + $0x18] sm:$0xff]
        %v371 = vld [vmem:[%s335 + $0x20] sm:$0xff]
        %v372 = vld [vmem:[%s335 + $0x28] sm:$0xff]
        %v373 = vld [vmem:[%s335 + $0x30] sm:$0xff]
        %v374 = vld [vmem:[%s335 + $0x38] sm:$0xff]
        %v375 = vld [vmem:[%s335 + $0x40] sm:$0xff]
        %v376 = vld [vmem:[%s335 + $0x48] sm:$0xff]
        %v377 = vld [vmem:[%s335 + $0x50] sm:$0xff]
        %v378 = vld [vmem:[%s335 + $0x58] sm:$0xff]
        %v379 = vld [vmem:[%s335 + $0x60] sm:$0xff]
        %v380 = vld [vmem:[%s335 + $0x68] sm:$0xff]
        %v381 = vld [vmem:[%s335 + $0x70] sm:$0xff]
        %v382 = vld [vmem:[%s335 + $0x78] sm:$0xff]
        %v383 = vld [vmem:[%s341] sm:$0xff]
        %v384 = vld [vmem:[%s341 + $0x8] sm:$0xff]
        %v385 = vld [vmem:[%s341 + $0x10] sm:$0xff]
        %v386 = vld [vmem:[%s341 + $0x18] sm:$0xff]
        %v387 = vld [vmem:[%s341 + $0x20] sm:$0xff]
        %v388 = vld [vmem:[%s341 + $0x28] sm:$0xff]
        %v389 = vld [vmem:[%s341 + $0x30] sm:$0xff]
        %v390 = vld [vmem:[%s341 + $0x38] sm:$0xff]
        %v391 = vld [vmem:[%s341 + $0x40] sm:$0xff]
        %v392 = vld [vmem:[%s341 + $0x48] sm:$0xff]
        %v393 = vld [vmem:[%s341 + $0x50] sm:$0xff]
        %v394 = vld [vmem:[%s341 + $0x58] sm:$0xff]
        %v395 = vld [vmem:[%s341 + $0x60] sm:$0xff]
        %v396 = vld [vmem:[%s341 + $0x68] sm:$0xff]
        %v397 = vld [vmem:[%s341 + $0x70] sm:$0xff]
        %v398 = vld [vmem:[%s341 + $0x78] sm:$0xff]
        %v399 = vlaneseq
        %v400 = vand.u32 %v399, 127
        %v401 = vadd.s32 %v400, 128
        %402 = vset.pattern.permute.xlu0 0
        %403 = vperm.xlu0 %402, %v367
        %v404 = vpop.permute.xlu0 %403
        %405 = vset.pattern.permute.xlu0 0
        %406 = vperm.xlu0 %405, %v368
        %v407 = vpop.permute.xlu0 %406
        %408 = vset.pattern.permute.xlu0 0
        %409 = vperm.xlu0 %408, %v369
        %v410 = vpop.permute.xlu0 %409
        %411 = vset.pattern.permute.xlu0 0
        %412 = vperm.xlu0 %411, %v370
        %v413 = vpop.permute.xlu0 %412
        %414 = vset.pattern.permute.xlu0 0
        %415 = vperm.xlu0 %414, %v371
        %v416 = vpop.permute.xlu0 %415
        %417 = vset.pattern.permute.xlu0 0
        %418 = vperm.xlu0 %417, %v372
        %v419 = vpop.permute.xlu0 %418
        %420 = vset.pattern.permute.xlu0 0
        %421 = vperm.xlu0 %420, %v373
        %v422 = vpop.permute.xlu0 %421
        %423 = vset.pattern.permute.xlu0 0
        %424 = vperm.xlu0 %423, %v374
        %v425 = vpop.permute.xlu0 %424
        %426 = vset.pattern.permute.xlu0 0
        %427 = vperm.xlu0 %426, %v375
        %v428 = vpop.permute.xlu0 %427
        %429 = vset.pattern.permute.xlu0 0
        %430 = vperm.xlu0 %429, %v376
        %v431 = vpop.permute.xlu0 %430
        %432 = vset.pattern.permute.xlu0 0
        %433 = vperm.xlu0 %432, %v377
        %v434 = vpop.permute.xlu0 %433
        %435 = vset.pattern.permute.xlu0 0
        %436 = vperm.xlu0 %435, %v378
        %v437 = vpop.permute.xlu0 %436
        %438 = vset.pattern.permute.xlu0 0
        %439 = vperm.xlu0 %438, %v379
        %v440 = vpop.permute.xlu0 %439
        %441 = vset.pattern.permute.xlu0 0
        %442 = vperm.xlu0 %441, %v380
        %v443 = vpop.permute.xlu0 %442
        %444 = vset.pattern.permute.xlu0 0
        %445 = vperm.xlu0 %444, %v381
        %v446 = vpop.permute.xlu0 %445
        %447 = vset.pattern.permute.xlu0 0
        %448 = vperm.xlu0 %447, %v382
        %v449 = vpop.permute.xlu0 %448
        %vm450 = vcmp.eq.s32.totalorder %v400, %v404
        %vm451 = vcmp.eq.s32.totalorder %v401, %v404
        %vm452 = vcmp.eq.s32.totalorder %v400, %v407
        %vm453 = vcmp.eq.s32.totalorder %v401, %v407
        %vm454 = vcmp.eq.s32.totalorder %v400, %v410
        %vm455 = vcmp.eq.s32.totalorder %v401, %v410
        %vm456 = vcmp.eq.s32.totalorder %v400, %v413
        %vm457 = vcmp.eq.s32.totalorder %v401, %v413
        %vm458 = vcmp.eq.s32.totalorder %v400, %v416
        %vm459 = vcmp.eq.s32.totalorder %v401, %v416
        %vm460 = vcmp.eq.s32.totalorder %v400, %v419
        %vm461 = vcmp.eq.s32.totalorder %v401, %v419
        %vm462 = vcmp.eq.s32.totalorder %v400, %v422
        %vm463 = vcmp.eq.s32.totalorder %v401, %v422
        %vm464 = vcmp.eq.s32.totalorder %v400, %v425
        %vm465 = vcmp.eq.s32.totalorder %v401, %v425
        %vm466 = vcmp.eq.s32.totalorder %v400, %v428
        %vm467 = vcmp.eq.s32.totalorder %v401, %v428
        %vm468 = vcmp.eq.s32.totalorder %v400, %v431
        %vm469 = vcmp.eq.s32.totalorder %v401, %v431
        %vm470 = vcmp.eq.s32.totalorder %v400, %v434
        %vm471 = vcmp.eq.s32.totalorder %v401, %v434
        %vm472 = vcmp.eq.s32.totalorder %v400, %v437
        %vm473 = vcmp.eq.s32.totalorder %v401, %v437
        %vm474 = vcmp.eq.s32.totalorder %v400, %v440
        %vm475 = vcmp.eq.s32.totalorder %v401, %v440
        %vm476 = vcmp.eq.s32.totalorder %v400, %v443
        %vm477 = vcmp.eq.s32.totalorder %v401, %v443
        %vm478 = vcmp.eq.s32.totalorder %v400, %v446
        %vm479 = vcmp.eq.s32.totalorder %v401, %v446
        %vm480 = vcmp.eq.s32.totalorder %v400, %v449
        %vm481 = vcmp.eq.s32.totalorder %v401, %v449
        %483 = vset.pattern.permute.xlu0 0
        %484 = vperm.xlu0 %483, %v383
        %v485 = vpop.permute.xlu0 %484
        %488 = vset.pattern.permute.xlu0 0
        %489 = vperm.xlu0 %488, %v384
        %v490 = vpop.permute.xlu0 %489
        %493 = vset.pattern.permute.xlu0 0
        %494 = vperm.xlu0 %493, %v385
        %v495 = vpop.permute.xlu0 %494
        %498 = vset.pattern.permute.xlu0 0
        %499 = vperm.xlu0 %498, %v386
        %v500 = vpop.permute.xlu0 %499
        %503 = vset.pattern.permute.xlu0 0
        %504 = vperm.xlu0 %503, %v387
        %v505 = vpop.permute.xlu0 %504
        %508 = vset.pattern.permute.xlu0 0
        %509 = vperm.xlu0 %508, %v388
        %v510 = vpop.permute.xlu0 %509
        %513 = vset.pattern.permute.xlu0 0
        %514 = vperm.xlu0 %513, %v389
        %v515 = vpop.permute.xlu0 %514
        %518 = vset.pattern.permute.xlu0 0
        %519 = vperm.xlu0 %518, %v390
        %v520 = vpop.permute.xlu0 %519
        %523 = vset.pattern.permute.xlu0 0
        %524 = vperm.xlu0 %523, %v391
        %v525 = vpop.permute.xlu0 %524
        %528 = vset.pattern.permute.xlu0 0
        %529 = vperm.xlu0 %528, %v392
        %v530 = vpop.permute.xlu0 %529
        %533 = vset.pattern.permute.xlu0 0
        %534 = vperm.xlu0 %533, %v393
        %v535 = vpop.permute.xlu0 %534
        %538 = vset.pattern.permute.xlu0 0
        %539 = vperm.xlu0 %538, %v394
        %v540 = vpop.permute.xlu0 %539
        %543 = vset.pattern.permute.xlu0 0
        %544 = vperm.xlu0 %543, %v395
        %v545 = vpop.permute.xlu0 %544
        %548 = vset.pattern.permute.xlu0 0
        %549 = vperm.xlu0 %548, %v396
        %v550 = vpop.permute.xlu0 %549
        %553 = vset.pattern.permute.xlu0 0
        %554 = vperm.xlu0 %553, %v397
        %v555 = vpop.permute.xlu0 %554
        %558 = vset.pattern.permute.xlu0 0
        %559 = vperm.xlu0 %558, %v398
        %v560 = vpop.permute.xlu0 %559
        %v562 = vsel %vm450, %v485, 0.0
        %v563 = vsel %vm451, %v485, 0.0
        %v564 = vsel %vm452, %v490, 0.0
        %v565 = vsel %vm453, %v490, 0.0
        %v566 = vsel %vm454, %v495, 0.0
        %v567 = vsel %vm455, %v495, 0.0
        %v568 = vsel %vm456, %v500, 0.0
        %v569 = vsel %vm457, %v500, 0.0
        %v570 = vsel %vm458, %v505, 0.0
        %v571 = vsel %vm459, %v505, 0.0
        %v572 = vsel %vm460, %v510, 0.0
        %v573 = vsel %vm461, %v510, 0.0
        %v574 = vsel %vm462, %v515, 0.0
        %v575 = vsel %vm463, %v515, 0.0
        %v576 = vsel %vm464, %v520, 0.0
        %v577 = vsel %vm465, %v520, 0.0
        %v578 = vsel %vm466, %v525, 0.0
        %v579 = vsel %vm467, %v525, 0.0
        %v580 = vsel %vm468, %v530, 0.0
        %v581 = vsel %vm469, %v530, 0.0
        %v582 = vsel %vm470, %v535, 0.0
        %v583 = vsel %vm471, %v535, 0.0
        %v584 = vsel %vm472, %v540, 0.0
        %v585 = vsel %vm473, %v540, 0.0
        %v586 = vsel %vm474, %v545, 0.0
        %v587 = vsel %vm475, %v545, 0.0
        %v588 = vsel %vm476, %v550, 0.0
        %v589 = vsel %vm477, %v550, 0.0
        %v590 = vsel %vm478, %v555, 0.0
        %v591 = vsel %vm479, %v555, 0.0
        %v592 = vsel %vm480, %v560, 0.0
        %v593 = vsel %vm481, %v560, 0.0
        %v594 = vadd.f32 %v562, 0.0
        %v595 = vadd.f32 %v563, 0.0
        %v596 = vadd.f32 %v564, 0.0
        %v597 = vadd.f32 %v565, 0.0
        %v598 = vadd.f32 %v566, 0.0
        %v599 = vadd.f32 %v567, 0.0
        %v600 = vadd.f32 %v568, 0.0
        %v601 = vadd.f32 %v569, 0.0
        %v602 = vadd.f32 %v570, 0.0
        %v603 = vadd.f32 %v571, 0.0
        %v604 = vadd.f32 %v572, 0.0
        %v605 = vadd.f32 %v573, 0.0
        %v606 = vadd.f32 %v574, 0.0
        %v607 = vadd.f32 %v575, 0.0
        %v608 = vadd.f32 %v576, 0.0
        %v609 = vadd.f32 %v577, 0.0
        %v610 = vadd.f32 %v578, 0.0
        %v611 = vadd.f32 %v579, 0.0
        %v612 = vadd.f32 %v580, 0.0
        %v613 = vadd.f32 %v581, 0.0
        %v614 = vadd.f32 %v582, 0.0
        %v615 = vadd.f32 %v583, 0.0
        %v616 = vadd.f32 %v584, 0.0
        %v617 = vadd.f32 %v585, 0.0
        %v618 = vadd.f32 %v586, 0.0
        %v619 = vadd.f32 %v587, 0.0
        %v620 = vadd.f32 %v588, 0.0
        %v621 = vadd.f32 %v589, 0.0
        %v622 = vadd.f32 %v590, 0.0
        %v623 = vadd.f32 %v591, 0.0
        %v624 = vadd.f32 %v592, 0.0
        %v625 = vadd.f32 %v593, 0.0
        %626 = vset.pattern.permute.xlu0 1
        %627 = vperm.xlu0 %626, %v367
        %v628 = vpop.permute.xlu0 %627
        %629 = vset.pattern.permute.xlu0 1
        %630 = vperm.xlu0 %629, %v368
        %v631 = vpop.permute.xlu0 %630
        %632 = vset.pattern.permute.xlu0 1
        %633 = vperm.xlu0 %632, %v369
        %v634 = vpop.permute.xlu0 %633
        %635 = vset.pattern.permute.xlu0 1
        %636 = vperm.xlu0 %635, %v370
        %v637 = vpop.permute.xlu0 %636
        %638 = vset.pattern.permute.xlu0 1
        %639 = vperm.xlu0 %638, %v371
        %v640 = vpop.permute.xlu0 %639
        %641 = vset.pattern.permute.xlu0 1
        %642 = vperm.xlu0 %641, %v372
        %v643 = vpop.permute.xlu0 %642
        %644 = vset.pattern.permute.xlu0 1
        %645 = vperm.xlu0 %644, %v373
        %v646 = vpop.permute.xlu0 %645
        %647 = vset.pattern.permute.xlu0 1
        %648 = vperm.xlu0 %647, %v374
        %v649 = vpop.permute.xlu0 %648
        %650 = vset.pattern.permute.xlu0 1
        %651 = vperm.xlu0 %650, %v375
        %v652 = vpop.permute.xlu0 %651
        %653 = vset.pattern.permute.xlu0 1
        %654 = vperm.xlu0 %653, %v376
        %v655 = vpop.permute.xlu0 %654
        %656 = vset.pattern.permute.xlu0 1
        %657 = vperm.xlu0 %656, %v377
        %v658 = vpop.permute.xlu0 %657
        %659 = vset.pattern.permute.xlu0 1
        %660 = vperm.xlu0 %659, %v378
        %v661 = vpop.permute.xlu0 %660
        %662 = vset.pattern.permute.xlu0 1
        %663 = vperm.xlu0 %662, %v379
        %v664 = vpop.permute.xlu0 %663
        %665 = vset.pattern.permute.xlu0 1
        %666 = vperm.xlu0 %665, %v380
        %v667 = vpop.permute.xlu0 %666
        %668 = vset.pattern.permute.xlu0 1
        %669 = vperm.xlu0 %668, %v381
        %v670 = vpop.permute.xlu0 %669
        %671 = vset.pattern.permute.xlu0 1
        %672 = vperm.xlu0 %671, %v382
        %v673 = vpop.permute.xlu0 %672
        %vm674 = vcmp.eq.s32.totalorder %v400, %v628
        %vm675 = vcmp.eq.s32.totalorder %v401, %v628
        %vm676 = vcmp.eq.s32.totalorder %v400, %v631
        %vm677 = vcmp.eq.s32.totalorder %v401, %v631
        %vm678 = vcmp.eq.s32.totalorder %v400, %v634
        %vm679 = vcmp.eq.s32.totalorder %v401, %v634
        %vm680 = vcmp.eq.s32.totalorder %v400, %v637
        %vm681 = vcmp.eq.s32.totalorder %v401, %v637
        %vm682 = vcmp.eq.s32.totalorder %v400, %v640
        %vm683 = vcmp.eq.s32.totalorder %v401, %v640
        %vm684 = vcmp.eq.s32.totalorder %v400, %v643
        %vm685 = vcmp.eq.s32.totalorder %v401, %v643
        %vm686 = vcmp.eq.s32.totalorder %v400, %v646
        %vm687 = vcmp.eq.s32.totalorder %v401, %v646
        %vm688 = vcmp.eq.s32.totalorder %v400, %v649
        %vm689 = vcmp.eq.s32.totalorder %v401, %v649
        %vm690 = vcmp.eq.s32.totalorder %v400, %v652
        %vm691 = vcmp.eq.s32.totalorder %v401, %v652
        %vm692 = vcmp.eq.s32.totalorder %v400, %v655
        %vm693 = vcmp.eq.s32.totalorder %v401, %v655
        %vm694 = vcmp.eq.s32.totalorder %v400, %v658
        %vm695 = vcmp.eq.s32.totalorder %v401, %v658
        %vm696 = vcmp.eq.s32.totalorder %v400, %v661
        %vm697 = vcmp.eq.s32.totalorder %v401, %v661
        %vm698 = vcmp.eq.s32.totalorder %v400, %v664
        %vm699 = vcmp.eq.s32.totalorder %v401, %v664
        %vm700 = vcmp.eq.s32.totalorder %v400, %v667
        %vm701 = vcmp.eq.s32.totalorder %v401, %v667
        %vm702 = vcmp.eq.s32.totalorder %v400, %v670
        %vm703 = vcmp.eq.s32.totalorder %v401, %v670
        %vm704 = vcmp.eq.s32.totalorder %v400, %v673
        %vm705 = vcmp.eq.s32.totalorder %v401, %v673
        %706 = vset.pattern.permute.xlu0 1
        %707 = vperm.xlu0 %706, %v383
        %v708 = vpop.permute.xlu0 %707
        %710 = vset.pattern.permute.xlu0 1
        %711 = vperm.xlu0 %710, %v384
        %v712 = vpop.permute.xlu0 %711
        %714 = vset.pattern.permute.xlu0 1
        %715 = vperm.xlu0 %714, %v385
        %v716 = vpop.permute.xlu0 %715
        %718 = vset.pattern.permute.xlu0 1
        %719 = vperm.xlu0 %718, %v386
        %v720 = vpop.permute.xlu0 %719
        %722 = vset.pattern.permute.xlu0 1
        %723 = vperm.xlu0 %722, %v387
        %v724 = vpop.permute.xlu0 %723
        %726 = vset.pattern.permute.xlu0 1
        %727 = vperm.xlu0 %726, %v388
        %v728 = vpop.permute.xlu0 %727
        %730 = vset.pattern.permute.xlu0 1
        %731 = vperm.xlu0 %730, %v389
        %v732 = vpop.permute.xlu0 %731
        %734 = vset.pattern.permute.xlu0 1
        %735 = vperm.xlu0 %734, %v390
        %v736 = vpop.permute.xlu0 %735
        %738 = vset.pattern.permute.xlu0 1
        %739 = vperm.xlu0 %738, %v391
        %v740 = vpop.permute.xlu0 %739
        %742 = vset.pattern.permute.xlu0 1
        %743 = vperm.xlu0 %742, %v392
        %v744 = vpop.permute.xlu0 %743
        %746 = vset.pattern.permute.xlu0 1
        %747 = vperm.xlu0 %746, %v393
        %v748 = vpop.permute.xlu0 %747
        %750 = vset.pattern.permute.xlu0 1
        %751 = vperm.xlu0 %750, %v394
        %v752 = vpop.permute.xlu0 %751
        %754 = vset.pattern.permute.xlu0 1
        %755 = vperm.xlu0 %754, %v395
        %v756 = vpop.permute.xlu0 %755
        %758 = vset.pattern.permute.xlu0 1
        %759 = vperm.xlu0 %758, %v396
        %v760 = vpop.permute.xlu0 %759
        %762 = vset.pattern.permute.xlu0 1
        %763 = vperm.xlu0 %762, %v397
        %v764 = vpop.permute.xlu0 %763
        %766 = vset.pattern.permute.xlu0 1
        %767 = vperm.xlu0 %766, %v398
        %v768 = vpop.permute.xlu0 %767
        %v770 = vsel %vm674, %v708, 0.0
        %v771 = vsel %vm675, %v708, 0.0
        %v772 = vsel %vm676, %v712, 0.0
        %v773 = vsel %vm677, %v712, 0.0
        %v774 = vsel %vm678, %v716, 0.0
        %v775 = vsel %vm679, %v716, 0.0
        %v776 = vsel %vm680, %v720, 0.0
        %v777 = vsel %vm681, %v720, 0.0
        %v778 = vsel %vm682, %v724, 0.0
        %v779 = vsel %vm683, %v724, 0.0
        %v780 = vsel %vm684, %v728, 0.0
        %v781 = vsel %vm685, %v728, 0.0
        %v782 = vsel %vm686, %v732, 0.0
        %v783 = vsel %vm687, %v732, 0.0
        %v784 = vsel %vm688, %v736, 0.0
        %v785 = vsel %vm689, %v736, 0.0
        %v786 = vsel %vm690, %v740, 0.0
        %v787 = vsel %vm691, %v740, 0.0
        %v788 = vsel %vm692, %v744, 0.0
        %v789 = vsel %vm693, %v744, 0.0
        %v790 = vsel %vm694, %v748, 0.0
        %v791 = vsel %vm695, %v748, 0.0
        %v792 = vsel %vm696, %v752, 0.0
        %v793 = vsel %vm697, %v752, 0.0
        %v794 = vsel %vm698, %v756, 0.0
        %v795 = vsel %vm699, %v756, 0.0
        %v796 = vsel %vm700, %v760, 0.0
        %v797 = vsel %vm701, %v760, 0.0
        %v798 = vsel %vm702, %v764, 0.0
        %v799 = vsel %vm703, %v764, 0.0
        %v800 = vsel %vm704, %v768, 0.0
        %v801 = vsel %vm705, %v768, 0.0
        %v802 = vadd.f32 %v594, %v770
        %v803 = vadd.f32 %v595, %v771
        %v804 = vadd.f32 %v596, %v772
        %v805 = vadd.f32 %v597, %v773
        %v806 = vadd.f32 %v598, %v774
        %v807 = vadd.f32 %v599, %v775
        %v808 = vadd.f32 %v600, %v776
        %v809 = vadd.f32 %v601, %v777
        %v810 = vadd.f32 %v602, %v778
        %v811 = vadd.f32 %v603, %v779
        %v812 = vadd.f32 %v604, %v780
        %v813 = vadd.f32 %v605, %v781
        %v814 = vadd.f32 %v606, %v782
        %v815 = vadd.f32 %v607, %v783
        %v816 = vadd.f32 %v608, %v784
        %v817 = vadd.f32 %v609, %v785
        %v818 = vadd.f32 %v610, %v786
        %v819 = vadd.f32 %v611, %v787
        %v820 = vadd.f32 %v612, %v788
        %v821 = vadd.f32 %v613, %v789
        %v822 = vadd.f32 %v614, %v790
        %v823 = vadd.f32 %v615, %v791
        %v824 = vadd.f32 %v616, %v792
        %v825 = vadd.f32 %v617, %v793
        %v826 = vadd.f32 %v618, %v794
        %v827 = vadd.f32 %v619, %v795
        %v828 = vadd.f32 %v620, %v796
        %v829 = vadd.f32 %v621, %v797
        %v830 = vadd.f32 %v622, %v798
        %v831 = vadd.f32 %v623, %v799
        %v832 = vadd.f32 %v624, %v800
        %v833 = vadd.f32 %v625, %v801
        %834 = vset.pattern.permute.xlu0 2
        %835 = vperm.xlu0 %834, %v367
        %v836 = vpop.permute.xlu0 %835
        %837 = vset.pattern.permute.xlu0 2
        %838 = vperm.xlu0 %837, %v368
        %v839 = vpop.permute.xlu0 %838
        %840 = vset.pattern.permute.xlu0 2
        %841 = vperm.xlu0 %840, %v369
        %v842 = vpop.permute.xlu0 %841
        %843 = vset.pattern.permute.xlu0 2
        %844 = vperm.xlu0 %843, %v370
        %v845 = vpop.permute.xlu0 %844
        %846 = vset.pattern.permute.xlu0 2
        %847 = vperm.xlu0 %846, %v371
        %v848 = vpop.permute.xlu0 %847
        %849 = vset.pattern.permute.xlu0 2
        %850 = vperm.xlu0 %849, %v372
        %v851 = vpop.permute.xlu0 %850
        %852 = vset.pattern.permute.xlu0 2
        %853 = vperm.xlu0 %852, %v373
        %v854 = vpop.permute.xlu0 %853
        %855 = vset.pattern.permute.xlu0 2
        %856 = vperm.xlu0 %855, %v374
        %v857 = vpop.permute.xlu0 %856
        %858 = vset.pattern.permute.xlu0 2
        %859 = vperm.xlu0 %858, %v375
        %v860 = vpop.permute.xlu0 %859
        %861 = vset.pattern.permute.xlu0 2
        %862 = vperm.xlu0 %861, %v376
        %v863 = vpop.permute.xlu0 %862
        %864 = vset.pattern.permute.xlu0 2
        %865 = vperm.xlu0 %864, %v377
        %v866 = vpop.permute.xlu0 %865
        %867 = vset.pattern.permute.xlu0 2
        %868 = vperm.xlu0 %867, %v378
        %v869 = vpop.permute.xlu0 %868
        %870 = vset.pattern.permute.xlu0 2
        %871 = vperm.xlu0 %870, %v379
        %v872 = vpop.permute.xlu0 %871
        %873 = vset.pattern.permute.xlu0 2
        %874 = vperm.xlu0 %873, %v380
        %v875 = vpop.permute.xlu0 %874
        %876 = vset.pattern.permute.xlu0 2
        %877 = vperm.xlu0 %876, %v381
        %v878 = vpop.permute.xlu0 %877
        %879 = vset.pattern.permute.xlu0 2
        %880 = vperm.xlu0 %879, %v382
        %v881 = vpop.permute.xlu0 %880
        %vm882 = vcmp.eq.s32.totalorder %v400, %v836
        %vm883 = vcmp.eq.s32.totalorder %v401, %v836
        %vm884 = vcmp.eq.s32.totalorder %v400, %v839
        %vm885 = vcmp.eq.s32.totalorder %v401, %v839
        %vm886 = vcmp.eq.s32.totalorder %v400, %v842
        %vm887 = vcmp.eq.s32.totalorder %v401, %v842
        %vm888 = vcmp.eq.s32.totalorder %v400, %v845
        %vm889 = vcmp.eq.s32.totalorder %v401, %v845
        %vm890 = vcmp.eq.s32.totalorder %v400, %v848
        %vm891 = vcmp.eq.s32.totalorder %v401, %v848
        %vm892 = vcmp.eq.s32.totalorder %v400, %v851
        %vm893 = vcmp.eq.s32.totalorder %v401, %v851
        %vm894 = vcmp.eq.s32.totalorder %v400, %v854
        %vm895 = vcmp.eq.s32.totalorder %v401, %v854
        %vm896 = vcmp.eq.s32.totalorder %v400, %v857
        %vm897 = vcmp.eq.s32.totalorder %v401, %v857
        %vm898 = vcmp.eq.s32.totalorder %v400, %v860
        %vm899 = vcmp.eq.s32.totalorder %v401, %v860
        %vm900 = vcmp.eq.s32.totalorder %v400, %v863
        %vm901 = vcmp.eq.s32.totalorder %v401, %v863
        %vm902 = vcmp.eq.s32.totalorder %v400, %v866
        %vm903 = vcmp.eq.s32.totalorder %v401, %v866
        %vm904 = vcmp.eq.s32.totalorder %v400, %v869
        %vm905 = vcmp.eq.s32.totalorder %v401, %v869
        %vm906 = vcmp.eq.s32.totalorder %v400, %v872
        %vm907 = vcmp.eq.s32.totalorder %v401, %v872
        %vm908 = vcmp.eq.s32.totalorder %v400, %v875
        %vm909 = vcmp.eq.s32.totalorder %v401, %v875
        %vm910 = vcmp.eq.s32.totalorder %v400, %v878
        %vm911 = vcmp.eq.s32.totalorder %v401, %v878
        %vm912 = vcmp.eq.s32.totalorder %v400, %v881
        %vm913 = vcmp.eq.s32.totalorder %v401, %v881
        %914 = vset.pattern.permute.xlu0 2
        %915 = vperm.xlu0 %914, %v383
        %v916 = vpop.permute.xlu0 %915
        %918 = vset.pattern.permute.xlu0 2
        %919 = vperm.xlu0 %918, %v384
        %v920 = vpop.permute.xlu0 %919
        %922 = vset.pattern.permute.xlu0 2
        %923 = vperm.xlu0 %922, %v385
        %v924 = vpop.permute.xlu0 %923
        %926 = vset.pattern.permute.xlu0 2
        %927 = vperm.xlu0 %926, %v386
        %v928 = vpop.permute.xlu0 %927
        %930 = vset.pattern.permute.xlu0 2
        %931 = vperm.xlu0 %930, %v387
        %v932 = vpop.permute.xlu0 %931
        %934 = vset.pattern.permute.xlu0 2
        %935 = vperm.xlu0 %934, %v388
        %v936 = vpop.permute.xlu0 %935
        %938 = vset.pattern.permute.xlu0 2
        %939 = vperm.xlu0 %938, %v389
        %v940 = vpop.permute.xlu0 %939
        %942 = vset.pattern.permute.xlu0 2
        %943 = vperm.xlu0 %942, %v390
        %v944 = vpop.permute.xlu0 %943
        %946 = vset.pattern.permute.xlu0 2
        %947 = vperm.xlu0 %946, %v391
        %v948 = vpop.permute.xlu0 %947
        %950 = vset.pattern.permute.xlu0 2
        %951 = vperm.xlu0 %950, %v392
        %v952 = vpop.permute.xlu0 %951
        %954 = vset.pattern.permute.xlu0 2
        %955 = vperm.xlu0 %954, %v393
        %v956 = vpop.permute.xlu0 %955
        %958 = vset.pattern.permute.xlu0 2
        %959 = vperm.xlu0 %958, %v394
        %v960 = vpop.permute.xlu0 %959
        %962 = vset.pattern.permute.xlu0 2
        %963 = vperm.xlu0 %962, %v395
        %v964 = vpop.permute.xlu0 %963
        %966 = vset.pattern.permute.xlu0 2
        %967 = vperm.xlu0 %966, %v396
        %v968 = vpop.permute.xlu0 %967
        %970 = vset.pattern.permute.xlu0 2
        %971 = vperm.xlu0 %970, %v397
        %v972 = vpop.permute.xlu0 %971
        %974 = vset.pattern.permute.xlu0 2
        %975 = vperm.xlu0 %974, %v398
        %v976 = vpop.permute.xlu0 %975
        %v978 = vsel %vm882, %v916, 0.0
        %v979 = vsel %vm883, %v916, 0.0
        %v980 = vsel %vm884, %v920, 0.0
        %v981 = vsel %vm885, %v920, 0.0
        %v982 = vsel %vm886, %v924, 0.0
        %v983 = vsel %vm887, %v924, 0.0
        %v984 = vsel %vm888, %v928, 0.0
        %v985 = vsel %vm889, %v928, 0.0
        %v986 = vsel %vm890, %v932, 0.0
        %v987 = vsel %vm891, %v932, 0.0
        %v988 = vsel %vm892, %v936, 0.0
        %v989 = vsel %vm893, %v936, 0.0
        %v990 = vsel %vm894, %v940, 0.0
        %v991 = vsel %vm895, %v940, 0.0
        %v992 = vsel %vm896, %v944, 0.0
        %v993 = vsel %vm897, %v944, 0.0
        %v994 = vsel %vm898, %v948, 0.0
        %v995 = vsel %vm899, %v948, 0.0
        %v996 = vsel %vm900, %v952, 0.0
        %v997 = vsel %vm901, %v952, 0.0
        %v998 = vsel %vm902, %v956, 0.0
        %v999 = vsel %vm903, %v956, 0.0
        %v1000 = vsel %vm904, %v960, 0.0
        %v1001 = vsel %vm905, %v960, 0.0
        %v1002 = vsel %vm906, %v964, 0.0
        %v1003 = vsel %vm907, %v964, 0.0
        %v1004 = vsel %vm908, %v968, 0.0
        %v1005 = vsel %vm909, %v968, 0.0
        %v1006 = vsel %vm910, %v972, 0.0
        %v1007 = vsel %vm911, %v972, 0.0
        %v1008 = vsel %vm912, %v976, 0.0
        %v1009 = vsel %vm913, %v976, 0.0
        %v1010 = vadd.f32 %v802, %v978
        %v1011 = vadd.f32 %v803, %v979
        %v1012 = vadd.f32 %v804, %v980
        %v1013 = vadd.f32 %v805, %v981
        %v1014 = vadd.f32 %v806, %v982
        %v1015 = vadd.f32 %v807, %v983
        %v1016 = vadd.f32 %v808, %v984
        %v1017 = vadd.f32 %v809, %v985
        %v1018 = vadd.f32 %v810, %v986
        %v1019 = vadd.f32 %v811, %v987
        %v1020 = vadd.f32 %v812, %v988
        %v1021 = vadd.f32 %v813, %v989
        %v1022 = vadd.f32 %v814, %v990
        %v1023 = vadd.f32 %v815, %v991
        %v1024 = vadd.f32 %v816, %v992
        %v1025 = vadd.f32 %v817, %v993
        %v1026 = vadd.f32 %v818, %v994
        %v1027 = vadd.f32 %v819, %v995
        %v1028 = vadd.f32 %v820, %v996
        %v1029 = vadd.f32 %v821, %v997
        %v1030 = vadd.f32 %v822, %v998
        %v1031 = vadd.f32 %v823, %v999
        %v1032 = vadd.f32 %v824, %v1000
        %v1033 = vadd.f32 %v825, %v1001
        %v1034 = vadd.f32 %v826, %v1002
        %v1035 = vadd.f32 %v827, %v1003
        %v1036 = vadd.f32 %v828, %v1004
        %v1037 = vadd.f32 %v829, %v1005
        %v1038 = vadd.f32 %v830, %v1006
        %v1039 = vadd.f32 %v831, %v1007
        %v1040 = vadd.f32 %v832, %v1008
        %v1041 = vadd.f32 %v833, %v1009
        %1042 = vset.pattern.permute.xlu0 3
        %1043 = vperm.xlu0 %1042, %v367
        %v1044 = vpop.permute.xlu0 %1043
        %1045 = vset.pattern.permute.xlu0 3
        %1046 = vperm.xlu0 %1045, %v368
        %v1047 = vpop.permute.xlu0 %1046
        %1048 = vset.pattern.permute.xlu0 3
        %1049 = vperm.xlu0 %1048, %v369
        %v1050 = vpop.permute.xlu0 %1049
        %1051 = vset.pattern.permute.xlu0 3
        %1052 = vperm.xlu0 %1051, %v370
        %v1053 = vpop.permute.xlu0 %1052
        %1054 = vset.pattern.permute.xlu0 3
        %1055 = vperm.xlu0 %1054, %v371
        %v1056 = vpop.permute.xlu0 %1055
        %1057 = vset.pattern.permute.xlu0 3
        %1058 = vperm.xlu0 %1057, %v372
        %v1059 = vpop.permute.xlu0 %1058
        %1060 = vset.pattern.permute.xlu0 3
        %1061 = vperm.xlu0 %1060, %v373
        %v1062 = vpop.permute.xlu0 %1061
        %1063 = vset.pattern.permute.xlu0 3
        %1064 = vperm.xlu0 %1063, %v374
        %v1065 = vpop.permute.xlu0 %1064
        %1066 = vset.pattern.permute.xlu0 3
        %1067 = vperm.xlu0 %1066, %v375
        %v1068 = vpop.permute.xlu0 %1067
        %1069 = vset.pattern.permute.xlu0 3
        %1070 = vperm.xlu0 %1069, %v376
        %v1071 = vpop.permute.xlu0 %1070
        %1072 = vset.pattern.permute.xlu0 3
        %1073 = vperm.xlu0 %1072, %v377
        %v1074 = vpop.permute.xlu0 %1073
        %1075 = vset.pattern.permute.xlu0 3
        %1076 = vperm.xlu0 %1075, %v378
        %v1077 = vpop.permute.xlu0 %1076
        %1078 = vset.pattern.permute.xlu0 3
        %1079 = vperm.xlu0 %1078, %v379
        %v1080 = vpop.permute.xlu0 %1079
        %1081 = vset.pattern.permute.xlu0 3
        %1082 = vperm.xlu0 %1081, %v380
        %v1083 = vpop.permute.xlu0 %1082
        %1084 = vset.pattern.permute.xlu0 3
        %1085 = vperm.xlu0 %1084, %v381
        %v1086 = vpop.permute.xlu0 %1085
        %1087 = vset.pattern.permute.xlu0 3
        %1088 = vperm.xlu0 %1087, %v382
        %v1089 = vpop.permute.xlu0 %1088
        %vm1090 = vcmp.eq.s32.totalorder %v400, %v1044
        %vm1091 = vcmp.eq.s32.totalorder %v401, %v1044
        %vm1092 = vcmp.eq.s32.totalorder %v400, %v1047
        %vm1093 = vcmp.eq.s32.totalorder %v401, %v1047
        %vm1094 = vcmp.eq.s32.totalorder %v400, %v1050
        %vm1095 = vcmp.eq.s32.totalorder %v401, %v1050
        %vm1096 = vcmp.eq.s32.totalorder %v400, %v1053
        %vm1097 = vcmp.eq.s32.totalorder %v401, %v1053
        %vm1098 = vcmp.eq.s32.totalorder %v400, %v1056
        %vm1099 = vcmp.eq.s32.totalorder %v401, %v1056
        %vm1100 = vcmp.eq.s32.totalorder %v400, %v1059
        %vm1101 = vcmp.eq.s32.totalorder %v401, %v1059
        %vm1102 = vcmp.eq.s32.totalorder %v400, %v1062
        %vm1103 = vcmp.eq.s32.totalorder %v401, %v1062
        %vm1104 = vcmp.eq.s32.totalorder %v400, %v1065
        %vm1105 = vcmp.eq.s32.totalorder %v401, %v1065
        %vm1106 = vcmp.eq.s32.totalorder %v400, %v1068
        %vm1107 = vcmp.eq.s32.totalorder %v401, %v1068
        %vm1108 = vcmp.eq.s32.totalorder %v400, %v1071
        %vm1109 = vcmp.eq.s32.totalorder %v401, %v1071
        %vm1110 = vcmp.eq.s32.totalorder %v400, %v1074
        %vm1111 = vcmp.eq.s32.totalorder %v401, %v1074
        %vm1112 = vcmp.eq.s32.totalorder %v400, %v1077
        %vm1113 = vcmp.eq.s32.totalorder %v401, %v1077
        %vm1114 = vcmp.eq.s32.totalorder %v400, %v1080
        %vm1115 = vcmp.eq.s32.totalorder %v401, %v1080
        %vm1116 = vcmp.eq.s32.totalorder %v400, %v1083
        %vm1117 = vcmp.eq.s32.totalorder %v401, %v1083
        %vm1118 = vcmp.eq.s32.totalorder %v400, %v1086
        %vm1119 = vcmp.eq.s32.totalorder %v401, %v1086
        %vm1120 = vcmp.eq.s32.totalorder %v400, %v1089
        %vm1121 = vcmp.eq.s32.totalorder %v401, %v1089
        %1122 = vset.pattern.permute.xlu0 3
        %1123 = vperm.xlu0 %1122, %v383
        %v1124 = vpop.permute.xlu0 %1123
        %1126 = vset.pattern.permute.xlu0 3
        %1127 = vperm.xlu0 %1126, %v384
        %v1128 = vpop.permute.xlu0 %1127
        %1130 = vset.pattern.permute.xlu0 3
        %1131 = vperm.xlu0 %1130, %v385
        %v1132 = vpop.permute.xlu0 %1131
        %1134 = vset.pattern.permute.xlu0 3
        %1135 = vperm.xlu0 %1134, %v386
        %v1136 = vpop.permute.xlu0 %1135
        %1138 = vset.pattern.permute.xlu0 3
        %1139 = vperm.xlu0 %1138, %v387
        %v1140 = vpop.permute.xlu0 %1139
        %1142 = vset.pattern.permute.xlu0 3
        %1143 = vperm.xlu0 %1142, %v388
        %v1144 = vpop.permute.xlu0 %1143
        %1146 = vset.pattern.permute.xlu0 3
        %1147 = vperm.xlu0 %1146, %v389
        %v1148 = vpop.permute.xlu0 %1147
        %1150 = vset.pattern.permute.xlu0 3
        %1151 = vperm.xlu0 %1150, %v390
        %v1152 = vpop.permute.xlu0 %1151
        %1154 = vset.pattern.permute.xlu0 3
        %1155 = vperm.xlu0 %1154, %v391
        %v1156 = vpop.permute.xlu0 %1155
        %1158 = vset.pattern.permute.xlu0 3
        %1159 = vperm.xlu0 %1158, %v392
        %v1160 = vpop.permute.xlu0 %1159
        %1162 = vset.pattern.permute.xlu0 3
        %1163 = vperm.xlu0 %1162, %v393
        %v1164 = vpop.permute.xlu0 %1163
        %1166 = vset.pattern.permute.xlu0 3
        %1167 = vperm.xlu0 %1166, %v394
        %v1168 = vpop.permute.xlu0 %1167
        %1170 = vset.pattern.permute.xlu0 3
        %1171 = vperm.xlu0 %1170, %v395
        %v1172 = vpop.permute.xlu0 %1171
        %1174 = vset.pattern.permute.xlu0 3
        %1175 = vperm.xlu0 %1174, %v396
        %v1176 = vpop.permute.xlu0 %1175
        %1178 = vset.pattern.permute.xlu0 3
        %1179 = vperm.xlu0 %1178, %v397
        %v1180 = vpop.permute.xlu0 %1179
        %1182 = vset.pattern.permute.xlu0 3
        %1183 = vperm.xlu0 %1182, %v398
        %v1184 = vpop.permute.xlu0 %1183
        %v1186 = vsel %vm1090, %v1124, 0.0
        %v1187 = vsel %vm1091, %v1124, 0.0
        %v1188 = vsel %vm1092, %v1128, 0.0
        %v1189 = vsel %vm1093, %v1128, 0.0
        %v1190 = vsel %vm1094, %v1132, 0.0
        %v1191 = vsel %vm1095, %v1132, 0.0
        %v1192 = vsel %vm1096, %v1136, 0.0
        %v1193 = vsel %vm1097, %v1136, 0.0
        %v1194 = vsel %vm1098, %v1140, 0.0
        %v1195 = vsel %vm1099, %v1140, 0.0
        %v1196 = vsel %vm1100, %v1144, 0.0
        %v1197 = vsel %vm1101, %v1144, 0.0
        %v1198 = vsel %vm1102, %v1148, 0.0
        %v1199 = vsel %vm1103, %v1148, 0.0
        %v1200 = vsel %vm1104, %v1152, 0.0
        %v1201 = vsel %vm1105, %v1152, 0.0
        %v1202 = vsel %vm1106, %v1156, 0.0
        %v1203 = vsel %vm1107, %v1156, 0.0
        %v1204 = vsel %vm1108, %v1160, 0.0
        %v1205 = vsel %vm1109, %v1160, 0.0
        %v1206 = vsel %vm1110, %v1164, 0.0
        %v1207 = vsel %vm1111, %v1164, 0.0
        %v1208 = vsel %vm1112, %v1168, 0.0
        %v1209 = vsel %vm1113, %v1168, 0.0
        %v1210 = vsel %vm1114, %v1172, 0.0
        %v1211 = vsel %vm1115, %v1172, 0.0
        %v1212 = vsel %vm1116, %v1176, 0.0
        %v1213 = vsel %vm1117, %v1176, 0.0
        %v1214 = vsel %vm1118, %v1180, 0.0
        %v1215 = vsel %vm1119, %v1180, 0.0
        %v1216 = vsel %vm1120, %v1184, 0.0
        %v1217 = vsel %vm1121, %v1184, 0.0
        %v1218 = vadd.f32 %v1010, %v1186
        %v1219 = vadd.f32 %v1011, %v1187
        %v1220 = vadd.f32 %v1012, %v1188
        %v1221 = vadd.f32 %v1013, %v1189
        %v1222 = vadd.f32 %v1014, %v1190
        %v1223 = vadd.f32 %v1015, %v1191
        %v1224 = vadd.f32 %v1016, %v1192
        %v1225 = vadd.f32 %v1017, %v1193
        %v1226 = vadd.f32 %v1018, %v1194
        %v1227 = vadd.f32 %v1019, %v1195
        %v1228 = vadd.f32 %v1020, %v1196
        %v1229 = vadd.f32 %v1021, %v1197
        %v1230 = vadd.f32 %v1022, %v1198
        %v1231 = vadd.f32 %v1023, %v1199
        %v1232 = vadd.f32 %v1024, %v1200
        %v1233 = vadd.f32 %v1025, %v1201
        %v1234 = vadd.f32 %v1026, %v1202
        %v1235 = vadd.f32 %v1027, %v1203
        %v1236 = vadd.f32 %v1028, %v1204
        %v1237 = vadd.f32 %v1029, %v1205
        %v1238 = vadd.f32 %v1030, %v1206
        %v1239 = vadd.f32 %v1031, %v1207
        %v1240 = vadd.f32 %v1032, %v1208
        %v1241 = vadd.f32 %v1033, %v1209
        %v1242 = vadd.f32 %v1034, %v1210
        %v1243 = vadd.f32 %v1035, %v1211
        %v1244 = vadd.f32 %v1036, %v1212
        %v1245 = vadd.f32 %v1037, %v1213
        %v1246 = vadd.f32 %v1038, %v1214
        %v1247 = vadd.f32 %v1039, %v1215
        %v1248 = vadd.f32 %v1040, %v1216
        %v1249 = vadd.f32 %v1041, %v1217
        %1250 = vset.pattern.permute.xlu0 4
        %1251 = vperm.xlu0 %1250, %v367
        %v1252 = vpop.permute.xlu0 %1251
        %1253 = vset.pattern.permute.xlu0 4
        %1254 = vperm.xlu0 %1253, %v368
        %v1255 = vpop.permute.xlu0 %1254
        %1256 = vset.pattern.permute.xlu0 4
        %1257 = vperm.xlu0 %1256, %v369
        %v1258 = vpop.permute.xlu0 %1257
        %1259 = vset.pattern.permute.xlu0 4
        %1260 = vperm.xlu0 %1259, %v370
        %v1261 = vpop.permute.xlu0 %1260
        %1262 = vset.pattern.permute.xlu0 4
        %1263 = vperm.xlu0 %1262, %v371
        %v1264 = vpop.permute.xlu0 %1263
        %1265 = vset.pattern.permute.xlu0 4
        %1266 = vperm.xlu0 %1265, %v372
        %v1267 = vpop.permute.xlu0 %1266
        %1268 = vset.pattern.permute.xlu0 4
        %1269 = vperm.xlu0 %1268, %v373
        %v1270 = vpop.permute.xlu0 %1269
        %1271 = vset.pattern.permute.xlu0 4
        %1272 = vperm.xlu0 %1271, %v374
        %v1273 = vpop.permute.xlu0 %1272
        %1274 = vset.pattern.permute.xlu0 4
        %1275 = vperm.xlu0 %1274, %v375
        %v1276 = vpop.permute.xlu0 %1275
        %1277 = vset.pattern.permute.xlu0 4
        %1278 = vperm.xlu0 %1277, %v376
        %v1279 = vpop.permute.xlu0 %1278
        %1280 = vset.pattern.permute.xlu0 4
        %1281 = vperm.xlu0 %1280, %v377
        %v1282 = vpop.permute.xlu0 %1281
        %1283 = vset.pattern.permute.xlu0 4
        %1284 = vperm.xlu0 %1283, %v378
        %v1285 = vpop.permute.xlu0 %1284
        %1286 = vset.pattern.permute.xlu0 4
        %1287 = vperm.xlu0 %1286, %v379
        %v1288 = vpop.permute.xlu0 %1287
        %1289 = vset.pattern.permute.xlu0 4
        %1290 = vperm.xlu0 %1289, %v380
        %v1291 = vpop.permute.xlu0 %1290
        %1292 = vset.pattern.permute.xlu0 4
        %1293 = vperm.xlu0 %1292, %v381
        %v1294 = vpop.permute.xlu0 %1293
        %1295 = vset.pattern.permute.xlu0 4
        %1296 = vperm.xlu0 %1295, %v382
        %v1297 = vpop.permute.xlu0 %1296
        %vm1298 = vcmp.eq.s32.totalorder %v400, %v1252
        %vm1299 = vcmp.eq.s32.totalorder %v401, %v1252
        %vm1300 = vcmp.eq.s32.totalorder %v400, %v1255
        %vm1301 = vcmp.eq.s32.totalorder %v401, %v1255
        %vm1302 = vcmp.eq.s32.totalorder %v400, %v1258
        %vm1303 = vcmp.eq.s32.totalorder %v401, %v1258
        %vm1304 = vcmp.eq.s32.totalorder %v400, %v1261
        %vm1305 = vcmp.eq.s32.totalorder %v401, %v1261
        %vm1306 = vcmp.eq.s32.totalorder %v400, %v1264
        %vm1307 = vcmp.eq.s32.totalorder %v401, %v1264
        %vm1308 = vcmp.eq.s32.totalorder %v400, %v1267
        %vm1309 = vcmp.eq.s32.totalorder %v401, %v1267
        %vm1310 = vcmp.eq.s32.totalorder %v400, %v1270
        %vm1311 = vcmp.eq.s32.totalorder %v401, %v1270
        %vm1312 = vcmp.eq.s32.totalorder %v400, %v1273
        %vm1313 = vcmp.eq.s32.totalorder %v401, %v1273
        %vm1314 = vcmp.eq.s32.totalorder %v400, %v1276
        %vm1315 = vcmp.eq.s32.totalorder %v401, %v1276
        %vm1316 = vcmp.eq.s32.totalorder %v400, %v1279
        %vm1317 = vcmp.eq.s32.totalorder %v401, %v1279
        %vm1318 = vcmp.eq.s32.totalorder %v400, %v1282
        %vm1319 = vcmp.eq.s32.totalorder %v401, %v1282
        %vm1320 = vcmp.eq.s32.totalorder %v400, %v1285
        %vm1321 = vcmp.eq.s32.totalorder %v401, %v1285
        %vm1322 = vcmp.eq.s32.totalorder %v400, %v1288
        %vm1323 = vcmp.eq.s32.totalorder %v401, %v1288
        %vm1324 = vcmp.eq.s32.totalorder %v400, %v1291
        %vm1325 = vcmp.eq.s32.totalorder %v401, %v1291
        %vm1326 = vcmp.eq.s32.totalorder %v400, %v1294
        %vm1327 = vcmp.eq.s32.totalorder %v401, %v1294
        %vm1328 = vcmp.eq.s32.totalorder %v400, %v1297
        %vm1329 = vcmp.eq.s32.totalorder %v401, %v1297
        %1330 = vset.pattern.permute.xlu0 4
        %1331 = vperm.xlu0 %1330, %v383
        %v1332 = vpop.permute.xlu0 %1331
        %1334 = vset.pattern.permute.xlu0 4
        %1335 = vperm.xlu0 %1334, %v384
        %v1336 = vpop.permute.xlu0 %1335
        %1338 = vset.pattern.permute.xlu0 4
        %1339 = vperm.xlu0 %1338, %v385
        %v1340 = vpop.permute.xlu0 %1339
        %1342 = vset.pattern.permute.xlu0 4
        %1343 = vperm.xlu0 %1342, %v386
        %v1344 = vpop.permute.xlu0 %1343
        %1346 = vset.pattern.permute.xlu0 4
        %1347 = vperm.xlu0 %1346, %v387
        %v1348 = vpop.permute.xlu0 %1347
        %1350 = vset.pattern.permute.xlu0 4
        %1351 = vperm.xlu0 %1350, %v388
        %v1352 = vpop.permute.xlu0 %1351
        %1354 = vset.pattern.permute.xlu0 4
        %1355 = vperm.xlu0 %1354, %v389
        %v1356 = vpop.permute.xlu0 %1355
        %1358 = vset.pattern.permute.xlu0 4
        %1359 = vperm.xlu0 %1358, %v390
        %v1360 = vpop.permute.xlu0 %1359
        %1362 = vset.pattern.permute.xlu0 4
        %1363 = vperm.xlu0 %1362, %v391
        %v1364 = vpop.permute.xlu0 %1363
        %1366 = vset.pattern.permute.xlu0 4
        %1367 = vperm.xlu0 %1366, %v392
        %v1368 = vpop.permute.xlu0 %1367
        %1370 = vset.pattern.permute.xlu0 4
        %1371 = vperm.xlu0 %1370, %v393
        %v1372 = vpop.permute.xlu0 %1371
        %1374 = vset.pattern.permute.xlu0 4
        %1375 = vperm.xlu0 %1374, %v394
        %v1376 = vpop.permute.xlu0 %1375
        %1378 = vset.pattern.permute.xlu0 4
        %1379 = vperm.xlu0 %1378, %v395
        %v1380 = vpop.permute.xlu0 %1379
        %1382 = vset.pattern.permute.xlu0 4
        %1383 = vperm.xlu0 %1382, %v396
        %v1384 = vpop.permute.xlu0 %1383
        %1386 = vset.pattern.permute.xlu0 4
        %1387 = vperm.xlu0 %1386, %v397
        %v1388 = vpop.permute.xlu0 %1387
        %1390 = vset.pattern.permute.xlu0 4
        %1391 = vperm.xlu0 %1390, %v398
        %v1392 = vpop.permute.xlu0 %1391
        %v1394 = vsel %vm1298, %v1332, 0.0
        %v1395 = vsel %vm1299, %v1332, 0.0
        %v1396 = vsel %vm1300, %v1336, 0.0
        %v1397 = vsel %vm1301, %v1336, 0.0
        %v1398 = vsel %vm1302, %v1340, 0.0
        %v1399 = vsel %vm1303, %v1340, 0.0
        %v1400 = vsel %vm1304, %v1344, 0.0
        %v1401 = vsel %vm1305, %v1344, 0.0
        %v1402 = vsel %vm1306, %v1348, 0.0
        %v1403 = vsel %vm1307, %v1348, 0.0
        %v1404 = vsel %vm1308, %v1352, 0.0
        %v1405 = vsel %vm1309, %v1352, 0.0
        %v1406 = vsel %vm1310, %v1356, 0.0
        %v1407 = vsel %vm1311, %v1356, 0.0
        %v1408 = vsel %vm1312, %v1360, 0.0
        %v1409 = vsel %vm1313, %v1360, 0.0
        %v1410 = vsel %vm1314, %v1364, 0.0
        %v1411 = vsel %vm1315, %v1364, 0.0
        %v1412 = vsel %vm1316, %v1368, 0.0
        %v1413 = vsel %vm1317, %v1368, 0.0
        %v1414 = vsel %vm1318, %v1372, 0.0
        %v1415 = vsel %vm1319, %v1372, 0.0
        %v1416 = vsel %vm1320, %v1376, 0.0
        %v1417 = vsel %vm1321, %v1376, 0.0
        %v1418 = vsel %vm1322, %v1380, 0.0
        %v1419 = vsel %vm1323, %v1380, 0.0
        %v1420 = vsel %vm1324, %v1384, 0.0
        %v1421 = vsel %vm1325, %v1384, 0.0
        %v1422 = vsel %vm1326, %v1388, 0.0
        %v1423 = vsel %vm1327, %v1388, 0.0
        %v1424 = vsel %vm1328, %v1392, 0.0
        %v1425 = vsel %vm1329, %v1392, 0.0
        %v1426 = vadd.f32 %v1218, %v1394
        %v1427 = vadd.f32 %v1219, %v1395
        %v1428 = vadd.f32 %v1220, %v1396
        %v1429 = vadd.f32 %v1221, %v1397
        %v1430 = vadd.f32 %v1222, %v1398
        %v1431 = vadd.f32 %v1223, %v1399
        %v1432 = vadd.f32 %v1224, %v1400
        %v1433 = vadd.f32 %v1225, %v1401
        %v1434 = vadd.f32 %v1226, %v1402
        %v1435 = vadd.f32 %v1227, %v1403
        %v1436 = vadd.f32 %v1228, %v1404
        %v1437 = vadd.f32 %v1229, %v1405
        %v1438 = vadd.f32 %v1230, %v1406
        %v1439 = vadd.f32 %v1231, %v1407
        %v1440 = vadd.f32 %v1232, %v1408
        %v1441 = vadd.f32 %v1233, %v1409
        %v1442 = vadd.f32 %v1234, %v1410
        %v1443 = vadd.f32 %v1235, %v1411
        %v1444 = vadd.f32 %v1236, %v1412
        %v1445 = vadd.f32 %v1237, %v1413
        %v1446 = vadd.f32 %v1238, %v1414
        %v1447 = vadd.f32 %v1239, %v1415
        %v1448 = vadd.f32 %v1240, %v1416
        %v1449 = vadd.f32 %v1241, %v1417
        %v1450 = vadd.f32 %v1242, %v1418
        %v1451 = vadd.f32 %v1243, %v1419
        %v1452 = vadd.f32 %v1244, %v1420
        %v1453 = vadd.f32 %v1245, %v1421
        %v1454 = vadd.f32 %v1246, %v1422
        %v1455 = vadd.f32 %v1247, %v1423
        %v1456 = vadd.f32 %v1248, %v1424
        %v1457 = vadd.f32 %v1249, %v1425
        %v1458 = vld [vmem:[%s0] sm:$0xff]
        %v1459 = vld [vmem:[%s0 + $0x8] sm:$0xff]
        %v1460 = vld [vmem:[%s0 + $0x10] sm:$0xff]
        %v1461 = vld [vmem:[%s0 + $0x18] sm:$0xff]
        %v1462 = vld [vmem:[%s0 + $0x20] sm:$0xff]
        %v1463 = vld [vmem:[%s0 + $0x28] sm:$0xff]
        %v1464 = vld [vmem:[%s0 + $0x30] sm:$0xff]
        %v1465 = vld [vmem:[%s0 + $0x38] sm:$0xff]
        %v1466 = vld [vmem:[%s0 + $0x40] sm:$0xff]
        %v1467 = vld [vmem:[%s0 + $0x48] sm:$0xff]
        %v1468 = vld [vmem:[%s0 + $0x50] sm:$0xff]
        %v1469 = vld [vmem:[%s0 + $0x58] sm:$0xff]
        %v1470 = vld [vmem:[%s0 + $0x60] sm:$0xff]
        %v1471 = vld [vmem:[%s0 + $0x68] sm:$0xff]
        %v1472 = vld [vmem:[%s0 + $0x70] sm:$0xff]
        %v1473 = vld [vmem:[%s0 + $0x78] sm:$0xff]
        %v1474 = vld [vmem:[%s0 + $0x80] sm:$0xff]
        %v1475 = vld [vmem:[%s0 + $0x88] sm:$0xff]
        %v1476 = vld [vmem:[%s0 + $0x90] sm:$0xff]
        %v1477 = vld [vmem:[%s0 + $0x98] sm:$0xff]
        %v1478 = vld [vmem:[%s0 + $0xa0] sm:$0xff]
        %v1479 = vld [vmem:[%s0 + $0xa8] sm:$0xff]
        %v1480 = vld [vmem:[%s0 + $0xb0] sm:$0xff]
        %v1481 = vld [vmem:[%s0 + $0xb8] sm:$0xff]
        %v1482 = vld [vmem:[%s0 + $0xc0] sm:$0xff]
        %v1483 = vld [vmem:[%s0 + $0xc8] sm:$0xff]
        %v1484 = vld [vmem:[%s0 + $0xd0] sm:$0xff]
        %v1485 = vld [vmem:[%s0 + $0xd8] sm:$0xff]
        %v1486 = vld [vmem:[%s0 + $0xe0] sm:$0xff]
        %v1487 = vld [vmem:[%s0 + $0xe8] sm:$0xff]
        %v1488 = vld [vmem:[%s0 + $0xf0] sm:$0xff]
        %v1489 = vld [vmem:[%s0 + $0xf8] sm:$0xff]
        %1490 = vmatprep.subr.mxu0 0.0
        %1491 = vmatpush1.msra.mxu0 %v1458
        %1492 = vmatprep.subr.mxu0 0.0
        %1493 = vmatpush1.msra.mxu0 %v1459
        %1494 = vmatprep.subr.mxu0 0.0
        %1495 = vmatpush1.msra.mxu0 %v1460
        %1496 = vmatprep.subr.mxu0 0.0
        %1497 = vmatpush1.msra.mxu0 %v1461
        %1498 = vmatprep.subr.mxu0 0.0
        %1499 = vmatpush1.msra.mxu0 %v1462
        %1500 = vmatprep.subr.mxu0 0.0
        %1501 = vmatpush1.msra.mxu0 %v1463
        %1502 = vmatprep.subr.mxu0 0.0
        %1503 = vmatpush1.msra.mxu0 %v1464
        %1504 = vmatprep.subr.mxu0 0.0
        %1505 = vmatpush1.msra.mxu0 %v1465
        %1506 = vmatprep.subr.mxu0 0.0
        %1507 = vmatpush1.msra.mxu0 %v1466
        %1508 = vmatprep.subr.mxu0 0.0
        %1509 = vmatpush1.msra.mxu0 %v1467
        %1510 = vmatprep.subr.mxu0 0.0
        %1511 = vmatpush1.msra.mxu0 %v1468
        %1512 = vmatprep.subr.mxu0 0.0
        %1513 = vmatpush1.msra.mxu0 %v1469
        %1514 = vmatprep.subr.mxu0 0.0
        %1515 = vmatpush1.msra.mxu0 %v1470
        %1516 = vmatprep.subr.mxu0 0.0
        %1517 = vmatpush1.msra.mxu0 %v1471
        %1518 = vmatprep.subr.mxu0 0.0
        %1519 = vmatpush1.msra.mxu0 %v1472
        %1520 = vmatprep.subr.mxu0 0.0
        %1521 = vmatpush1.msra.mxu0 %v1473
        %1522 = vmatprep.subr.mxu0 0.0
        %1523 = vmatpush1.msra.mxu0 %v1474
        %1524 = vmatprep.subr.mxu0 0.0
        %1525 = vmatpush1.msra.mxu0 %v1475
        %1526 = vmatprep.subr.mxu0 0.0
        %1527 = vmatpush1.msra.mxu0 %v1476
        %1528 = vmatprep.subr.mxu0 0.0
        %1529 = vmatpush1.msra.mxu0 %v1477
        %1530 = vmatprep.subr.mxu0 0.0
        %1531 = vmatpush1.msra.mxu0 %v1478
        %1532 = vmatprep.subr.mxu0 0.0
        %1533 = vmatpush1.msra.mxu0 %v1479
        %1534 = vmatprep.subr.mxu0 0.0
        %1535 = vmatpush1.msra.mxu0 %v1480
        %1536 = vmatprep.subr.mxu0 0.0
        %1537 = vmatpush1.msra.mxu0 %v1481
        %1538 = vmatprep.subr.mxu0 0.0
        %1539 = vmatpush1.msra.mxu0 %v1482
        %1540 = vmatprep.subr.mxu0 0.0
        %1541 = vmatpush1.msra.mxu0 %v1483
        %1542 = vmatprep.subr.mxu0 0.0
        %1543 = vmatpush1.msra.mxu0 %v1484
        %1544 = vmatprep.subr.mxu0 0.0
        %1545 = vmatpush1.msra.mxu0 %v1485
        %1546 = vmatprep.subr.mxu0 0.0
        %1547 = vmatpush1.msra.mxu0 %v1486
        %1548 = vmatprep.subr.mxu0 0.0
        %1549 = vmatpush1.msra.mxu0 %v1487
        %1550 = vmatprep.subr.mxu0 0.0
        %1551 = vmatpush1.msra.mxu0 %v1488
        %1552 = vmatprep.subr.mxu0 0.0
        %1553 = vmatpush1.msra.mxu0 %v1489
        %1554 = vmatprep.mubr.f32.mxu0 %v1427
        %1555 = vmatmul.mubr.f32.gmra.mrb[0].mxu0 %v1426
        %v1556 = vpop.f32.mrb[0].mxu0
        %v1557 = vadd.f32 0.0, %v1556
        %v1558 = vpop.f32.mrb[0].mxu0
        %1559 = vmatprep.mubr.f32.mxu0 %v1429
        %1560 = vmatmul.mubr.f32.gmra.mrb[0].mxu0 %v1428
        %v1561 = vpop.f32.mrb[0].mxu0
        %v1562 = vadd.f32 0.0, %v1561
        %v1563 = vpop.f32.mrb[0].mxu0
        %1564 = vmatprep.mubr.f32.mxu0 %v1431
        %1565 = vmatmul.mubr.f32.gmra.mrb[0].mxu0 %v1430
        %v1566 = vpop.f32.mrb[0].mxu0
        %v1567 = vadd.f32 0.0, %v1566
        %v1568 = vpop.f32.mrb[0].mxu0
        %1569 = vmatprep.mubr.f32.mxu0 %v1433
        %1570 = vmatmul.mubr.f32.gmra.mrb[0].mxu0 %v1432
        %v1571 = vpop.f32.mrb[0].mxu0
        %v1572 = vadd.f32 0.0, %v1571
        %v1573 = vpop.f32.mrb[0].mxu0
        %1574 = vmatprep.mubr.f32.mxu0 %v1435
        %1575 = vmatmul.mubr.f32.gmra.mrb[0].mxu0 %v1434
        %v1576 = vpop.f32.mrb[0].mxu0
        %v1577 = vadd.f32 0.0, %v1576
        %v1578 = vpop.f32.mrb[0].mxu0
        %1579 = vmatprep.mubr.f32.mxu0 %v1437
        %1580 = vmatmul.mubr.f32.gmra.mrb[0].mxu0 %v1436
        %v1581 = vpop.f32.mrb[0].mxu0
        %v1582 = vadd.f32 0.0, %v1581
        %v1583 = vpop.f32.mrb[0].mxu0
        %1584 = vmatprep.mubr.f32.mxu0 %v1439
        %1585 = vmatmul.mubr.f32.gmra.mrb[0].mxu0 %v1438
        %v1586 = vpop.f32.mrb[0].mxu0
        %v1587 = vadd.f32 0.0, %v1586
        %v1588 = vpop.f32.mrb[0].mxu0
        %1589 = vmatprep.mubr.f32.mxu0 %v1441
        %1590 = vmatmul.mubr.f32.gmra.mrb[0].mxu0 %v1440
        %v1591 = vpop.f32.mrb[0].mxu0
        %v1592 = vadd.f32 0.0, %v1591
        %v1593 = vpop.f32.mrb[0].mxu0
        %1594 = vmatprep.mubr.f32.mxu0 %v1443
        %1595 = vmatmul.mubr.f32.gmra.mrb[0].mxu0 %v1442
        %v1596 = vpop.f32.mrb[0].mxu0
        %v1597 = vadd.f32 0.0, %v1596
        %v1598 = vpop.f32.mrb[0].mxu0
        %1599 = vmatprep.mubr.f32.mxu0 %v1445
        %1600 = vmatmul.mubr.f32.gmra.mrb[0].mxu0 %v1444
        %v1601 = vpop.f32.mrb[0].mxu0
        %v1602 = vadd.f32 0.0, %v1601
        %v1603 = vpop.f32.mrb[0].mxu0
        %1604 = vmatprep.mubr.f32.mxu0 %v1447
        %1605 = vmatmul.mubr.f32.gmra.mrb[0].mxu0 %v1446
        %v1606 = vpop.f32.mrb[0].mxu0
        %v1607 = vadd.f32 0.0, %v1606
        %v1608 = vpop.f32.mrb[0].mxu0
        %1609 = vmatprep.mubr.f32.mxu0 %v1449
        %1610 = vmatmul.mubr.f32.gmra.mrb[0].mxu0 %v1448
        %v1611 = vpop.f32.mrb[0].mxu0
        %v1612 = vadd.f32 0.0, %v1611
        %v1613 = vpop.f32.mrb[0].mxu0
        %1614 = vmatprep.mubr.f32.mxu0 %v1451
        %1615 = vmatmul.mubr.f32.gmra.mrb[0].mxu0 %v1450
        %v1616 = vpop.f32.mrb[0].mxu0
        %v1617 = vadd.f32 0.0, %v1616
        %v1618 = vpop.f32.mrb[0].mxu0
        %1619 = vmatprep.mubr.f32.mxu0 %v1453
        %1620 = vmatmul.mubr.f32.gmra.mrb[0].mxu0 %v1452
        %v1621 = vpop.f32.mrb[0].mxu0
        %v1622 = vadd.f32 0.0, %v1621
        %v1623 = vpop.f32.mrb[0].mxu0
        %1624 = vmatprep.mubr.f32.mxu0 %v1455
        %1625 = vmatmul.mubr.f32.gmra.mrb[0].mxu0 %v1454
        %v1626 = vpop.f32.mrb[0].mxu0
        %v1627 = vadd.f32 0.0, %v1626
        %v1628 = vpop.f32.mrb[0].mxu0
        %1629 = vmatprep.mubr.f32.mxu0 %v1457
        %1630 = vmatmul.mubr.f32.gmra.mrb[0].mxu0 %v1456
        %v1631 = vpop.f32.mrb[0].mxu0
        %v1632 = vadd.f32 0.0, %v1631
        %v1633 = vpop.f32.mrb[0].mxu0
        %1634 = vdwg.mxu0
        %v1635 = vld [vmem:[%s3] sm:$0x3]
        %v1637 = vlaneseq
        %v1638 = vshrl.u32 %v1637, 7
        %v1639 = vsub.s32 0, %v1638
        %v1640 = vrot.slane %v1635, %v1639
        %v1641 = vlaneseq
        %v1642 = vshrl.u32 %v1641, 7
        %v1643 = vsub.s32 1, %v1642
        %v1644 = vrot.slane %v1635, %v1643
        %v1647 = vmul.f32 %v1426, %v1640
        %v1648 = vmul.f32 %v1427, %v1644
        %v1649 = vmul.f32 %v1428, %v1640
        %v1650 = vmul.f32 %v1429, %v1644
        %v1651 = vmul.f32 %v1430, %v1640
        %v1652 = vmul.f32 %v1431, %v1644
        %v1653 = vmul.f32 %v1432, %v1640
        %v1654 = vmul.f32 %v1433, %v1644
        %v1655 = vmul.f32 %v1434, %v1640
        %v1656 = vmul.f32 %v1435, %v1644
        %v1657 = vmul.f32 %v1436, %v1640
        %v1658 = vmul.f32 %v1437, %v1644
        %v1659 = vmul.f32 %v1438, %v1640
        %v1660 = vmul.f32 %v1439, %v1644
        %v1661 = vmul.f32 %v1440, %v1640
        %v1662 = vmul.f32 %v1441, %v1644
        %v1663 = vmul.f32 %v1442, %v1640
        %v1664 = vmul.f32 %v1443, %v1644
        %v1665 = vmul.f32 %v1444, %v1640
        %v1666 = vmul.f32 %v1445, %v1644
        %v1667 = vmul.f32 %v1446, %v1640
        %v1668 = vmul.f32 %v1447, %v1644
        %v1669 = vmul.f32 %v1448, %v1640
        %v1670 = vmul.f32 %v1449, %v1644
        %v1671 = vmul.f32 %v1450, %v1640
        %v1672 = vmul.f32 %v1451, %v1644
        %v1673 = vmul.f32 %v1452, %v1640
        %v1674 = vmul.f32 %v1453, %v1644
        %v1675 = vmul.f32 %v1454, %v1640
        %v1676 = vmul.f32 %v1455, %v1644
        %v1677 = vmul.f32 %v1456, %v1640
        %v1678 = vmul.f32 %v1457, %v1644
        %v1679 = vadd.f32 %v1647, %v1648
        %1680 = vadd.xlane.f32.xlu0 %v1679
        %v1681 = vpop.xlane.xlu0 %1680
        %v1682 = vadd.f32 %v1649, %v1650
        %1683 = vadd.xlane.f32.xlu0 %v1682
        %v1684 = vpop.xlane.xlu0 %1683
        %v1685 = vadd.f32 %v1651, %v1652
        %1686 = vadd.xlane.f32.xlu0 %v1685
        %v1687 = vpop.xlane.xlu0 %1686
        %v1688 = vadd.f32 %v1653, %v1654
        %1689 = vadd.xlane.f32.xlu0 %v1688
        %v1690 = vpop.xlane.xlu0 %1689
        %v1691 = vadd.f32 %v1655, %v1656
        %1692 = vadd.xlane.f32.xlu0 %v1691
        %v1693 = vpop.xlane.xlu0 %1692
        %v1694 = vadd.f32 %v1657, %v1658
        %1695 = vadd.xlane.f32.xlu0 %v1694
        %v1696 = vpop.xlane.xlu0 %1695
        %v1697 = vadd.f32 %v1659, %v1660
        %1698 = vadd.xlane.f32.xlu0 %v1697
        %v1699 = vpop.xlane.xlu0 %1698
        %v1700 = vadd.f32 %v1661, %v1662
        %1701 = vadd.xlane.f32.xlu0 %v1700
        %v1702 = vpop.xlane.xlu0 %1701
        %v1703 = vadd.f32 %v1663, %v1664
        %1704 = vadd.xlane.f32.xlu0 %v1703
        %v1705 = vpop.xlane.xlu0 %1704
        %v1706 = vadd.f32 %v1665, %v1666
        %1707 = vadd.xlane.f32.xlu0 %v1706
        %v1708 = vpop.xlane.xlu0 %1707
        %v1709 = vadd.f32 %v1667, %v1668
        %1710 = vadd.xlane.f32.xlu0 %v1709
        %v1711 = vpop.xlane.xlu0 %1710
        %v1712 = vadd.f32 %v1669, %v1670
        %1713 = vadd.xlane.f32.xlu0 %v1712
        %v1714 = vpop.xlane.xlu0 %1713
        %v1715 = vadd.f32 %v1671, %v1672
        %1716 = vadd.xlane.f32.xlu0 %v1715
        %v1717 = vpop.xlane.xlu0 %1716
        %v1718 = vadd.f32 %v1673, %v1674
        %1719 = vadd.xlane.f32.xlu0 %v1718
        %v1720 = vpop.xlane.xlu0 %1719
        %v1721 = vadd.f32 %v1675, %v1676
        %1722 = vadd.xlane.f32.xlu0 %v1721
        %v1723 = vpop.xlane.xlu0 %1722
        %v1724 = vadd.f32 %v1677, %v1678
        %1725 = vadd.xlane.f32.xlu0 %v1724
        %v1726 = vpop.xlane.xlu0 %1725
        %v1727 = vld [vmem:[%s5] sm:$0xff]
        %v1728 = vld [vmem:[%s5 + $0x8] sm:$0xff]
        %v1729 = vld [vmem:[%s5 + $0x10] sm:$0xff]
        %v1730 = vld [vmem:[%s5 + $0x18] sm:$0xff]
        %v1731 = vld [vmem:[%s5 + $0x20] sm:$0xff]
        %v1732 = vld [vmem:[%s5 + $0x28] sm:$0xff]
        %v1733 = vld [vmem:[%s5 + $0x30] sm:$0xff]
        %v1734 = vld [vmem:[%s5 + $0x38] sm:$0xff]
        %v1735 = vld [vmem:[%s5 + $0x40] sm:$0xff]
        %v1736 = vld [vmem:[%s5 + $0x48] sm:$0xff]
        %v1737 = vld [vmem:[%s5 + $0x50] sm:$0xff]
        %v1738 = vld [vmem:[%s5 + $0x58] sm:$0xff]
        %v1739 = vld [vmem:[%s5 + $0x60] sm:$0xff]
        %v1740 = vld [vmem:[%s5 + $0x68] sm:$0xff]
        %v1741 = vld [vmem:[%s5 + $0x70] sm:$0xff]
        %v1742 = vld [vmem:[%s5 + $0x78] sm:$0xff]
        %v1743 = vld [vmem:[%s5 + $0x80] sm:$0xff]
        %v1744 = vld [vmem:[%s5 + $0x88] sm:$0xff]
        %v1745 = vld [vmem:[%s5 + $0x90] sm:$0xff]
        %v1746 = vld [vmem:[%s5 + $0x98] sm:$0xff]
        %v1747 = vld [vmem:[%s5 + $0xa0] sm:$0xff]
        %v1748 = vld [vmem:[%s5 + $0xa8] sm:$0xff]
        %v1749 = vld [vmem:[%s5 + $0xb0] sm:$0xff]
        %v1750 = vld [vmem:[%s5 + $0xb8] sm:$0xff]
        %v1751 = vld [vmem:[%s5 + $0xc0] sm:$0xff]
        %v1752 = vld [vmem:[%s5 + $0xc8] sm:$0xff]
        %v1753 = vld [vmem:[%s5 + $0xd0] sm:$0xff]
        %v1754 = vld [vmem:[%s5 + $0xd8] sm:$0xff]
        %v1755 = vld [vmem:[%s5 + $0xe0] sm:$0xff]
        %v1756 = vld [vmem:[%s5 + $0xe8] sm:$0xff]
        %v1757 = vld [vmem:[%s5 + $0xf0] sm:$0xff]
        %v1758 = vld [vmem:[%s5 + $0xf8] sm:$0xff]
        %v1759 = vld [vmem:[%s7] sm:$0x1]
        %v1760 = vlaneseq
        %v1761 = vshrl.u32 %v1760, 7
        %v1762 = vsub.s32 0, %v1761
        %v1763 = vrot.slane %v1759, %v1762
        %v1764 = vmul.f32 %v1681, %v1763
        %v1765 = vmul.f32 %v1684, %v1763
        %v1766 = vmul.f32 %v1687, %v1763
        %v1767 = vmul.f32 %v1690, %v1763
        %v1768 = vmul.f32 %v1693, %v1763
        %v1769 = vmul.f32 %v1696, %v1763
        %v1770 = vmul.f32 %v1699, %v1763
        %v1771 = vmul.f32 %v1702, %v1763
        %v1772 = vmul.f32 %v1705, %v1763
        %v1773 = vmul.f32 %v1708, %v1763
        %v1774 = vmul.f32 %v1711, %v1763
        %v1775 = vmul.f32 %v1714, %v1763
        %v1776 = vmul.f32 %v1717, %v1763
        %v1777 = vmul.f32 %v1720, %v1763
        %v1778 = vmul.f32 %v1723, %v1763
        %v1779 = vmul.f32 %v1726, %v1763
        %1780 = vmatprep.subr.mxu0 0.0
        %1781 = vmatpush1.msra.mxu0 %v1727
        %1782 = vmatprep.subr.mxu0 0.0
        %1783 = vmatpush1.msra.mxu0 %v1728
        %1784 = vmatprep.subr.mxu0 0.0
        %1785 = vmatpush1.msra.mxu0 %v1729
        %1786 = vmatprep.subr.mxu0 0.0
        %1787 = vmatpush1.msra.mxu0 %v1730
        %1788 = vmatprep.subr.mxu0 0.0
        %1789 = vmatpush1.msra.mxu0 %v1731
        %1790 = vmatprep.subr.mxu0 0.0
        %1791 = vmatpush1.msra.mxu0 %v1732
        %1792 = vmatprep.subr.mxu0 0.0
        %1793 = vmatpush1.msra.mxu0 %v1733
        %1794 = vmatprep.subr.mxu0 0.0
        %1795 = vmatpush1.msra.mxu0 %v1734
        %1796 = vmatprep.subr.mxu0 0.0
        %1797 = vmatpush1.msra.mxu0 %v1735
        %1798 = vmatprep.subr.mxu0 0.0
        %1799 = vmatpush1.msra.mxu0 %v1736
        %1800 = vmatprep.subr.mxu0 0.0
        %1801 = vmatpush1.msra.mxu0 %v1737
        %1802 = vmatprep.subr.mxu0 0.0
        %1803 = vmatpush1.msra.mxu0 %v1738
        %1804 = vmatprep.subr.mxu0 0.0
        %1805 = vmatpush1.msra.mxu0 %v1739
        %1806 = vmatprep.subr.mxu0 0.0
        %1807 = vmatpush1.msra.mxu0 %v1740
        %1808 = vmatprep.subr.mxu0 0.0
        %1809 = vmatpush1.msra.mxu0 %v1741
        %1810 = vmatprep.subr.mxu0 0.0
        %1811 = vmatpush1.msra.mxu0 %v1742
        %1812 = vmatprep.subr.mxu0 0.0
        %1813 = vmatpush1.msra.mxu0 %v1743
        %1814 = vmatprep.subr.mxu0 0.0
        %1815 = vmatpush1.msra.mxu0 %v1744
        %1816 = vmatprep.subr.mxu0 0.0
        %1817 = vmatpush1.msra.mxu0 %v1745
        %1818 = vmatprep.subr.mxu0 0.0
        %1819 = vmatpush1.msra.mxu0 %v1746
        %1820 = vmatprep.subr.mxu0 0.0
        %1821 = vmatpush1.msra.mxu0 %v1747
        %1822 = vmatprep.subr.mxu0 0.0
        %1823 = vmatpush1.msra.mxu0 %v1748
        %1824 = vmatprep.subr.mxu0 0.0
        %1825 = vmatpush1.msra.mxu0 %v1749
        %1826 = vmatprep.subr.mxu0 0.0
        %1827 = vmatpush1.msra.mxu0 %v1750
        %1828 = vmatprep.subr.mxu0 0.0
        %1829 = vmatpush1.msra.mxu0 %v1751
        %1830 = vmatprep.subr.mxu0 0.0
        %1831 = vmatpush1.msra.mxu0 %v1752
        %1832 = vmatprep.subr.mxu0 0.0
        %1833 = vmatpush1.msra.mxu0 %v1753
        %1834 = vmatprep.subr.mxu0 0.0
        %1835 = vmatpush1.msra.mxu0 %v1754
        %1836 = vmatprep.subr.mxu0 0.0
        %1837 = vmatpush1.msra.mxu0 %v1755
        %1838 = vmatprep.subr.mxu0 0.0
        %1839 = vmatpush1.msra.mxu0 %v1756
        %1840 = vmatprep.subr.mxu0 0.0
        %1841 = vmatpush1.msra.mxu0 %v1757
        %1842 = vmatprep.subr.mxu0 0.0
        %1843 = vmatpush1.msra.mxu0 %v1758
        %1844 = vmatprep.mubr.f32.mxu0 %v351
        %1845 = vmatmul.mubr.f32.gmra.mrb[0].mxu0 %v1557
        %v1846 = vpop.f32.mrb[0].mxu0
        %v1847 = vadd.f32 %v1764, %v1846
        %v1848 = vpop.f32.mrb[0].mxu0
        %1849 = vmatprep.mubr.f32.mxu0 %v352
        %1850 = vmatmul.mubr.f32.gmra.mrb[0].mxu0 %v1562
        %v1851 = vpop.f32.mrb[0].mxu0
        %v1852 = vadd.f32 %v1765, %v1851
        %v1853 = vpop.f32.mrb[0].mxu0
        %1854 = vmatprep.mubr.f32.mxu0 %v353
        %1855 = vmatmul.mubr.f32.gmra.mrb[0].mxu0 %v1567
        %v1856 = vpop.f32.mrb[0].mxu0
        %v1857 = vadd.f32 %v1766, %v1856
        %v1858 = vpop.f32.mrb[0].mxu0
        %1859 = vmatprep.mubr.f32.mxu0 %v354
        %1860 = vmatmul.mubr.f32.gmra.mrb[0].mxu0 %v1572
        %v1861 = vpop.f32.mrb[0].mxu0
        %v1862 = vadd.f32 %v1767, %v1861
        %v1863 = vpop.f32.mrb[0].mxu0
        %1864 = vmatprep.mubr.f32.mxu0 %v355
        %1865 = vmatmul.mubr.f32.gmra.mrb[0].mxu0 %v1577
        %v1866 = vpop.f32.mrb[0].mxu0
        %v1867 = vadd.f32 %v1768, %v1866
        %v1868 = vpop.f32.mrb[0].mxu0
        %1869 = vmatprep.mubr.f32.mxu0 %v356
        %1870 = vmatmul.mubr.f32.gmra.mrb[0].mxu0 %v1582
        %v1871 = vpop.f32.mrb[0].mxu0
        %v1872 = vadd.f32 %v1769, %v1871
        %v1873 = vpop.f32.mrb[0].mxu0
        %1874 = vmatprep.mubr.f32.mxu0 %v357
        %1875 = vmatmul.mubr.f32.gmra.mrb[0].mxu0 %v1587
        %v1876 = vpop.f32.mrb[0].mxu0
        %v1877 = vadd.f32 %v1770, %v1876
        %v1878 = vpop.f32.mrb[0].mxu0
        %1879 = vmatprep.mubr.f32.mxu0 %v358
        %1880 = vmatmul.mubr.f32.gmra.mrb[0].mxu0 %v1592
        %v1881 = vpop.f32.mrb[0].mxu0
        %v1882 = vadd.f32 %v1771, %v1881
        %v1883 = vpop.f32.mrb[0].mxu0
        %1884 = vmatprep.mubr.f32.mxu0 %v359
        %1885 = vmatmul.mubr.f32.gmra.mrb[0].mxu0 %v1597
        %v1886 = vpop.f32.mrb[0].mxu0
        %v1887 = vadd.f32 %v1772, %v1886
        %v1888 = vpop.f32.mrb[0].mxu0
        %1889 = vmatprep.mubr.f32.mxu0 %v360
        %1890 = vmatmul.mubr.f32.gmra.mrb[0].mxu0 %v1602
        %v1891 = vpop.f32.mrb[0].mxu0
        %v1892 = vadd.f32 %v1773, %v1891
        %v1893 = vpop.f32.mrb[0].mxu0
        %1894 = vmatprep.mubr.f32.mxu0 %v361
        %1895 = vmatmul.mubr.f32.gmra.mrb[0].mxu0 %v1607
        %v1896 = vpop.f32.mrb[0].mxu0
        %v1897 = vadd.f32 %v1774, %v1896
        %v1898 = vpop.f32.mrb[0].mxu0
        %1899 = vmatprep.mubr.f32.mxu0 %v362
        %1900 = vmatmul.mubr.f32.gmra.mrb[0].mxu0 %v1612
        %v1901 = vpop.f32.mrb[0].mxu0
        %v1902 = vadd.f32 %v1775, %v1901
        %v1903 = vpop.f32.mrb[0].mxu0
        %1904 = vmatprep.mubr.f32.mxu0 %v363
        %1905 = vmatmul.mubr.f32.gmra.mrb[0].mxu0 %v1617
        %v1906 = vpop.f32.mrb[0].mxu0
        %v1907 = vadd.f32 %v1776, %v1906
        %v1908 = vpop.f32.mrb[0].mxu0
        %1909 = vmatprep.mubr.f32.mxu0 %v364
        %1910 = vmatmul.mubr.f32.gmra.mrb[0].mxu0 %v1622
        %v1911 = vpop.f32.mrb[0].mxu0
        %v1912 = vadd.f32 %v1777, %v1911
        %v1913 = vpop.f32.mrb[0].mxu0
        %1914 = vmatprep.mubr.f32.mxu0 %v365
        %1915 = vmatmul.mubr.f32.gmra.mrb[0].mxu0 %v1627
        %v1916 = vpop.f32.mrb[0].mxu0
        %v1917 = vadd.f32 %v1778, %v1916
        %v1918 = vpop.f32.mrb[0].mxu0
        %1919 = vmatprep.mubr.f32.mxu0 %v366
        %1920 = vmatmul.mubr.f32.gmra.mrb[0].mxu0 %v1632
        %v1921 = vpop.f32.mrb[0].mxu0
        %v1922 = vadd.f32 %v1779, %v1921
        %v1923 = vpop.f32.mrb[0].mxu0
        %1924 = vdwg.mxu0
        %v1925 = vld [vmem:[%s347] sm:$0xff]
        %v1926 = vld [vmem:[%s347 + $0x8] sm:$0xff]
        %v1927 = vld [vmem:[%s347 + $0x10] sm:$0xff]
        %v1928 = vld [vmem:[%s347 + $0x18] sm:$0xff]
        %v1929 = vld [vmem:[%s347 + $0x20] sm:$0xff]
        %v1930 = vld [vmem:[%s347 + $0x28] sm:$0xff]
        %v1931 = vld [vmem:[%s347 + $0x30] sm:$0xff]
        %v1932 = vld [vmem:[%s347 + $0x38] sm:$0xff]
        %v1933 = vld [vmem:[%s347 + $0x40] sm:$0xff]
        %v1934 = vld [vmem:[%s347 + $0x48] sm:$0xff]
        %v1935 = vld [vmem:[%s347 + $0x50] sm:$0xff]
        %v1936 = vld [vmem:[%s347 + $0x58] sm:$0xff]
        %v1937 = vld [vmem:[%s347 + $0x60] sm:$0xff]
        %v1938 = vld [vmem:[%s347 + $0x68] sm:$0xff]
        %v1939 = vld [vmem:[%s347 + $0x70] sm:$0xff]
        %v1940 = vld [vmem:[%s347 + $0x78] sm:$0xff]
        %v1941 = vld [vmem:[%s7 + $0x1] sm:$0x1]
        %1943 = vset.pattern.permute.xlu0 0
        %1944 = vperm.xlu0 %1943, %v1925
        %v1945 = vpop.permute.xlu0 %1944
        %1948 = vset.pattern.permute.xlu0 0
        %1949 = vperm.xlu0 %1948, %v1926
        %v1950 = vpop.permute.xlu0 %1949
        %1953 = vset.pattern.permute.xlu0 0
        %1954 = vperm.xlu0 %1953, %v1927
        %v1955 = vpop.permute.xlu0 %1954
        %1958 = vset.pattern.permute.xlu0 0
        %1959 = vperm.xlu0 %1958, %v1928
        %v1960 = vpop.permute.xlu0 %1959
        %1963 = vset.pattern.permute.xlu0 0
        %1964 = vperm.xlu0 %1963, %v1929
        %v1965 = vpop.permute.xlu0 %1964
        %1968 = vset.pattern.permute.xlu0 0
        %1969 = vperm.xlu0 %1968, %v1930
        %v1970 = vpop.permute.xlu0 %1969
        %1973 = vset.pattern.permute.xlu0 0
        %1974 = vperm.xlu0 %1973, %v1931
        %v1975 = vpop.permute.xlu0 %1974
        %1978 = vset.pattern.permute.xlu0 0
        %1979 = vperm.xlu0 %1978, %v1932
        %v1980 = vpop.permute.xlu0 %1979
        %1983 = vset.pattern.permute.xlu0 0
        %1984 = vperm.xlu0 %1983, %v1933
        %v1985 = vpop.permute.xlu0 %1984
        %1988 = vset.pattern.permute.xlu0 0
        %1989 = vperm.xlu0 %1988, %v1934
        %v1990 = vpop.permute.xlu0 %1989
        %1993 = vset.pattern.permute.xlu0 0
        %1994 = vperm.xlu0 %1993, %v1935
        %v1995 = vpop.permute.xlu0 %1994
        %1998 = vset.pattern.permute.xlu0 0
        %1999 = vperm.xlu0 %1998, %v1936
        %v2000 = vpop.permute.xlu0 %1999
        %2003 = vset.pattern.permute.xlu0 0
        %2004 = vperm.xlu0 %2003, %v1937
        %v2005 = vpop.permute.xlu0 %2004
        %2008 = vset.pattern.permute.xlu0 0
        %2009 = vperm.xlu0 %2008, %v1938
        %v2010 = vpop.permute.xlu0 %2009
        %2013 = vset.pattern.permute.xlu0 0
        %2014 = vperm.xlu0 %2013, %v1939
        %v2015 = vpop.permute.xlu0 %2014
        %2018 = vset.pattern.permute.xlu0 0
        %2019 = vperm.xlu0 %2018, %v1940
        %v2020 = vpop.permute.xlu0 %2019
        %v2022 = vlaneseq
        %v2023 = vshrl.u32 %v2022, 7
        %v2024 = vsub.s32 0, %v2023
        %v2025 = vrot.slane %v1941, %v2024
        %v2026 = vmul.f32 %v1945, %v2025
        %v2027 = vmul.f32 %v1950, %v2025
        %v2028 = vmul.f32 %v1955, %v2025
        %v2029 = vmul.f32 %v1960, %v2025
        %v2030 = vmul.f32 %v1965, %v2025
        %v2031 = vmul.f32 %v1970, %v2025
        %v2032 = vmul.f32 %v1975, %v2025
        %v2033 = vmul.f32 %v1980, %v2025
        %v2034 = vmul.f32 %v1985, %v2025
        %v2035 = vmul.f32 %v1990, %v2025
        %v2036 = vmul.f32 %v1995, %v2025
        %v2037 = vmul.f32 %v2000, %v2025
        %v2038 = vmul.f32 %v2005, %v2025
        %v2039 = vmul.f32 %v2010, %v2025
        %v2040 = vmul.f32 %v2015, %v2025
        %v2041 = vmul.f32 %v2020, %v2025
        %v2042 = vadd.f32 %v1847, %v2026
        %v2043 = vadd.f32 %v1852, %v2027
        %v2044 = vadd.f32 %v1857, %v2028
        %v2045 = vadd.f32 %v1862, %v2029
        %v2046 = vadd.f32 %v1867, %v2030
        %v2047 = vadd.f32 %v1872, %v2031
        %v2048 = vadd.f32 %v1877, %v2032
        %v2049 = vadd.f32 %v1882, %v2033
        %v2050 = vadd.f32 %v1887, %v2034
        %v2051 = vadd.f32 %v1892, %v2035
        %v2052 = vadd.f32 %v1897, %v2036
        %v2053 = vadd.f32 %v1902, %v2037
        %v2054 = vadd.f32 %v1907, %v2038
        %v2055 = vadd.f32 %v1912, %v2039
        %v2056 = vadd.f32 %v1917, %v2040
        %v2057 = vadd.f32 %v1922, %v2041
        %v2058 = vld [vmem:[%s7 + $0x2] sm:$0x1]
        %v2059 = vlaneseq
        %v2060 = vshrl.u32 %v2059, 7
        %v2061 = vsub.s32 0, %v2060
        %v2062 = vrot.slane %v2058, %v2061
        %v2063 = vadd.f32 %v2042, %v2062
        %v2064 = vadd.f32 %v2043, %v2062
        %v2065 = vadd.f32 %v2044, %v2062
        %v2066 = vadd.f32 %v2045, %v2062
        %v2067 = vadd.f32 %v2046, %v2062
        %v2068 = vadd.f32 %v2047, %v2062
        %v2069 = vadd.f32 %v2048, %v2062
        %v2070 = vadd.f32 %v2049, %v2062
        %v2071 = vadd.f32 %v2050, %v2062
        %v2072 = vadd.f32 %v2051, %v2062
        %v2073 = vadd.f32 %v2052, %v2062
        %v2074 = vadd.f32 %v2053, %v2062
        %v2075 = vadd.f32 %v2054, %v2062
        %v2076 = vadd.f32 %v2055, %v2062
        %v2077 = vadd.f32 %v2056, %v2062
        %v2078 = vadd.f32 %v2057, %v2062
        %v2079 = vld [vmem:[%s6] sm:$0xff]
        %v2080 = vld [vmem:[%s6 + $0x8] sm:$0xff]
        %v2081 = vld [vmem:[%s6 + $0x10] sm:$0xff]
        %v2082 = vld [vmem:[%s6 + $0x18] sm:$0xff]
        %v2083 = vld [vmem:[%s6 + $0x20] sm:$0xff]
        %v2084 = vld [vmem:[%s6 + $0x28] sm:$0xff]
        %v2085 = vld [vmem:[%s6 + $0x30] sm:$0xff]
        %v2086 = vld [vmem:[%s6 + $0x38] sm:$0xff]
        %v2087 = vld [vmem:[%s6 + $0x40] sm:$0xff]
        %v2088 = vld [vmem:[%s6 + $0x48] sm:$0xff]
        %v2089 = vld [vmem:[%s6 + $0x50] sm:$0xff]
        %v2090 = vld [vmem:[%s6 + $0x58] sm:$0xff]
        %v2091 = vld [vmem:[%s6 + $0x60] sm:$0xff]
        %v2092 = vld [vmem:[%s6 + $0x68] sm:$0xff]
        %v2093 = vld [vmem:[%s6 + $0x70] sm:$0xff]
        %v2094 = vld [vmem:[%s6 + $0x78] sm:$0xff]
        %v2095 = vld [vmem:[%s7 + $0x3] sm:$0x1]
        %v2096 = vlaneseq
        %v2097 = vshrl.u32 %v2096, 7
        %v2098 = vsub.s32 0, %v2097
        %v2099 = vrot.slane %v2095, %v2098
        %2100 = vmatprep.subr.mxu0 0.0
        %2101 = vmatpush1.msra.mxu0 %v2079
        %2102 = vmatprep.subr.mxu0 0.0
        %2103 = vmatpush1.msra.mxu0 %v2080
        %2104 = vmatprep.subr.mxu0 0.0
        %2105 = vmatpush1.msra.mxu0 %v2081
        %2106 = vmatprep.subr.mxu0 0.0
        %2107 = vmatpush1.msra.mxu0 %v2082
        %2108 = vmatprep.subr.mxu0 0.0
        %2109 = vmatpush1.msra.mxu0 %v2083
        %2110 = vmatprep.subr.mxu0 0.0
        %2111 = vmatpush1.msra.mxu0 %v2084
        %2112 = vmatprep.subr.mxu0 0.0
        %2113 = vmatpush1.msra.mxu0 %v2085
        %2114 = vmatprep.subr.mxu0 0.0
        %2115 = vmatpush1.msra.mxu0 %v2086
        %2116 = vmatprep.subr.mxu0 0.0
        %2117 = vmatpush1.msra.mxu0 %v2087
        %2118 = vmatprep.subr.mxu0 0.0
        %2119 = vmatpush1.msra.mxu0 %v2088
        %2120 = vmatprep.subr.mxu0 0.0
        %2121 = vmatpush1.msra.mxu0 %v2089
        %2122 = vmatprep.subr.mxu0 0.0
        %2123 = vmatpush1.msra.mxu0 %v2090
        %2124 = vmatprep.subr.mxu0 0.0
        %2125 = vmatpush1.msra.mxu0 %v2091
        %2126 = vmatprep.subr.mxu0 0.0
        %2127 = vmatpush1.msra.mxu0 %v2092
        %2128 = vmatprep.subr.mxu0 0.0
        %2129 = vmatpush1.msra.mxu0 %v2093
        %2130 = vmatprep.subr.mxu0 0.0
        %2131 = vmatpush1.msra.mxu0 %v2094
        %2132 = vmatprep.subr.mxu0 0.0
        %2133 = vmatpush1.msra.mxu0 0.0
        %2134 = vmatprep.subr.mxu0 0.0
        %2135 = vmatpush1.msra.mxu0 0.0
        %2136 = vmatprep.subr.mxu0 0.0
        %2137 = vmatpush1.msra.mxu0 0.0
        %2138 = vmatprep.subr.mxu0 0.0
        %2139 = vmatpush1.msra.mxu0 0.0
        %2140 = vmatprep.subr.mxu0 0.0
        %2141 = vmatpush1.msra.mxu0 0.0
        %2142 = vmatprep.subr.mxu0 0.0
        %2143 = vmatpush1.msra.mxu0 0.0
        %2144 = vmatprep.subr.mxu0 0.0
        %2145 = vmatpush1.msra.mxu0 0.0
        %2146 = vmatprep.subr.mxu0 0.0
        %2147 = vmatpush1.msra.mxu0 0.0
        %2148 = vmatprep.subr.mxu0 0.0
        %2149 = vmatpush1.msra.mxu0 0.0
        %2150 = vmatprep.subr.mxu0 0.0
        %2151 = vmatpush1.msra.mxu0 0.0
        %2152 = vmatprep.subr.mxu0 0.0
        %2153 = vmatpush1.msra.mxu0 0.0
        %2154 = vmatprep.subr.mxu0 0.0
        %2155 = vmatpush1.msra.mxu0 0.0
        %2156 = vmatprep.subr.mxu0 0.0
        %2157 = vmatpush1.msra.mxu0 0.0
        %2158 = vmatprep.subr.mxu0 0.0
        %2159 = vmatpush1.msra.mxu0 0.0
        %2160 = vmatprep.subr.mxu0 0.0
        %2161 = vmatpush1.msra.mxu0 0.0
        %2162 = vmatprep.subr.mxu0 0.0
        %2163 = vmatpush1.msra.mxu0 0.0
        %2164 = vmatprep.mubr.f32.mxu0 0.0
        %2165 = vmatmul.mubr.f32.gmra.mrb[0].mxu0 %v2063
        %v2166 = vpop.f32.mrb[0].mxu0
        %v2167 = vadd.f32 %v2099, %v2166
        %v2168 = vpop.f32.mrb[0].mxu0
        %2169 = vmatprep.mubr.f32.mxu0 0.0
        %2170 = vmatmul.mubr.f32.gmra.mrb[0].mxu0 %v2064
        %v2171 = vpop.f32.mrb[0].mxu0
        %v2172 = vadd.f32 %v2099, %v2171
        %v2173 = vpop.f32.mrb[0].mxu0
        %2174 = vmatprep.mubr.f32.mxu0 0.0
        %2175 = vmatmul.mubr.f32.gmra.mrb[0].mxu0 %v2065
        %v2176 = vpop.f32.mrb[0].mxu0
        %v2177 = vadd.f32 %v2099, %v2176
        %v2178 = vpop.f32.mrb[0].mxu0
        %2179 = vmatprep.mubr.f32.mxu0 0.0
        %2180 = vmatmul.mubr.f32.gmra.mrb[0].mxu0 %v2066
        %v2181 = vpop.f32.mrb[0].mxu0
        %v2182 = vadd.f32 %v2099, %v2181
        %v2183 = vpop.f32.mrb[0].mxu0
        %2184 = vmatprep.mubr.f32.mxu0 0.0
        %2185 = vmatmul.mubr.f32.gmra.mrb[0].mxu0 %v2067
        %v2186 = vpop.f32.mrb[0].mxu0
        %v2187 = vadd.f32 %v2099, %v2186
        %v2188 = vpop.f32.mrb[0].mxu0
        %2189 = vmatprep.mubr.f32.mxu0 0.0
        %2190 = vmatmul.mubr.f32.gmra.mrb[0].mxu0 %v2068
        %v2191 = vpop.f32.mrb[0].mxu0
        %v2192 = vadd.f32 %v2099, %v2191
        %v2193 = vpop.f32.mrb[0].mxu0
        %2194 = vmatprep.mubr.f32.mxu0 0.0
        %2195 = vmatmul.mubr.f32.gmra.mrb[0].mxu0 %v2069
        %v2196 = vpop.f32.mrb[0].mxu0
        %v2197 = vadd.f32 %v2099, %v2196
        %v2198 = vpop.f32.mrb[0].mxu0
        %2199 = vmatprep.mubr.f32.mxu0 0.0
        %2200 = vmatmul.mubr.f32.gmra.mrb[0].mxu0 %v2070
        %v2201 = vpop.f32.mrb[0].mxu0
        %v2202 = vadd.f32 %v2099, %v2201
        %v2203 = vpop.f32.mrb[0].mxu0
        %2204 = vmatprep.mubr.f32.mxu0 0.0
        %2205 = vmatmul.mubr.f32.gmra.mrb[0].mxu0 %v2071
        %v2206 = vpop.f32.mrb[0].mxu0
        %v2207 = vadd.f32 %v2099, %v2206
        %v2208 = vpop.f32.mrb[0].mxu0
        %2209 = vmatprep.mubr.f32.mxu0 0.0
        %2210 = vmatmul.mubr.f32.gmra.mrb[0].mxu0 %v2072
        %v2211 = vpop.f32.mrb[0].mxu0
        %v2212 = vadd.f32 %v2099, %v2211
        %v2213 = vpop.f32.mrb[0].mxu0
        %2214 = vmatprep.mubr.f32.mxu0 0.0
        %2215 = vmatmul.mubr.f32.gmra.mrb[0].mxu0 %v2073
        %v2216 = vpop.f32.mrb[0].mxu0
        %v2217 = vadd.f32 %v2099, %v2216
        %v2218 = vpop.f32.mrb[0].mxu0
        %2219 = vmatprep.mubr.f32.mxu0 0.0
        %2220 = vmatmul.mubr.f32.gmra.mrb[0].mxu0 %v2074
        %v2221 = vpop.f32.mrb[0].mxu0
        %v2222 = vadd.f32 %v2099, %v2221
        %v2223 = vpop.f32.mrb[0].mxu0
        %2224 = vmatprep.mubr.f32.mxu0 0.0
        %2225 = vmatmul.mubr.f32.gmra.mrb[0].mxu0 %v2075
        %v2226 = vpop.f32.mrb[0].mxu0
        %v2227 = vadd.f32 %v2099, %v2226
        %v2228 = vpop.f32.mrb[0].mxu0
        %2229 = vmatprep.mubr.f32.mxu0 0.0
        %2230 = vmatmul.mubr.f32.gmra.mrb[0].mxu0 %v2076
        %v2231 = vpop.f32.mrb[0].mxu0
        %v2232 = vadd.f32 %v2099, %v2231
        %v2233 = vpop.f32.mrb[0].mxu0
        %2234 = vmatprep.mubr.f32.mxu0 0.0
        %2235 = vmatmul.mubr.f32.gmra.mrb[0].mxu0 %v2077
        %v2236 = vpop.f32.mrb[0].mxu0
        %v2237 = vadd.f32 %v2099, %v2236
        %v2238 = vpop.f32.mrb[0].mxu0
        %2239 = vmatprep.mubr.f32.mxu0 0.0
        %2240 = vmatmul.mubr.f32.gmra.mrb[0].mxu0 %v2078
        %v2241 = vpop.f32.mrb[0].mxu0
        %v2242 = vadd.f32 %v2099, %v2241
        %v2243 = vpop.f32.mrb[0].mxu0
        %2244 = vdwg.mxu0
        %v2245 = vmax.f32 %v2167, 0.0
        %v2246 = vmax.f32 %v2172, 0.0
        %v2247 = vmax.f32 %v2177, 0.0
        %v2248 = vmax.f32 %v2182, 0.0
        %v2249 = vmax.f32 %v2187, 0.0
        %v2250 = vmax.f32 %v2192, 0.0
        %v2251 = vmax.f32 %v2197, 0.0
        %v2252 = vmax.f32 %v2202, 0.0
        %v2253 = vmax.f32 %v2207, 0.0
        %v2254 = vmax.f32 %v2212, 0.0
        %v2255 = vmax.f32 %v2217, 0.0
        %v2256 = vmax.f32 %v2222, 0.0
        %v2257 = vmax.f32 %v2227, 0.0
        %v2258 = vmax.f32 %v2232, 0.0
        %v2259 = vmax.f32 %v2237, 0.0
        %v2260 = vmax.f32 %v2242, 0.0
        %v2261 = vld [vmem:[%s7 + $0x4] sm:$0x1]
        %v2262 = vld [vmem:[%s7 + $0x5] sm:$0x1]
        %2264 = vset.pattern.permute.xlu0 0
        %2265 = vperm.xlu0 %2264, %v2262
        %v2266 = vpop.permute.xlu0 %2265
        %2268 = vmatprep.subr.mxu0 0.0
        %2269 = vmatpush1.xpose.msra.mxu0 %v2245
        %2270 = vmatprep.subr.mxu0 0.0
        %2271 = vmatpush1.xpose.msra.mxu0 %v2246
        %2272 = vmatprep.subr.mxu0 0.0
        %2273 = vmatpush1.xpose.msra.mxu0 %v2247
        %2274 = vmatprep.subr.mxu0 0.0
        %2275 = vmatpush1.xpose.msra.mxu0 %v2248
        %2276 = vmatprep.subr.mxu0 0.0
        %2277 = vmatpush1.xpose.msra.mxu0 %v2249
        %2278 = vmatprep.subr.mxu0 0.0
        %2279 = vmatpush1.xpose.msra.mxu0 %v2250
        %2280 = vmatprep.subr.mxu0 0.0
        %2281 = vmatpush1.xpose.msra.mxu0 %v2251
        %2282 = vmatprep.subr.mxu0 0.0
        %2283 = vmatpush1.xpose.msra.mxu0 %v2252
        %2284 = vmatprep.subr.mxu0 0.0
        %2285 = vmatpush1.xpose.msra.mxu0 %v2253
        %2286 = vmatprep.subr.mxu0 0.0
        %2287 = vmatpush1.xpose.msra.mxu0 %v2254
        %2288 = vmatprep.subr.mxu0 0.0
        %2289 = vmatpush1.xpose.msra.mxu0 %v2255
        %2290 = vmatprep.subr.mxu0 0.0
        %2291 = vmatpush1.xpose.msra.mxu0 %v2256
        %2292 = vmatprep.subr.mxu0 0.0
        %2293 = vmatpush1.xpose.msra.mxu0 %v2257
        %2294 = vmatprep.subr.mxu0 0.0
        %2295 = vmatpush1.xpose.msra.mxu0 %v2258
        %2296 = vmatprep.subr.mxu0 0.0
        %2297 = vmatpush1.xpose.msra.mxu0 %v2259
        %2298 = vmatprep.subr.mxu0 0.0
        %2299 = vmatpush1.xpose.msra.mxu0 %v2260
        %2300 = vmatprep.subr.mxu0 0.0
        %2301 = vmatpush1.xpose.msra.mxu0 0.0
        %2302 = vmatprep.subr.mxu0 0.0
        %2303 = vmatpush1.xpose.msra.mxu0 0.0
        %2304 = vmatprep.subr.mxu0 0.0
        %2305 = vmatpush1.xpose.msra.mxu0 0.0
        %2306 = vmatprep.subr.mxu0 0.0
        %2307 = vmatpush1.xpose.msra.mxu0 0.0
        %2308 = vmatprep.subr.mxu0 0.0
        %2309 = vmatpush1.xpose.msra.mxu0 0.0
        %2310 = vmatprep.subr.mxu0 0.0
        %2311 = vmatpush1.xpose.msra.mxu0 0.0
        %2312 = vmatprep.subr.mxu0 0.0
        %2313 = vmatpush1.xpose.msra.mxu0 0.0
        %2314 = vmatprep.subr.mxu0 0.0
        %2315 = vmatpush1.xpose.msra.mxu0 0.0
        %2316 = vmatprep.subr.mxu0 0.0
        %2317 = vmatpush1.xpose.msra.mxu0 0.0
        %2318 = vmatprep.subr.mxu0 0.0
        %2319 = vmatpush1.xpose.msra.mxu0 0.0
        %2320 = vmatprep.subr.mxu0 0.0
        %2321 = vmatpush1.xpose.msra.mxu0 0.0
        %2322 = vmatprep.subr.mxu0 0.0
        %2323 = vmatpush1.xpose.msra.mxu0 0.0
        %2324 = vmatprep.subr.mxu0 0.0
        %2325 = vmatpush1.xpose.msra.mxu0 0.0
        %2326 = vmatprep.subr.mxu0 0.0
        %2327 = vmatpush1.xpose.msra.mxu0 0.0
        %2328 = vmatprep.subr.mxu0 0.0
        %2329 = vmatpush1.xpose.msra.mxu0 0.0
        %2330 = vmatprep.subr.mxu0 0.0
        %2331 = vmatpush1.xpose.msra.mxu0 0.0
        %2332 = vmatprep.mubr.f32.mxu0 0.0
        %2333 = vmatmul.mubr.f32.gmra.mrb[0].mxu0 %v2261
        %v2334 = vpop.f32.mrb[0].mxu0
        %v2335 = vadd.f32 %v2266, %v2334
        %v2336 = vpop.f32.mrb[0].mxu0
        %2337 = vdwg.mxu0
        %2338 = vst [vmem:[%s330] sm:$0x1] %v2335
        %s2339 = sand.u32 %s213, 1
        %s2340 = scalar_lea.sflag [#allocation3], %s2339
        %s2341 = sand.u32 %s213, 1
        %s2342 = scalar_lea.vmem [#allocation2], %s2341
        // Predicated region
        $region53: #{my_model_forward.3} parent=51 // pred_check
          %p2343 = pneg %p223
        $region54: #{my_model_forward.3} parent=51 // pred_check_branch
          %2345 = sbr.rel (%p2343) target = $region56
        $region55: #{my_model_forward.3} parent=51 // pred_region
          %s2347 = ssub.s32 16, 16
          %2348 = vsyncadd %s2340, %s2347
          %s2349 = smul.addr %s22, 16
          %s2350 = scalar_lea.hbm %s8, %s2349
          %s2352 = sshll.u32 %s2342, 4
          %s2353 = int_to_ptr.vmem [resolvable:$true] %s2352
          %2355 = dma.vmem_to_hbm [thread:$0]  %s2353, 16, %s2350, %s2340
        $region56: #{my_model_forward.3} parent=51 // pred_fallthru
          _
      $region52: #{my_model_forward.3} parent=5 // pred_fallthru
        _
      %p2356 = scmp.le.s32.totalorder 2, %s17
      // Predicated region
      $region57: #{my_model_forward.3} parent=5 // pred_check
        %p2357 = pneg %p2356
      $region58: #{my_model_forward.3} parent=5 // pred_check_branch
        %2359 = sbr.rel (%p2357) target = $region60
      $region59: #{my_model_forward.3} parent=5 // pred_region
        %s2360 = ssub.s32 %s17, 2
        // Predicated region
        $region61: #{my_model_forward.3} parent=59 // pred_check
          %p2361 = pneg %p229
        $region62: #{my_model_forward.3} parent=59 // pred_check_branch
          %2363 = sbr.rel (%p2361) target = $region64
        $region63: #{my_model_forward.3} parent=59 // pred_region
          %s2364 = sand.u32 %s214, 1
          %s2365 = scalar_lea.sflag [#allocation3], %s2364
          %s2366 = sand.u32 %s214, 1
          %s2367 = scalar_lea.vmem [#allocation2], %s2366
          %2368 = dma.done %s2365, 16
        $region64: #{my_model_forward.3} parent=59 // pred_fallthru
          _
      $region60: #{my_model_forward.3} parent=5 // pred_fallthru
        _
    $region6: #{my_model_forward.3} parent=1 // loop_footer
      %s21 = sadd.s32 1, %s17
    $region7: #{my_model_forward.3} parent=1 // loop_footer_branch
      %16 = sbr.rel target = $region3
    $region8: #{my_model_forward.3} parent=1 // loop_exit
      _
    %2369 = vsyncpa [#allocation3], 1
    %s2370 = scalar_lea.sflag [#allocation3], 1
    %2371 = vsyncpa %s2370, 1

</llo_original>
